<compile_context>
chip_gen: v6e
topology: v6e:2x2x1
jax: 0.10.0
libtpu: 0.0.40
codegen_flags: <defaults>
</compile_context>

<pallas_src>
import functools

import jax
import jax.numpy as jnp
from jax import lax
from jax.experimental import pallas as pl
from jax.experimental.pallas import tpu as pltpu

# ----------------------------- model config ---------------------------------
VOCAB = 128
D_MODEL = 32
N_HEADS = 2
D_KV = 16
INNER = N_HEADS * D_KV          # 32
D_FF = 64
N_LAYERS = 2
EPS = 1e-6
KV_W = N_LAYERS * 2 * INNER     # 128  -> lane-dense present-KV slab


# ------------------------------ fused kernel --------------------------------
def _fused_decoder_kernel(ids_ref, enc_ref,
                          embed_ref, sa_ln_ref, sa_qkv_ref, sa_o_ref,
                          ca_ln_ref, ca_q_ref, ca_kv_ref, ca_o_ref,
                          ff_ln_ref, ff_wi_ref, ff_wo_ref, final_ln_ref,
                          logits_ref, dec_kv_ref, enc_kv_ref):
    S = logits_ref.shape[1]

    # ---- in-kernel embedding gather: one-hot @ embed (MXU) ------------------
    ids = ids_ref[0]                                           # (S, 1) int32
    vocab_iota = lax.broadcasted_iota(jnp.int32, (S, VOCAB), 1)
    onehot = (vocab_iota == ids).astype(jnp.float32)           # (S, VOCAB)
    h = jnp.dot(onehot, embed_ref[...],
                preferred_element_type=jnp.float32)            # (S, D)

    enc = enc_ref[0]                                           # (Se, D)

    # ---- causal additive bias built in-kernel (no DMA'd mask) ---------------
    row = lax.broadcasted_iota(jnp.int32, (S, S), 0)
    col = lax.broadcasted_iota(jnp.int32, (S, S), 1)
    causal = jnp.where(col <= row, jnp.float32(0.0), jnp.float32(-1e30))

    def rmsnorm(x, w):                      # T5 LayerNorm: no mean subtraction
        var = jnp.mean(x * x, axis=-1, keepdims=True)
        return x * lax.rsqrt(var + EPS) * w

    def mha(q, k, v, bias):                 # q:(Sq,INNER) k,v:(Sk,INNER)
        outs = []
        for hh in range(N_HEADS):           # static unrolled head loop
            sl = slice(hh * D_KV, (hh + 1) * D_KV)
            # T5 attention: no 1/sqrt(d) scaling.
            s = lax.dot_general(q[:, sl], k[:, sl], (((1,), (1,)), ((), ())),
                                preferred_element_type=jnp.float32)
            if bias is not None:
                s = s + bias
            m = jnp.max(s, axis=-1, keepdims=True)
            p = jnp.exp(s - m)
            p = p * pl.reciprocal(jnp.sum(p, axis=-1, keepdims=True),
                                  approx=True)
            outs.append(jnp.dot(p, v[:, sl],
                                preferred_element_type=jnp.float32))
        return jnp.concatenate(outs, axis=-1)                  # (Sq, INNER)

    dec_kvs = []
    enc_kvs = []
    for l in range(N_LAYERS):               # static unrolled layer loop
        # ---- self attention (fused QKV projection) --------------------------
        x = rmsnorm(h, sa_ln_ref[l])
        qkv = jnp.dot(x, sa_qkv_ref[l],
                      preferred_element_type=jnp.float32)      # (S, 3*INNER)
        q = qkv[:, :INNER]
        k = qkv[:, INNER:2 * INNER]
        v = qkv[:, 2 * INNER:]
        attn = mha(q, k, v, causal)                            # (S, INNER)
        h = h + jnp.dot(attn, sa_o_ref[l],
                        preferred_element_type=jnp.float32)
        dec_kvs.append(jnp.concatenate([k, v], axis=-1))       # (S, 2*INNER)

        # ---- cross attention (fused KV projection over encoder states) ------
        x = rmsnorm(h, ca_ln_ref[l])
        qc = jnp.dot(x, ca_q_ref[l],
                     preferred_element_type=jnp.float32)       # (S, INNER)
        kvc = jnp.dot(enc, ca_kv_ref[l],
                      preferred_element_type=jnp.float32)      # (Se, 2*INNER)
        kc = kvc[:, :INNER]
        vc = kvc[:, INNER:]
        attn = mha(qc, kc, vc, None)                           # (S, INNER)
        h = h + jnp.dot(attn, ca_o_ref[l],
                        preferred_element_type=jnp.float32)
        enc_kvs.append(kvc)                                    # (Se, 2*INNER)

        # ---- feed forward (ReLU) --------------------------------------------
        x = rmsnorm(h, ff_ln_ref[l])
        ff = jnp.maximum(jnp.dot(x, ff_wi_ref[l],
                                 preferred_element_type=jnp.float32), 0.0)
        h = h + jnp.dot(ff, ff_wo_ref[l],
                        preferred_element_type=jnp.float32)

    # ---- final norm + tied-embedding lm head --------------------------------
    # lm head is tied to the embedding table => scale by d_model**-0.5.
    h = rmsnorm(h, final_ln_ref[...]) * (D_MODEL ** -0.5)
    logits_ref[0] = lax.dot_general(h, embed_ref[...],
                                    (((1,), (1,)), ((), ())),
                                    preferred_element_type=jnp.float32)

    # lane-dense (last dim = 128) present-KV stores, one per output
    dec_kv_ref[0] = jnp.concatenate(dec_kvs, axis=-1)          # (S, KV_W)
    enc_kv_ref[0] = jnp.concatenate(enc_kvs, axis=-1)          # (Se, KV_W)


# ----------------------------- parameter setup -------------------------------
def init_params(key):
    def nrm(k, shape, scale=0.05):
        return scale * jax.random.normal(k, shape, dtype=jnp.float32)

    keys = jax.random.split(key, 8)
    return {
        "embed": nrm(keys[0], (VOCAB, D_MODEL)),         # also the tied lm head
        "final_ln": jnp.ones((1, D_MODEL), jnp.float32),
        "sa_ln": jnp.ones((N_LAYERS, 1, D_MODEL), jnp.float32),
        "sa_qkv": nrm(keys[1], (N_LAYERS, D_MODEL, 3 * INNER)),
        "sa_o": nrm(keys[2], (N_LAYERS, INNER, D_MODEL)),
        "ca_ln": jnp.ones((N_LAYERS, 1, D_MODEL), jnp.float32),
        "ca_q": nrm(keys[3], (N_LAYERS, D_MODEL, INNER)),
        "ca_kv": nrm(keys[4], (N_LAYERS, D_MODEL, 2 * INNER)),
        "ca_o": nrm(keys[5], (N_LAYERS, INNER, D_MODEL)),
        "ff_ln": jnp.ones((N_LAYERS, 1, D_MODEL), jnp.float32),
        "ff_wi": nrm(keys[6], (N_LAYERS, D_MODEL, D_FF)),
        "ff_wo": nrm(keys[7], (N_LAYERS, D_FF, D_MODEL)),
    }


# ------------------------------ decoder forward ------------------------------
def t5_decoder_forward(params, input_ids, encoder_hidden_states, enable_cache,
                       past_key_values=None):
    """Returns (logits, past_key_values) mirroring Seq2SeqLMOutput fields."""
    # TODO(synk): incremental decoding (enable_cache=1 with past_key_values)
    # and T5 relative-position bias are not implemented in this synthetic stack.
    del enable_cache, past_key_values
    B, S = input_ids.shape
    Se = encoder_hidden_states.shape[1]

    ids3 = input_ids.astype(jnp.int32)[:, :, None]             # (B, S, 1)

    def full(shape):
        return pl.BlockSpec(shape, lambda b, _n=len(shape): (0,) * _n)

    in_specs = [
        pl.BlockSpec((1, S, 1), lambda b: (b, 0, 0)),          # ids
        pl.BlockSpec((1, Se, D_MODEL), lambda b: (b, 0, 0)),   # encoder states
        full((VOCAB, D_MODEL)),                                # embed / lm head
        full((N_LAYERS, 1, D_MODEL)),                          # sa_ln
        full((N_LAYERS, D_MODEL, 3 * INNER)),                  # sa_qkv
        full((N_LAYERS, INNER, D_MODEL)),                      # sa_o
        full((N_LAYERS, 1, D_MODEL)),                          # ca_ln
        full((N_LAYERS, D_MODEL, INNER)),                      # ca_q
        full((N_LAYERS, D_MODEL, 2 * INNER)),                  # ca_kv
        full((N_LAYERS, INNER, D_MODEL)),                      # ca_o
        full((N_LAYERS, 1, D_MODEL)),                          # ff_ln
        full((N_LAYERS, D_MODEL, D_FF)),                       # ff_wi
        full((N_LAYERS, D_FF, D_MODEL)),                       # ff_wo
        full((1, D_MODEL)),                                    # final_ln
    ]
    out_specs = (
        pl.BlockSpec((1, S, VOCAB), lambda b: (b, 0, 0)),
        pl.BlockSpec((1, S, KV_W), lambda b: (b, 0, 0)),
        pl.BlockSpec((1, Se, KV_W), lambda b: (b, 0, 0)),
    )
    out_shape = (
        jax.ShapeDtypeStruct((B, S, VOCAB), jnp.float32),
        jax.ShapeDtypeStruct((B, S, KV_W), jnp.float32),
        jax.ShapeDtypeStruct((B, Se, KV_W), jnp.float32),
    )

    logits, dec_kv, enc_kv = pl.pallas_call(
        _fused_decoder_kernel,
        out_shape=out_shape,
        grid=(B,),
        in_specs=in_specs,
        out_specs=out_specs,
        compiler_params=pltpu.CompilerParams(
            dimension_semantics=("parallel",)),     # v7x: one batch per TC
    )(ids3, encoder_hidden_states,
      params["embed"], params["sa_ln"], params["sa_qkv"], params["sa_o"],
      params["ca_ln"], params["ca_q"], params["ca_kv"], params["ca_o"],
      params["ff_ln"], params["ff_wi"], params["ff_wo"], params["final_ln"])

    # Unpack lane-dense KV slabs into per-layer present states
    # (k_dec, v_dec, k_enc, v_enc), each (B, N_HEADS, seq, D_KV).
    dec_kv = dec_kv.reshape(B, S, N_LAYERS, 2, N_HEADS, D_KV)
    enc_kv = enc_kv.reshape(B, Se, N_LAYERS, 2, N_HEADS, D_KV)
    presents = []
    for l in range(N_LAYERS):
        k_dec = dec_kv[:, :, l, 0].transpose(0, 2, 1, 3)
        v_dec = dec_kv[:, :, l, 1].transpose(0, 2, 1, 3)
        k_enc = enc_kv[:, :, l, 0].transpose(0, 2, 1, 3)
        v_enc = enc_kv[:, :, l, 1].transpose(0, 2, 1, 3)
        presents.append((k_dec, v_dec, k_enc, v_enc))
    return logits, tuple(presents)


# ---------------------------------- main -------------------------------------
if __name__ == "__main__":
    key = jax.random.PRNGKey(0)
    k_par, k_ids, k_enc = jax.random.split(key, 3)

    params = init_params(k_par)
    B, S, Se = 2, 8, 8
    input_ids = jax.random.randint(k_ids, (B, S), 0, VOCAB, dtype=jnp.int32)
    encoder_hidden_states = jax.random.normal(k_enc, (B, Se, D_MODEL),
                                              dtype=jnp.float32)
    enable_cache = jnp.array([0], dtype=jnp.int32)

    fwd = jax.jit(functools.partial(t5_decoder_forward, params))
    logits, past_key_values = fwd(input_ids, encoder_hidden_states,
                                  enable_cache)
    jax.block_until_ready(logits)
    jax.block_until_ready(past_key_values)

    assert logits.shape == (B, S, VOCAB)
    assert len(past_key_values) == N_LAYERS
    assert past_key_values[0][0].shape == (B, N_HEADS, S, D_KV)
    assert bool(jnp.all(jnp.isfinite(logits)))
    print("KERNEL_OK")
</pallas_src>

<mosaic_0001>
module attributes {stable_mosaic.version = 11 : i64} {
  func.func @_fused_decoder_kernel(%arg0: i32, %arg1: memref<1x8x1xi32, #tpu.memory_space<vmem>>, %arg2: memref<1x8x32xf32, #tpu.memory_space<vmem>>, %arg3: memref<128x32xf32, #tpu.memory_space<vmem>>, %arg4: memref<2x1x32xf32, #tpu.memory_space<vmem>>, %arg5: memref<2x32x96xf32, #tpu.memory_space<vmem>>, %arg6: memref<2x32x32xf32, #tpu.memory_space<vmem>>, %arg7: memref<2x1x32xf32, #tpu.memory_space<vmem>>, %arg8: memref<2x32x32xf32, #tpu.memory_space<vmem>>, %arg9: memref<2x32x64xf32, #tpu.memory_space<vmem>>, %arg10: memref<2x32x32xf32, #tpu.memory_space<vmem>>, %arg11: memref<2x1x32xf32, #tpu.memory_space<vmem>>, %arg12: memref<2x32x64xf32, #tpu.memory_space<vmem>>, %arg13: memref<2x64x32xf32, #tpu.memory_space<vmem>>, %arg14: memref<1x32xf32, #tpu.memory_space<vmem>>, %arg15: memref<1x8x128xf32, #tpu.memory_space<vmem>>, %arg16: memref<1x8x128xf32, #tpu.memory_space<vmem>>, %arg17: memref<1x8x128xf32, #tpu.memory_space<vmem>>) attributes {dimension_semantics = [#tpu.dimension_semantics<parallel>], iteration_bounds = array<i64: 2>, scalar_prefetch = 0 : i64, scratch_operands = 0 : i64, tpu.core_type = #tpu.core_type<tc>, window_params = [{transform_indices = @transform_0, window_bounds = array<i64: 1, 8, 1>}, {transform_indices = @transform_1, window_bounds = array<i64: 1, 8, 32>}, {pipeline_mode = #tpu.pipeline_mode<synchronous>, transform_indices = @transform_2, window_bounds = array<i64: 128, 32>}, {pipeline_mode = #tpu.pipeline_mode<synchronous>, transform_indices = @transform_3, window_bounds = array<i64: 2, 1, 32>}, {pipeline_mode = #tpu.pipeline_mode<synchronous>, transform_indices = @transform_4, window_bounds = array<i64: 2, 32, 96>}, {pipeline_mode = #tpu.pipeline_mode<synchronous>, transform_indices = @transform_5, window_bounds = array<i64: 2, 32, 32>}, {pipeline_mode = #tpu.pipeline_mode<synchronous>, transform_indices = @transform_6, window_bounds = array<i64: 2, 1, 32>}, {pipeline_mode = #tpu.pipeline_mode<synchronous>, transform_indices = @transform_7, window_bounds = array<i64: 2, 32, 32>}, {pipeline_mode = #tpu.pipeline_mode<synchronous>, transform_indices = @transform_8, window_bounds = array<i64: 2, 32, 64>}, {pipeline_mode = #tpu.pipeline_mode<synchronous>, transform_indices = @transform_9, window_bounds = array<i64: 2, 32, 32>}, {pipeline_mode = #tpu.pipeline_mode<synchronous>, transform_indices = @transform_10, window_bounds = array<i64: 2, 1, 32>}, {pipeline_mode = #tpu.pipeline_mode<synchronous>, transform_indices = @transform_11, window_bounds = array<i64: 2, 32, 64>}, {pipeline_mode = #tpu.pipeline_mode<synchronous>, transform_indices = @transform_12, window_bounds = array<i64: 2, 64, 32>}, {pipeline_mode = #tpu.pipeline_mode<synchronous>, transform_indices = @transform_13, window_bounds = array<i64: 1, 32>}, {transform_indices = @transform_14, window_bounds = array<i64: 1, 8, 128>}, {transform_indices = @transform_15, window_bounds = array<i64: 1, 8, 128>}, {transform_indices = @transform_16, window_bounds = array<i64: 1, 8, 128>}]} {
    %c0 = arith.constant 0 : index
    %c0_0 = arith.constant 0 : index
    %c0_1 = arith.constant 0 : index
    %0 = vector.load %arg1[%c0, %c0_0, %c0_1] : memref<1x8x1xi32, #tpu.memory_space<vmem>>, vector<1x8x1xi32>
    %1 = vector.shape_cast %0 : vector<1x8x1xi32> to vector<8x1xi32>
    %2 = tpu.iota {dimensions = array<i32: 1>} : vector<8x128xi32>
    %3 = vector.broadcast %1 : vector<8x1xi32> to vector<8x128xi32>
    %4 = arith.cmpi eq, %2, %3 : vector<8x128xi32>
    %5 = arith.extui %4 : vector<8x128xi1> to vector<8x128xi32>
    %6 = arith.sitofp %5 : vector<8x128xi32> to vector<8x128xf32>
    %c0_2 = arith.constant 0 : index
    %c0_3 = arith.constant 0 : index
    %7 = vector.load %arg3[%c0_2, %c0_3] : memref<128x32xf32, #tpu.memory_space<vmem>>, vector<128x32xf32>
    %cst = arith.constant dense<0.000000e+00> : vector<8x32xf32>
    %8 = tpu.matmul %6, %7, %cst {dimension_numbers = #tpu.dot_dimension_numbers<[1], [0], [0], [1], [0, 0, 1, 1], [], []>} : vector<8x128xf32>, vector<128x32xf32>, vector<8x32xf32> -> vector<8x32xf32>
    %c0_4 = arith.constant 0 : index
    %c0_5 = arith.constant 0 : index
    %c0_6 = arith.constant 0 : index
    %9 = vector.load %arg2[%c0_4, %c0_5, %c0_6] : memref<1x8x32xf32, #tpu.memory_space<vmem>>, vector<1x8x32xf32>
    %10 = vector.shape_cast %9 : vector<1x8x32xf32> to vector<8x32xf32>
    %11 = tpu.iota {dimensions = array<i32: 0>} : vector<8x8xi32>
    %12 = tpu.iota {dimensions = array<i32: 1>} : vector<8x8xi32>
    %13 = arith.cmpi sle, %12, %11 : vector<8x8xi32>
    %cst_7 = arith.constant 0.000000e+00 : f32
    %cst_8 = arith.constant -1.000000e+30 : f32
    %14 = vector.broadcast %cst_7 : f32 to vector<8x8xf32>
    %15 = vector.broadcast %cst_8 : f32 to vector<8x8xf32>
    %16 = arith.select %13, %14, %15 : vector<8x8xi1>, vector<8x8xf32>
    %c0_9 = arith.constant 0 : index
    %c0_10 = arith.constant 0 : index
    %c0_11 = arith.constant 0 : index
    %17 = vector.load %arg4[%c0_9, %c0_10, %c0_11] : memref<2x1x32xf32, #tpu.memory_space<vmem>>, vector<1x1x32xf32>
    %18 = vector.shape_cast %17 : vector<1x1x32xf32> to vector<1x32xf32>
    %19 = arith.mulf %8, %8 : vector<8x32xf32>
    %cst_12 = arith.constant dense<0.000000e+00> : vector<8xf32>
    %20 = vector.multi_reduction <add>, %19, %cst_12 [1] : vector<8x32xf32> to vector<8xf32>
    %21 = vector.shape_cast %20 : vector<8xf32> to vector<8x1xf32>
    %cst_13 = arith.constant 3.200000e+01 : f32
    %22 = vector.broadcast %cst_13 : f32 to vector<8x1xf32>
    %23 = arith.divf %21, %22 : vector<8x1xf32>
    %cst_14 = arith.constant 9.99999997E-7 : f32
    %24 = vector.broadcast %cst_14 : f32 to vector<8x1xf32>
    %25 = arith.addf %23, %24 : vector<8x1xf32>
    %26 = math.rsqrt %25 : vector<8x1xf32>
    %27 = vector.broadcast %26 : vector<8x1xf32> to vector<8x32xf32>
    %28 = arith.mulf %8, %27 : vector<8x32xf32>
    %29 = vector.broadcast %18 : vector<1x32xf32> to vector<8x32xf32>
    %30 = arith.mulf %28, %29 : vector<8x32xf32>
    %c0_15 = arith.constant 0 : index
    %c0_16 = arith.constant 0 : index
    %c0_17 = arith.constant 0 : index
    %31 = vector.load %arg5[%c0_15, %c0_16, %c0_17] : memref<2x32x96xf32, #tpu.memory_space<vmem>>, vector<1x32x96xf32>
    %32 = vector.shape_cast %31 : vector<1x32x96xf32> to vector<32x96xf32>
    %cst_18 = arith.constant dense<0.000000e+00> : vector<8x96xf32>
    %33 = tpu.matmul %30, %32, %cst_18 {dimension_numbers = #tpu.dot_dimension_numbers<[1], [0], [0], [1], [0, 0, 1, 1], [], []>} : vector<8x32xf32>, vector<32x96xf32>, vector<8x96xf32> -> vector<8x96xf32>
    %34 = vector.extract_strided_slice %33 {offsets = [0, 0], sizes = [8, 32], strides = [1, 1]} : vector<8x96xf32> to vector<8x32xf32>
    %35 = vector.extract_strided_slice %33 {offsets = [0, 32], sizes = [8, 32], strides = [1, 1]} : vector<8x96xf32> to vector<8x32xf32>
    %36 = vector.extract_strided_slice %33 {offsets = [0, 64], sizes = [8, 32], strides = [1, 1]} : vector<8x96xf32> to vector<8x32xf32>
    %37 = vector.extract_strided_slice %34 {offsets = [0, 0], sizes = [8, 16], strides = [1, 1]} : vector<8x32xf32> to vector<8x16xf32>
    %38 = vector.extract_strided_slice %35 {offsets = [0, 0], sizes = [8, 16], strides = [1, 1]} : vector<8x32xf32> to vector<8x16xf32>
    %cst_19 = arith.constant dense<0.000000e+00> : vector<8x8xf32>
    %39 = tpu.matmul %37, %38, %cst_19 {dimension_numbers = #tpu.dot_dimension_numbers<[1], [1], [0], [0], [0, 0, 1, 0], [], []>} : vector<8x16xf32>, vector<8x16xf32>, vector<8x8xf32> -> vector<8x8xf32>
    %40 = arith.addf %39, %16 : vector<8x8xf32>
    %cst_20 = arith.constant dense<0xFF800000> : vector<8xf32>
    %41 = vector.multi_reduction <maximumf>, %40, %cst_20 [1] : vector<8x8xf32> to vector<8xf32>
    %42 = vector.shape_cast %41 : vector<8xf32> to vector<8x1xf32>
    %43 = vector.broadcast %42 : vector<8x1xf32> to vector<8x8xf32>
    %44 = arith.subf %40, %43 : vector<8x8xf32>
    %45 = math.exp %44 : vector<8x8xf32>
    %cst_21 = arith.constant dense<0.000000e+00> : vector<8xf32>
    %46 = vector.multi_reduction <add>, %45, %cst_21 [1] : vector<8x8xf32> to vector<8xf32>
    %47 = vector.shape_cast %46 : vector<8xf32> to vector<8x1xf32>
    %48 = tpu.reciprocal %47 {approx = true} : vector<8x1xf32> -> vector<8x1xf32>
    %49 = vector.broadcast %48 : vector<8x1xf32> to vector<8x8xf32>
    %50 = arith.mulf %45, %49 : vector<8x8xf32>
    %51 = vector.extract_strided_slice %36 {offsets = [0, 0], sizes = [8, 16], strides = [1, 1]} : vector<8x32xf32> to vector<8x16xf32>
    %cst_22 = arith.constant dense<0.000000e+00> : vector<8x16xf32>
    %52 = tpu.matmul %50, %51, %cst_22 {dimension_numbers = #tpu.dot_dimension_numbers<[1], [0], [0], [1], [0, 0, 1, 1], [], []>} : vector<8x8xf32>, vector<8x16xf32>, vector<8x16xf32> -> vector<8x16xf32>
    %53 = vector.extract_strided_slice %34 {offsets = [0, 16], sizes = [8, 16], strides = [1, 1]} : vector<8x32xf32> to vector<8x16xf32>
    %54 = vector.extract_strided_slice %35 {offsets = [0, 16], sizes = [8, 16], strides = [1, 1]} : vector<8x32xf32> to vector<8x16xf32>
    %cst_23 = arith.constant dense<0.000000e+00> : vector<8x8xf32>
    %55 = tpu.matmul %53, %54, %cst_23 {dimension_numbers = #tpu.dot_dimension_numbers<[1], [1], [0], [0], [0, 0, 1, 0], [], []>} : vector<8x16xf32>, vector<8x16xf32>, vector<8x8xf32> -> vector<8x8xf32>
    %56 = arith.addf %55, %16 : vector<8x8xf32>
    %cst_24 = arith.constant dense<0xFF800000> : vector<8xf32>
    %57 = vector.multi_reduction <maximumf>, %56, %cst_24 [1] : vector<8x8xf32> to vector<8xf32>
    %58 = vector.shape_cast %57 : vector<8xf32> to vector<8x1xf32>
    %59 = vector.broadcast %58 : vector<8x1xf32> to vector<8x8xf32>
    %60 = arith.subf %56, %59 : vector<8x8xf32>
    %61 = math.exp %60 : vector<8x8xf32>
    %cst_25 = arith.constant dense<0.000000e+00> : vector<8xf32>
    %62 = vector.multi_reduction <add>, %61, %cst_25 [1] : vector<8x8xf32> to vector<8xf32>
    %63 = vector.shape_cast %62 : vector<8xf32> to vector<8x1xf32>
    %64 = tpu.reciprocal %63 {approx = true} : vector<8x1xf32> -> vector<8x1xf32>
    %65 = vector.broadcast %64 : vector<8x1xf32> to vector<8x8xf32>
    %66 = arith.mulf %61, %65 : vector<8x8xf32>
    %67 = vector.extract_strided_slice %36 {offsets = [0, 16], sizes = [8, 16], strides = [1, 1]} : vector<8x32xf32> to vector<8x16xf32>
    %cst_26 = arith.constant dense<0.000000e+00> : vector<8x16xf32>
    %68 = tpu.matmul %66, %67, %cst_26 {dimension_numbers = #tpu.dot_dimension_numbers<[1], [0], [0], [1], [0, 0, 1, 1], [], []>} : vector<8x8xf32>, vector<8x16xf32>, vector<8x16xf32> -> vector<8x16xf32>
    %69 = tpu.concatenate %52, %68 in 1 : vector<8x16xf32>, vector<8x16xf32> -> vector<8x32xf32>
    %c0_27 = arith.constant 0 : index
    %c0_28 = arith.constant 0 : index
    %c0_29 = arith.constant 0 : index
    %70 = vector.load %arg6[%c0_27, %c0_28, %c0_29] : memref<2x32x32xf32, #tpu.memory_space<vmem>>, vector<1x32x32xf32>
    %71 = vector.shape_cast %70 : vector<1x32x32xf32> to vector<32x32xf32>
    %cst_30 = arith.constant dense<0.000000e+00> : vector<8x32xf32>
    %72 = tpu.matmul %69, %71, %cst_30 {dimension_numbers = #tpu.dot_dimension_numbers<[1], [0], [0], [1], [0, 0, 1, 1], [], []>} : vector<8x32xf32>, vector<32x32xf32>, vector<8x32xf32> -> vector<8x32xf32>
    %73 = arith.addf %8, %72 : vector<8x32xf32>
    %74 = tpu.concatenate %35, %36 in 1 : vector<8x32xf32>, vector<8x32xf32> -> vector<8x64xf32>
    %c0_31 = arith.constant 0 : index
    %c0_32 = arith.constant 0 : index
    %c0_33 = arith.constant 0 : index
    %75 = vector.load %arg7[%c0_31, %c0_32, %c0_33] : memref<2x1x32xf32, #tpu.memory_space<vmem>>, vector<1x1x32xf32>
    %76 = vector.shape_cast %75 : vector<1x1x32xf32> to vector<1x32xf32>
    %77 = arith.mulf %73, %73 : vector<8x32xf32>
    %cst_34 = arith.constant dense<0.000000e+00> : vector<8xf32>
    %78 = vector.multi_reduction <add>, %77, %cst_34 [1] : vector<8x32xf32> to vector<8xf32>
    %79 = vector.shape_cast %78 : vector<8xf32> to vector<8x1xf32>
    %cst_35 = arith.constant 3.200000e+01 : f32
    %80 = vector.broadcast %cst_35 : f32 to vector<8x1xf32>
    %81 = arith.divf %79, %80 : vector<8x1xf32>
    %cst_36 = arith.constant 9.99999997E-7 : f32
    %82 = vector.broadcast %cst_36 : f32 to vector<8x1xf32>
    %83 = arith.addf %81, %82 : vector<8x1xf32>
    %84 = math.rsqrt %83 : vector<8x1xf32>
    %85 = vector.broadcast %84 : vector<8x1xf32> to vector<8x32xf32>
    %86 = arith.mulf %73, %85 : vector<8x32xf32>
    %87 = vector.broadcast %76 : vector<1x32xf32> to vector<8x32xf32>
    %88 = arith.mulf %86, %87 : vector<8x32xf32>
    %c0_37 = arith.constant 0 : index
    %c0_38 = arith.constant 0 : index
    %c0_39 = arith.constant 0 : index
    %89 = vector.load %arg8[%c0_37, %c0_38, %c0_39] : memref<2x32x32xf32, #tpu.memory_space<vmem>>, vector<1x32x32xf32>
    %90 = vector.shape_cast %89 : vector<1x32x32xf32> to vector<32x32xf32>
    %cst_40 = arith.constant dense<0.000000e+00> : vector<8x32xf32>
    %91 = tpu.matmul %88, %90, %cst_40 {dimension_numbers = #tpu.dot_dimension_numbers<[1], [0], [0], [1], [0, 0, 1, 1], [], []>} : vector<8x32xf32>, vector<32x32xf32>, vector<8x32xf32> -> vector<8x32xf32>
    %c0_41 = arith.constant 0 : index
    %c0_42 = arith.constant 0 : index
    %c0_43 = arith.constant 0 : index
    %92 = vector.load %arg9[%c0_41, %c0_42, %c0_43] : memref<2x32x64xf32, #tpu.memory_space<vmem>>, vector<1x32x64xf32>
    %93 = vector.shape_cast %92 : vector<1x32x64xf32> to vector<32x64xf32>
    %cst_44 = arith.constant dense<0.000000e+00> : vector<8x64xf32>
    %94 = tpu.matmul %10, %93, %cst_44 {dimension_numbers = #tpu.dot_dimension_numbers<[1], [0], [0], [1], [0, 0, 1, 1], [], []>} : vector<8x32xf32>, vector<32x64xf32>, vector<8x64xf32> -> vector<8x64xf32>
    %95 = vector.extract_strided_slice %94 {offsets = [0, 0], sizes = [8, 32], strides = [1, 1]} : vector<8x64xf32> to vector<8x32xf32>
    %96 = vector.extract_strided_slice %94 {offsets = [0, 32], sizes = [8, 32], strides = [1, 1]} : vector<8x64xf32> to vector<8x32xf32>
    %97 = vector.extract_strided_slice %91 {offsets = [0, 0], sizes = [8, 16], strides = [1, 1]} : vector<8x32xf32> to vector<8x16xf32>
    %98 = vector.extract_strided_slice %95 {offsets = [0, 0], sizes = [8, 16], strides = [1, 1]} : vector<8x32xf32> to vector<8x16xf32>
    %cst_45 = arith.constant dense<0.000000e+00> : vector<8x8xf32>
    %99 = tpu.matmul %97, %98, %cst_45 {dimension_numbers = #tpu.dot_dimension_numbers<[1], [1], [0], [0], [0, 0, 1, 0], [], []>} : vector<8x16xf32>, vector<8x16xf32>, vector<8x8xf32> -> vector<8x8xf32>
    %cst_46 = arith.constant dense<0xFF800000> : vector<8xf32>
    %100 = vector.multi_reduction <maximumf>, %99, %cst_46 [1] : vector<8x8xf32> to vector<8xf32>
    %101 = vector.shape_cast %100 : vector<8xf32> to vector<8x1xf32>
    %102 = vector.broadcast %101 : vector<8x1xf32> to vector<8x8xf32>
    %103 = arith.subf %99, %102 : vector<8x8xf32>
    %104 = math.exp %103 : vector<8x8xf32>
    %cst_47 = arith.constant dense<0.000000e+00> : vector<8xf32>
    %105 = vector.multi_reduction <add>, %104, %cst_47 [1] : vector<8x8xf32> to vector<8xf32>
    %106 = vector.shape_cast %105 : vector<8xf32> to vector<8x1xf32>
    %107 = tpu.reciprocal %106 {approx = true} : vector<8x1xf32> -> vector<8x1xf32>
    %108 = vector.broadcast %107 : vector<8x1xf32> to vector<8x8xf32>
    %109 = arith.mulf %104, %108 : vector<8x8xf32>
    %110 = vector.extract_strided_slice %96 {offsets = [0, 0], sizes = [8, 16], strides = [1, 1]} : vector<8x32xf32> to vector<8x16xf32>
    %cst_48 = arith.constant dense<0.000000e+00> : vector<8x16xf32>
    %111 = tpu.matmul %109, %110, %cst_48 {dimension_numbers = #tpu.dot_dimension_numbers<[1], [0], [0], [1], [0, 0, 1, 1], [], []>} : vector<8x8xf32>, vector<8x16xf32>, vector<8x16xf32> -> vector<8x16xf32>
    %112 = vector.extract_strided_slice %91 {offsets = [0, 16], sizes = [8, 16], strides = [1, 1]} : vector<8x32xf32> to vector<8x16xf32>
    %113 = vector.extract_strided_slice %95 {offsets = [0, 16], sizes = [8, 16], strides = [1, 1]} : vector<8x32xf32> to vector<8x16xf32>
    %cst_49 = arith.constant dense<0.000000e+00> : vector<8x8xf32>
    %114 = tpu.matmul %112, %113, %cst_49 {dimension_numbers = #tpu.dot_dimension_numbers<[1], [1], [0], [0], [0, 0, 1, 0], [], []>} : vector<8x16xf32>, vector<8x16xf32>, vector<8x8xf32> -> vector<8x8xf32>
    %cst_50 = arith.constant dense<0xFF800000> : vector<8xf32>
    %115 = vector.multi_reduction <maximumf>, %114, %cst_50 [1] : vector<8x8xf32> to vector<8xf32>
    %116 = vector.shape_cast %115 : vector<8xf32> to vector<8x1xf32>
    %117 = vector.broadcast %116 : vector<8x1xf32> to vector<8x8xf32>
    %118 = arith.subf %114, %117 : vector<8x8xf32>
    %119 = math.exp %118 : vector<8x8xf32>
    %cst_51 = arith.constant dense<0.000000e+00> : vector<8xf32>
    %120 = vector.multi_reduction <add>, %119, %cst_51 [1] : vector<8x8xf32> to vector<8xf32>
    %121 = vector.shape_cast %120 : vector<8xf32> to vector<8x1xf32>
    %122 = tpu.reciprocal %121 {approx = true} : vector<8x1xf32> -> vector<8x1xf32>
    %123 = vector.broadcast %122 : vector<8x1xf32> to vector<8x8xf32>
    %124 = arith.mulf %119, %123 : vector<8x8xf32>
    %125 = vector.extract_strided_slice %96 {offsets = [0, 16], sizes = [8, 16], strides = [1, 1]} : vector<8x32xf32> to vector<8x16xf32>
    %cst_52 = arith.constant dense<0.000000e+00> : vector<8x16xf32>
    %126 = tpu.matmul %124, %125, %cst_52 {dimension_numbers = #tpu.dot_dimension_numbers<[1], [0], [0], [1], [0, 0, 1, 1], [], []>} : vector<8x8xf32>, vector<8x16xf32>, vector<8x16xf32> -> vector<8x16xf32>
    %127 = tpu.concatenate %111, %126 in 1 : vector<8x16xf32>, vector<8x16xf32> -> vector<8x32xf32>
    %c0_53 = arith.constant 0 : index
    %c0_54 = arith.constant 0 : index
    %c0_55 = arith.constant 0 : index
    %128 = vector.load %arg10[%c0_53, %c0_54, %c0_55] : memref<2x32x32xf32, #tpu.memory_space<vmem>>, vector<1x32x32xf32>
    %129 = vector.shape_cast %128 : vector<1x32x32xf32> to vector<32x32xf32>
    %cst_56 = arith.constant dense<0.000000e+00> : vector<8x32xf32>
    %130 = tpu.matmul %127, %129, %cst_56 {dimension_numbers = #tpu.dot_dimension_numbers<[1], [0], [0], [1], [0, 0, 1, 1], [], []>} : vector<8x32xf32>, vector<32x32xf32>, vector<8x32xf32> -> vector<8x32xf32>
    %131 = arith.addf %73, %130 : vector<8x32xf32>
    %c0_57 = arith.constant 0 : index
    %c0_58 = arith.constant 0 : index
    %c0_59 = arith.constant 0 : index
    %132 = vector.load %arg11[%c0_57, %c0_58, %c0_59] : memref<2x1x32xf32, #tpu.memory_space<vmem>>, vector<1x1x32xf32>
    %133 = vector.shape_cast %132 : vector<1x1x32xf32> to vector<1x32xf32>
    %134 = arith.mulf %131, %131 : vector<8x32xf32>
    %cst_60 = arith.constant dense<0.000000e+00> : vector<8xf32>
    %135 = vector.multi_reduction <add>, %134, %cst_60 [1] : vector<8x32xf32> to vector<8xf32>
    %136 = vector.shape_cast %135 : vector<8xf32> to vector<8x1xf32>
    %cst_61 = arith.constant 3.200000e+01 : f32
    %137 = vector.broadcast %cst_61 : f32 to vector<8x1xf32>
    %138 = arith.divf %136, %137 : vector<8x1xf32>
    %cst_62 = arith.constant 9.99999997E-7 : f32
    %139 = vector.broadcast %cst_62 : f32 to vector<8x1xf32>
    %140 = arith.addf %138, %139 : vector<8x1xf32>
    %141 = math.rsqrt %140 : vector<8x1xf32>
    %142 = vector.broadcast %141 : vector<8x1xf32> to vector<8x32xf32>
    %143 = arith.mulf %131, %142 : vector<8x32xf32>
    %144 = vector.broadcast %133 : vector<1x32xf32> to vector<8x32xf32>
    %145 = arith.mulf %143, %144 : vector<8x32xf32>
    %c0_63 = arith.constant 0 : index
    %c0_64 = arith.constant 0 : index
    %c0_65 = arith.constant 0 : index
    %146 = vector.load %arg12[%c0_63, %c0_64, %c0_65] : memref<2x32x64xf32, #tpu.memory_space<vmem>>, vector<1x32x64xf32>
    %147 = vector.shape_cast %146 : vector<1x32x64xf32> to vector<32x64xf32>
    %cst_66 = arith.constant dense<0.000000e+00> : vector<8x64xf32>
    %148 = tpu.matmul %145, %147, %cst_66 {dimension_numbers = #tpu.dot_dimension_numbers<[1], [0], [0], [1], [0, 0, 1, 1], [], []>} : vector<8x32xf32>, vector<32x64xf32>, vector<8x64xf32> -> vector<8x64xf32>
    %cst_67 = arith.constant 0.000000e+00 : f32
    %149 = vector.broadcast %cst_67 : f32 to vector<8x64xf32>
    %150 = arith.maximumf %148, %149 : vector<8x64xf32>
    %c0_68 = arith.constant 0 : index
    %c0_69 = arith.constant 0 : index
    %c0_70 = arith.constant 0 : index
    %151 = vector.load %arg13[%c0_68, %c0_69, %c0_70] : memref<2x64x32xf32, #tpu.memory_space<vmem>>, vector<1x64x32xf32>
    %152 = vector.shape_cast %151 : vector<1x64x32xf32> to vector<64x32xf32>
    %cst_71 = arith.constant dense<0.000000e+00> : vector<8x32xf32>
    %153 = tpu.matmul %150, %152, %cst_71 {dimension_numbers = #tpu.dot_dimension_numbers<[1], [0], [0], [1], [0, 0, 1, 1], [], []>} : vector<8x64xf32>, vector<64x32xf32>, vector<8x32xf32> -> vector<8x32xf32>
    %154 = arith.addf %131, %153 : vector<8x32xf32>
    %c1 = arith.constant 1 : index
    %c0_72 = arith.constant 0 : index
    %c0_73 = arith.constant 0 : index
    %155 = vector.load %arg4[%c1, %c0_72, %c0_73] : memref<2x1x32xf32, #tpu.memory_space<vmem>>, vector<1x1x32xf32>
    %156 = vector.shape_cast %155 : vector<1x1x32xf32> to vector<1x32xf32>
    %157 = arith.mulf %154, %154 : vector<8x32xf32>
    %cst_74 = arith.constant dense<0.000000e+00> : vector<8xf32>
    %158 = vector.multi_reduction <add>, %157, %cst_74 [1] : vector<8x32xf32> to vector<8xf32>
    %159 = vector.shape_cast %158 : vector<8xf32> to vector<8x1xf32>
    %cst_75 = arith.constant 3.200000e+01 : f32
    %160 = vector.broadcast %cst_75 : f32 to vector<8x1xf32>
    %161 = arith.divf %159, %160 : vector<8x1xf32>
    %cst_76 = arith.constant 9.99999997E-7 : f32
    %162 = vector.broadcast %cst_76 : f32 to vector<8x1xf32>
    %163 = arith.addf %161, %162 : vector<8x1xf32>
    %164 = math.rsqrt %163 : vector<8x1xf32>
    %165 = vector.broadcast %164 : vector<8x1xf32> to vector<8x32xf32>
    %166 = arith.mulf %154, %165 : vector<8x32xf32>
    %167 = vector.broadcast %156 : vector<1x32xf32> to vector<8x32xf32>
    %168 = arith.mulf %166, %167 : vector<8x32xf32>
    %c1_77 = arith.constant 1 : index
    %c0_78 = arith.constant 0 : index
    %c0_79 = arith.constant 0 : index
    %169 = vector.load %arg5[%c1_77, %c0_78, %c0_79] : memref<2x32x96xf32, #tpu.memory_space<vmem>>, vector<1x32x96xf32>
    %170 = vector.shape_cast %169 : vector<1x32x96xf32> to vector<32x96xf32>
    %cst_80 = arith.constant dense<0.000000e+00> : vector<8x96xf32>
    %171 = tpu.matmul %168, %170, %cst_80 {dimension_numbers = #tpu.dot_dimension_numbers<[1], [0], [0], [1], [0, 0, 1, 1], [], []>} : vector<8x32xf32>, vector<32x96xf32>, vector<8x96xf32> -> vector<8x96xf32>
    %172 = vector.extract_strided_slice %171 {offsets = [0, 0], sizes = [8, 32], strides = [1, 1]} : vector<8x96xf32> to vector<8x32xf32>
    %173 = vector.extract_strided_slice %171 {offsets = [0, 32], sizes = [8, 32], strides = [1, 1]} : vector<8x96xf32> to vector<8x32xf32>
    %174 = vector.extract_strided_slice %171 {offsets = [0, 64], sizes = [8, 32], strides = [1, 1]} : vector<8x96xf32> to vector<8x32xf32>
    %175 = vector.extract_strided_slice %172 {offsets = [0, 0], sizes = [8, 16], strides = [1, 1]} : vector<8x32xf32> to vector<8x16xf32>
    %176 = vector.extract_strided_slice %173 {offsets = [0, 0], sizes = [8, 16], strides = [1, 1]} : vector<8x32xf32> to vector<8x16xf32>
    %cst_81 = arith.constant dense<0.000000e+00> : vector<8x8xf32>
    %177 = tpu.matmul %175, %176, %cst_81 {dimension_numbers = #tpu.dot_dimension_numbers<[1], [1], [0], [0], [0, 0, 1, 0], [], []>} : vector<8x16xf32>, vector<8x16xf32>, vector<8x8xf32> -> vector<8x8xf32>
    %178 = arith.addf %177, %16 : vector<8x8xf32>
    %cst_82 = arith.constant dense<0xFF800000> : vector<8xf32>
    %179 = vector.multi_reduction <maximumf>, %178, %cst_82 [1] : vector<8x8xf32> to vector<8xf32>
    %180 = vector.shape_cast %179 : vector<8xf32> to vector<8x1xf32>
    %181 = vector.broadcast %180 : vector<8x1xf32> to vector<8x8xf32>
    %182 = arith.subf %178, %181 : vector<8x8xf32>
    %183 = math.exp %182 : vector<8x8xf32>
    %cst_83 = arith.constant dense<0.000000e+00> : vector<8xf32>
    %184 = vector.multi_reduction <add>, %183, %cst_83 [1] : vector<8x8xf32> to vector<8xf32>
    %185 = vector.shape_cast %184 : vector<8xf32> to vector<8x1xf32>
    %186 = tpu.reciprocal %185 {approx = true} : vector<8x1xf32> -> vector<8x1xf32>
    %187 = vector.broadcast %186 : vector<8x1xf32> to vector<8x8xf32>
    %188 = arith.mulf %183, %187 : vector<8x8xf32>
    %189 = vector.extract_strided_slice %174 {offsets = [0, 0], sizes = [8, 16], strides = [1, 1]} : vector<8x32xf32> to vector<8x16xf32>
    %cst_84 = arith.constant dense<0.000000e+00> : vector<8x16xf32>
    %190 = tpu.matmul %188, %189, %cst_84 {dimension_numbers = #tpu.dot_dimension_numbers<[1], [0], [0], [1], [0, 0, 1, 1], [], []>} : vector<8x8xf32>, vector<8x16xf32>, vector<8x16xf32> -> vector<8x16xf32>
    %191 = vector.extract_strided_slice %172 {offsets = [0, 16], sizes = [8, 16], strides = [1, 1]} : vector<8x32xf32> to vector<8x16xf32>
    %192 = vector.extract_strided_slice %173 {offsets = [0, 16], sizes = [8, 16], strides = [1, 1]} : vector<8x32xf32> to vector<8x16xf32>
    %cst_85 = arith.constant dense<0.000000e+00> : vector<8x8xf32>
    %193 = tpu.matmul %191, %192, %cst_85 {dimension_numbers = #tpu.dot_dimension_numbers<[1], [1], [0], [0], [0, 0, 1, 0], [], []>} : vector<8x16xf32>, vector<8x16xf32>, vector<8x8xf32> -> vector<8x8xf32>
    %194 = arith.addf %193, %16 : vector<8x8xf32>
    %cst_86 = arith.constant dense<0xFF800000> : vector<8xf32>
    %195 = vector.multi_reduction <maximumf>, %194, %cst_86 [1] : vector<8x8xf32> to vector<8xf32>
    %196 = vector.shape_cast %195 : vector<8xf32> to vector<8x1xf32>
    %197 = vector.broadcast %196 : vector<8x1xf32> to vector<8x8xf32>
    %198 = arith.subf %194, %197 : vector<8x8xf32>
    %199 = math.exp %198 : vector<8x8xf32>
    %cst_87 = arith.constant dense<0.000000e+00> : vector<8xf32>
    %200 = vector.multi_reduction <add>, %199, %cst_87 [1] : vector<8x8xf32> to vector<8xf32>
    %201 = vector.shape_cast %200 : vector<8xf32> to vector<8x1xf32>
    %202 = tpu.reciprocal %201 {approx = true} : vector<8x1xf32> -> vector<8x1xf32>
    %203 = vector.broadcast %202 : vector<8x1xf32> to vector<8x8xf32>
    %204 = arith.mulf %199, %203 : vector<8x8xf32>
    %205 = vector.extract_strided_slice %174 {offsets = [0, 16], sizes = [8, 16], strides = [1, 1]} : vector<8x32xf32> to vector<8x16xf32>
    %cst_88 = arith.constant dense<0.000000e+00> : vector<8x16xf32>
    %206 = tpu.matmul %204, %205, %cst_88 {dimension_numbers = #tpu.dot_dimension_numbers<[1], [0], [0], [1], [0, 0, 1, 1], [], []>} : vector<8x8xf32>, vector<8x16xf32>, vector<8x16xf32> -> vector<8x16xf32>
    %207 = tpu.concatenate %190, %206 in 1 : vector<8x16xf32>, vector<8x16xf32> -> vector<8x32xf32>
    %c1_89 = arith.constant 1 : index
    %c0_90 = arith.constant 0 : index
    %c0_91 = arith.constant 0 : index
    %208 = vector.load %arg6[%c1_89, %c0_90, %c0_91] : memref<2x32x32xf32, #tpu.memory_space<vmem>>, vector<1x32x32xf32>
    %209 = vector.shape_cast %208 : vector<1x32x32xf32> to vector<32x32xf32>
    %cst_92 = arith.constant dense<0.000000e+00> : vector<8x32xf32>
    %210 = tpu.matmul %207, %209, %cst_92 {dimension_numbers = #tpu.dot_dimension_numbers<[1], [0], [0], [1], [0, 0, 1, 1], [], []>} : vector<8x32xf32>, vector<32x32xf32>, vector<8x32xf32> -> vector<8x32xf32>
    %211 = arith.addf %154, %210 : vector<8x32xf32>
    %212 = tpu.concatenate %173, %174 in 1 : vector<8x32xf32>, vector<8x32xf32> -> vector<8x64xf32>
    %c1_93 = arith.constant 1 : index
    %c0_94 = arith.constant 0 : index
    %c0_95 = arith.constant 0 : index
    %213 = vector.load %arg7[%c1_93, %c0_94, %c0_95] : memref<2x1x32xf32, #tpu.memory_space<vmem>>, vector<1x1x32xf32>
    %214 = vector.shape_cast %213 : vector<1x1x32xf32> to vector<1x32xf32>
    %215 = arith.mulf %211, %211 : vector<8x32xf32>
    %cst_96 = arith.constant dense<0.000000e+00> : vector<8xf32>
    %216 = vector.multi_reduction <add>, %215, %cst_96 [1] : vector<8x32xf32> to vector<8xf32>
    %217 = vector.shape_cast %216 : vector<8xf32> to vector<8x1xf32>
    %cst_97 = arith.constant 3.200000e+01 : f32
    %218 = vector.broadcast %cst_97 : f32 to vector<8x1xf32>
    %219 = arith.divf %217, %218 : vector<8x1xf32>
    %cst_98 = arith.constant 9.99999997E-7 : f32
    %220 = vector.broadcast %cst_98 : f32 to vector<8x1xf32>
    %221 = arith.addf %219, %220 : vector<8x1xf32>
    %222 = math.rsqrt %221 : vector<8x1xf32>
    %223 = vector.broadcast %222 : vector<8x1xf32> to vector<8x32xf32>
    %224 = arith.mulf %211, %223 : vector<8x32xf32>
    %225 = vector.broadcast %214 : vector<1x32xf32> to vector<8x32xf32>
    %226 = arith.mulf %224, %225 : vector<8x32xf32>
    %c1_99 = arith.constant 1 : index
    %c0_100 = arith.constant 0 : index
    %c0_101 = arith.constant 0 : index
    %227 = vector.load %arg8[%c1_99, %c0_100, %c0_101] : memref<2x32x32xf32, #tpu.memory_space<vmem>>, vector<1x32x32xf32>
    %228 = vector.shape_cast %227 : vector<1x32x32xf32> to vector<32x32xf32>
    %cst_102 = arith.constant dense<0.000000e+00> : vector<8x32xf32>
    %229 = tpu.matmul %226, %228, %cst_102 {dimension_numbers = #tpu.dot_dimension_numbers<[1], [0], [0], [1], [0, 0, 1, 1], [], []>} : vector<8x32xf32>, vector<32x32xf32>, vector<8x32xf32> -> vector<8x32xf32>
    %c1_103 = arith.constant 1 : index
    %c0_104 = arith.constant 0 : index
    %c0_105 = arith.constant 0 : index
    %230 = vector.load %arg9[%c1_103, %c0_104, %c0_105] : memref<2x32x64xf32, #tpu.memory_space<vmem>>, vector<1x32x64xf32>
    %231 = vector.shape_cast %230 : vector<1x32x64xf32> to vector<32x64xf32>
    %cst_106 = arith.constant dense<0.000000e+00> : vector<8x64xf32>
    %232 = tpu.matmul %10, %231, %cst_106 {dimension_numbers = #tpu.dot_dimension_numbers<[1], [0], [0], [1], [0, 0, 1, 1], [], []>} : vector<8x32xf32>, vector<32x64xf32>, vector<8x64xf32> -> vector<8x64xf32>
    %233 = vector.extract_strided_slice %232 {offsets = [0, 0], sizes = [8, 32], strides = [1, 1]} : vector<8x64xf32> to vector<8x32xf32>
    %234 = vector.extract_strided_slice %232 {offsets = [0, 32], sizes = [8, 32], strides = [1, 1]} : vector<8x64xf32> to vector<8x32xf32>
    %235 = vector.extract_strided_slice %229 {offsets = [0, 0], sizes = [8, 16], strides = [1, 1]} : vector<8x32xf32> to vector<8x16xf32>
    %236 = vector.extract_strided_slice %233 {offsets = [0, 0], sizes = [8, 16], strides = [1, 1]} : vector<8x32xf32> to vector<8x16xf32>
    %cst_107 = arith.constant dense<0.000000e+00> : vector<8x8xf32>
    %237 = tpu.matmul %235, %236, %cst_107 {dimension_numbers = #tpu.dot_dimension_numbers<[1], [1], [0], [0], [0, 0, 1, 0], [], []>} : vector<8x16xf32>, vector<8x16xf32>, vector<8x8xf32> -> vector<8x8xf32>
    %cst_108 = arith.constant dense<0xFF800000> : vector<8xf32>
    %238 = vector.multi_reduction <maximumf>, %237, %cst_108 [1] : vector<8x8xf32> to vector<8xf32>
    %239 = vector.shape_cast %238 : vector<8xf32> to vector<8x1xf32>
    %240 = vector.broadcast %239 : vector<8x1xf32> to vector<8x8xf32>
    %241 = arith.subf %237, %240 : vector<8x8xf32>
    %242 = math.exp %241 : vector<8x8xf32>
    %cst_109 = arith.constant dense<0.000000e+00> : vector<8xf32>
    %243 = vector.multi_reduction <add>, %242, %cst_109 [1] : vector<8x8xf32> to vector<8xf32>
    %244 = vector.shape_cast %243 : vector<8xf32> to vector<8x1xf32>
    %245 = tpu.reciprocal %244 {approx = true} : vector<8x1xf32> -> vector<8x1xf32>
    %246 = vector.broadcast %245 : vector<8x1xf32> to vector<8x8xf32>
    %247 = arith.mulf %242, %246 : vector<8x8xf32>
    %248 = vector.extract_strided_slice %234 {offsets = [0, 0], sizes = [8, 16], strides = [1, 1]} : vector<8x32xf32> to vector<8x16xf32>
    %cst_110 = arith.constant dense<0.000000e+00> : vector<8x16xf32>
    %249 = tpu.matmul %247, %248, %cst_110 {dimension_numbers = #tpu.dot_dimension_numbers<[1], [0], [0], [1], [0, 0, 1, 1], [], []>} : vector<8x8xf32>, vector<8x16xf32>, vector<8x16xf32> -> vector<8x16xf32>
    %250 = vector.extract_strided_slice %229 {offsets = [0, 16], sizes = [8, 16], strides = [1, 1]} : vector<8x32xf32> to vector<8x16xf32>
    %251 = vector.extract_strided_slice %233 {offsets = [0, 16], sizes = [8, 16], strides = [1, 1]} : vector<8x32xf32> to vector<8x16xf32>
    %cst_111 = arith.constant dense<0.000000e+00> : vector<8x8xf32>
    %252 = tpu.matmul %250, %251, %cst_111 {dimension_numbers = #tpu.dot_dimension_numbers<[1], [1], [0], [0], [0, 0, 1, 0], [], []>} : vector<8x16xf32>, vector<8x16xf32>, vector<8x8xf32> -> vector<8x8xf32>
    %cst_112 = arith.constant dense<0xFF800000> : vector<8xf32>
    %253 = vector.multi_reduction <maximumf>, %252, %cst_112 [1] : vector<8x8xf32> to vector<8xf32>
    %254 = vector.shape_cast %253 : vector<8xf32> to vector<8x1xf32>
    %255 = vector.broadcast %254 : vector<8x1xf32> to vector<8x8xf32>
    %256 = arith.subf %252, %255 : vector<8x8xf32>
    %257 = math.exp %256 : vector<8x8xf32>
    %cst_113 = arith.constant dense<0.000000e+00> : vector<8xf32>
    %258 = vector.multi_reduction <add>, %257, %cst_113 [1] : vector<8x8xf32> to vector<8xf32>
    %259 = vector.shape_cast %258 : vector<8xf32> to vector<8x1xf32>
    %260 = tpu.reciprocal %259 {approx = true} : vector<8x1xf32> -> vector<8x1xf32>
    %261 = vector.broadcast %260 : vector<8x1xf32> to vector<8x8xf32>
    %262 = arith.mulf %257, %261 : vector<8x8xf32>
    %263 = vector.extract_strided_slice %234 {offsets = [0, 16], sizes = [8, 16], strides = [1, 1]} : vector<8x32xf32> to vector<8x16xf32>
    %cst_114 = arith.constant dense<0.000000e+00> : vector<8x16xf32>
    %264 = tpu.matmul %262, %263, %cst_114 {dimension_numbers = #tpu.dot_dimension_numbers<[1], [0], [0], [1], [0, 0, 1, 1], [], []>} : vector<8x8xf32>, vector<8x16xf32>, vector<8x16xf32> -> vector<8x16xf32>
    %265 = tpu.concatenate %249, %264 in 1 : vector<8x16xf32>, vector<8x16xf32> -> vector<8x32xf32>
    %c1_115 = arith.constant 1 : index
    %c0_116 = arith.constant 0 : index
    %c0_117 = arith.constant 0 : index
    %266 = vector.load %arg10[%c1_115, %c0_116, %c0_117] : memref<2x32x32xf32, #tpu.memory_space<vmem>>, vector<1x32x32xf32>
    %267 = vector.shape_cast %266 : vector<1x32x32xf32> to vector<32x32xf32>
    %cst_118 = arith.constant dense<0.000000e+00> : vector<8x32xf32>
    %268 = tpu.matmul %265, %267, %cst_118 {dimension_numbers = #tpu.dot_dimension_numbers<[1], [0], [0], [1], [0, 0, 1, 1], [], []>} : vector<8x32xf32>, vector<32x32xf32>, vector<8x32xf32> -> vector<8x32xf32>
    %269 = arith.addf %211, %268 : vector<8x32xf32>
    %c1_119 = arith.constant 1 : index
    %c0_120 = arith.constant 0 : index
    %c0_121 = arith.constant 0 : index
    %270 = vector.load %arg11[%c1_119, %c0_120, %c0_121] : memref<2x1x32xf32, #tpu.memory_space<vmem>>, vector<1x1x32xf32>
    %271 = vector.shape_cast %270 : vector<1x1x32xf32> to vector<1x32xf32>
    %272 = arith.mulf %269, %269 : vector<8x32xf32>
    %cst_122 = arith.constant dense<0.000000e+00> : vector<8xf32>
    %273 = vector.multi_reduction <add>, %272, %cst_122 [1] : vector<8x32xf32> to vector<8xf32>
    %274 = vector.shape_cast %273 : vector<8xf32> to vector<8x1xf32>
    %cst_123 = arith.constant 3.200000e+01 : f32
    %275 = vector.broadcast %cst_123 : f32 to vector<8x1xf32>
    %276 = arith.divf %274, %275 : vector<8x1xf32>
    %cst_124 = arith.constant 9.99999997E-7 : f32
    %277 = vector.broadcast %cst_124 : f32 to vector<8x1xf32>
    %278 = arith.addf %276, %277 : vector<8x1xf32>
    %279 = math.rsqrt %278 : vector<8x1xf32>
    %280 = vector.broadcast %279 : vector<8x1xf32> to vector<8x32xf32>
    %281 = arith.mulf %269, %280 : vector<8x32xf32>
    %282 = vector.broadcast %271 : vector<1x32xf32> to vector<8x32xf32>
    %283 = arith.mulf %281, %282 : vector<8x32xf32>
    %c1_125 = arith.constant 1 : index
    %c0_126 = arith.constant 0 : index
    %c0_127 = arith.constant 0 : index
    %284 = vector.load %arg12[%c1_125, %c0_126, %c0_127] : memref<2x32x64xf32, #tpu.memory_space<vmem>>, vector<1x32x64xf32>
    %285 = vector.shape_cast %284 : vector<1x32x64xf32> to vector<32x64xf32>
    %cst_128 = arith.constant dense<0.000000e+00> : vector<8x64xf32>
    %286 = tpu.matmul %283, %285, %cst_128 {dimension_numbers = #tpu.dot_dimension_numbers<[1], [0], [0], [1], [0, 0, 1, 1], [], []>} : vector<8x32xf32>, vector<32x64xf32>, vector<8x64xf32> -> vector<8x64xf32>
    %cst_129 = arith.constant 0.000000e+00 : f32
    %287 = vector.broadcast %cst_129 : f32 to vector<8x64xf32>
    %288 = arith.maximumf %286, %287 : vector<8x64xf32>
    %c1_130 = arith.constant 1 : index
    %c0_131 = arith.constant 0 : index
    %c0_132 = arith.constant 0 : index
    %289 = vector.load %arg13[%c1_130, %c0_131, %c0_132] : memref<2x64x32xf32, #tpu.memory_space<vmem>>, vector<1x64x32xf32>
    %290 = vector.shape_cast %289 : vector<1x64x32xf32> to vector<64x32xf32>
    %cst_133 = arith.constant dense<0.000000e+00> : vector<8x32xf32>
    %291 = tpu.matmul %288, %290, %cst_133 {dimension_numbers = #tpu.dot_dimension_numbers<[1], [0], [0], [1], [0, 0, 1, 1], [], []>} : vector<8x64xf32>, vector<64x32xf32>, vector<8x32xf32> -> vector<8x32xf32>
    %292 = arith.addf %269, %291 : vector<8x32xf32>
    %c0_134 = arith.constant 0 : index
    %c0_135 = arith.constant 0 : index
    %293 = vector.load %arg14[%c0_134, %c0_135] : memref<1x32xf32, #tpu.memory_space<vmem>>, vector<1x32xf32>
    %294 = arith.mulf %292, %292 : vector<8x32xf32>
    %cst_136 = arith.constant dense<0.000000e+00> : vector<8xf32>
    %295 = vector.multi_reduction <add>, %294, %cst_136 [1] : vector<8x32xf32> to vector<8xf32>
    %296 = vector.shape_cast %295 : vector<8xf32> to vector<8x1xf32>
    %cst_137 = arith.constant 3.200000e+01 : f32
    %297 = vector.broadcast %cst_137 : f32 to vector<8x1xf32>
    %298 = arith.divf %296, %297 : vector<8x1xf32>
    %cst_138 = arith.constant 9.99999997E-7 : f32
    %299 = vector.broadcast %cst_138 : f32 to vector<8x1xf32>
    %300 = arith.addf %298, %299 : vector<8x1xf32>
    %301 = math.rsqrt %300 : vector<8x1xf32>
    %302 = vector.broadcast %301 : vector<8x1xf32> to vector<8x32xf32>
    %303 = arith.mulf %292, %302 : vector<8x32xf32>
    %304 = vector.broadcast %293 : vector<1x32xf32> to vector<8x32xf32>
    %305 = arith.mulf %303, %304 : vector<8x32xf32>
    %cst_139 = arith.constant 0.176776692 : f32
    %306 = vector.broadcast %cst_139 : f32 to vector<8x32xf32>
    %307 = arith.mulf %305, %306 : vector<8x32xf32>
    %c0_140 = arith.constant 0 : index
    %c0_141 = arith.constant 0 : index
    %308 = vector.load %arg3[%c0_140, %c0_141] : memref<128x32xf32, #tpu.memory_space<vmem>>, vector<128x32xf32>
    %cst_142 = arith.constant dense<0.000000e+00> : vector<8x128xf32>
    %309 = tpu.matmul %307, %308, %cst_142 {dimension_numbers = #tpu.dot_dimension_numbers<[1], [1], [0], [0], [0, 0, 1, 0], [], []>} : vector<8x32xf32>, vector<128x32xf32>, vector<8x128xf32> -> vector<8x128xf32>
    %c0_143 = arith.constant 0 : index
    %c0_144 = arith.constant 0 : index
    %c0_145 = arith.constant 0 : index
    %310 = vector.load %arg15[%c0_143, %c0_144, %c0_145] : memref<1x8x128xf32, #tpu.memory_space<vmem>>, vector<1x8x128xf32>
    %311 = vector.shape_cast %310 : vector<1x8x128xf32> to vector<8x128xf32>
    %312 = vector.shape_cast %309 : vector<8x128xf32> to vector<1x8x128xf32>
    tpu.vector_store %arg15[%c0_143, %c0_144, %c0_145], %312 {strides = array<i32>} : memref<1x8x128xf32, #tpu.memory_space<vmem>>, vector<1x8x128xf32>,
    %313 = tpu.concatenate %74, %212 in 1 : vector<8x64xf32>, vector<8x64xf32> -> vector<8x128xf32>
    %c0_146 = arith.constant 0 : index
    %c0_147 = arith.constant 0 : index
    %c0_148 = arith.constant 0 : index
    %314 = vector.load %arg16[%c0_146, %c0_147, %c0_148] : memref<1x8x128xf32, #tpu.memory_space<vmem>>, vector<1x8x128xf32>
    %315 = vector.shape_cast %314 : vector<1x8x128xf32> to vector<8x128xf32>
    %316 = vector.shape_cast %313 : vector<8x128xf32> to vector<1x8x128xf32>
    tpu.vector_store %arg16[%c0_146, %c0_147, %c0_148], %316 {strides = array<i32>} : memref<1x8x128xf32, #tpu.memory_space<vmem>>, vector<1x8x128xf32>,
    %317 = tpu.concatenate %94, %232 in 1 : vector<8x64xf32>, vector<8x64xf32> -> vector<8x128xf32>
    %c0_149 = arith.constant 0 : index
    %c0_150 = arith.constant 0 : index
    %c0_151 = arith.constant 0 : index
    %318 = vector.load %arg17[%c0_149, %c0_150, %c0_151] : memref<1x8x128xf32, #tpu.memory_space<vmem>>, vector<1x8x128xf32>
    %319 = vector.shape_cast %318 : vector<1x8x128xf32> to vector<8x128xf32>
    %320 = vector.shape_cast %317 : vector<8x128xf32> to vector<1x8x128xf32>
    tpu.vector_store %arg17[%c0_149, %c0_150, %c0_151], %320 {strides = array<i32>} : memref<1x8x128xf32, #tpu.memory_space<vmem>>, vector<1x8x128xf32>,
    return
  }
  func.func @transform_0(%arg0: i32) -> (i32, i32, i32) {
    %c0_i32 = arith.constant 0 : i32
    %c0_i32_0 = arith.constant 0 : i32
    %c0_i32_1 = arith.constant 0 : i32
    return %arg0, %c0_i32, %c0_i32_0 : i32, i32, i32
  }
  func.func @transform_1(%arg0: i32) -> (i32, i32, i32) {
    %c0_i32 = arith.constant 0 : i32
    %c0_i32_0 = arith.constant 0 : i32
    %c0_i32_1 = arith.constant 0 : i32
    return %arg0, %c0_i32, %c0_i32_0 : i32, i32, i32
  }
  func.func @transform_2(%arg0: i32) -> (i32, i32) {
    %c0_i32 = arith.constant 0 : i32
    %c0_i32_0 = arith.constant 0 : i32
    %c0_i32_1 = arith.constant 0 : i32
    return %c0_i32, %c0_i32_0 : i32, i32
  }
  func.func @transform_3(%arg0: i32) -> (i32, i32, i32) {
    %c0_i32 = arith.constant 0 : i32
    %c0_i32_0 = arith.constant 0 : i32
    %c0_i32_1 = arith.constant 0 : i32
    %c0_i32_2 = arith.constant 0 : i32
    return %c0_i32, %c0_i32_0, %c0_i32_1 : i32, i32, i32
  }
  func.func @transform_4(%arg0: i32) -> (i32, i32, i32) {
    %c0_i32 = arith.constant 0 : i32
    %c0_i32_0 = arith.constant 0 : i32
    %c0_i32_1 = arith.constant 0 : i32
    %c0_i32_2 = arith.constant 0 : i32
    return %c0_i32, %c0_i32_0, %c0_i32_1 : i32, i32, i32
  }
  func.func @transform_5(%arg0: i32) -> (i32, i32, i32) {
    %c0_i32 = arith.constant 0 : i32
    %c0_i32_0 = arith.constant 0 : i32
    %c0_i32_1 = arith.constant 0 : i32
    %c0_i32_2 = arith.constant 0 : i32
    return %c0_i32, %c0_i32_0, %c0_i32_1 : i32, i32, i32
  }
  func.func @transform_6(%arg0: i32) -> (i32, i32, i32) {
    %c0_i32 = arith.constant 0 : i32
    %c0_i32_0 = arith.constant 0 : i32
    %c0_i32_1 = arith.constant 0 : i32
    %c0_i32_2 = arith.constant 0 : i32
    return %c0_i32, %c0_i32_0, %c0_i32_1 : i32, i32, i32
  }
  func.func @transform_7(%arg0: i32) -> (i32, i32, i32) {
    %c0_i32 = arith.constant 0 : i32
    %c0_i32_0 = arith.constant 0 : i32
    %c0_i32_1 = arith.constant 0 : i32
    %c0_i32_2 = arith.constant 0 : i32
    return %c0_i32, %c0_i32_0, %c0_i32_1 : i32, i32, i32
  }
  func.func @transform_8(%arg0: i32) -> (i32, i32, i32) {
    %c0_i32 = arith.constant 0 : i32
    %c0_i32_0 = arith.constant 0 : i32
    %c0_i32_1 = arith.constant 0 : i32
    %c0_i32_2 = arith.constant 0 : i32
    return %c0_i32, %c0_i32_0, %c0_i32_1 : i32, i32, i32
  }
  func.func @transform_9(%arg0: i32) -> (i32, i32, i32) {
    %c0_i32 = arith.constant 0 : i32
    %c0_i32_0 = arith.constant 0 : i32
    %c0_i32_1 = arith.constant 0 : i32
    %c0_i32_2 = arith.constant 0 : i32
    return %c0_i32, %c0_i32_0, %c0_i32_1 : i32, i32, i32
  }
  func.func @transform_10(%arg0: i32) -> (i32, i32, i32) {
    %c0_i32 = arith.constant 0 : i32
    %c0_i32_0 = arith.constant 0 : i32
    %c0_i32_1 = arith.constant 0 : i32
    %c0_i32_2 = arith.constant 0 : i32
    return %c0_i32, %c0_i32_0, %c0_i32_1 : i32, i32, i32
  }
  func.func @transform_11(%arg0: i32) -> (i32, i32, i32) {
    %c0_i32 = arith.constant 0 : i32
    %c0_i32_0 = arith.constant 0 : i32
    %c0_i32_1 = arith.constant 0 : i32
    %c0_i32_2 = arith.constant 0 : i32
    return %c0_i32, %c0_i32_0, %c0_i32_1 : i32, i32, i32
  }
  func.func @transform_12(%arg0: i32) -> (i32, i32, i32) {
    %c0_i32 = arith.constant 0 : i32
    %c0_i32_0 = arith.constant 0 : i32
    %c0_i32_1 = arith.constant 0 : i32
    %c0_i32_2 = arith.constant 0 : i32
    return %c0_i32, %c0_i32_0, %c0_i32_1 : i32, i32, i32
  }
  func.func @transform_13(%arg0: i32) -> (i32, i32) {
    %c0_i32 = arith.constant 0 : i32
    %c0_i32_0 = arith.constant 0 : i32
    %c0_i32_1 = arith.constant 0 : i32
    return %c0_i32, %c0_i32_0 : i32, i32
  }
  func.func @transform_14(%arg0: i32) -> (i32, i32, i32) {
    %c0_i32 = arith.constant 0 : i32
    %c0_i32_0 = arith.constant 0 : i32
    %c0_i32_1 = arith.constant 0 : i32
    return %arg0, %c0_i32, %c0_i32_0 : i32, i32, i32
  }
  func.func @transform_15(%arg0: i32) -> (i32, i32, i32) {
    %c0_i32 = arith.constant 0 : i32
    %c0_i32_0 = arith.constant 0 : i32
    %c0_i32_1 = arith.constant 0 : i32
    return %arg0, %c0_i32, %c0_i32_0 : i32, i32, i32
  }
  func.func @transform_16(%arg0: i32) -> (i32, i32, i32) {
    %c0_i32 = arith.constant 0 : i32
    %c0_i32_0 = arith.constant 0 : i32
    %c0_i32_1 = arith.constant 0 : i32
    return %arg0, %c0_i32, %c0_i32_0 : i32, i32, i32
  }
}

</mosaic_0001>

<llo_original>
// kernel: t5_decoder_forward.1
$region0: #{t5_decoder_forward.1}
  #allocation0 [shape = 'u32[]', space=smem, size = 0x4, offset = 0x4, fixed_abs, tag = 'smem constant byte address 0x4 - core index']
  #allocation1 [shape = 'u32[144,128]{1,0:T(1,128)}', space=vmem, size = 0x12000, scoped, tag = 'internal scratch']
  %s0 = inlined_call_operand.vmem [shape: s32[2,8,1], index: 0, kind: input, shape index: {}]
  %s1 = inlined_call_operand.vmem [shape: f32[2,8,32], index: 1, kind: input, shape index: {}]
  %s2 = inlined_call_operand.hbm [shape: f32[128,32], index: 2, kind: input, shape index: {}]
  %s3 = inlined_call_operand.vmem [shape: f32[2,1,32], index: 3, kind: input, shape index: {}, may-alias: {3,6,10}]
  %s4 = inlined_call_operand.hbm [shape: f32[2,32,96], index: 4, kind: input, shape index: {}]
  %s5 = inlined_call_operand.hbm [shape: f32[2,32,32], index: 5, kind: input, shape index: {}]
  %s6 = inlined_call_operand.vmem [shape: f32[2,1,32], index: 6, kind: input, shape index: {}, may-alias: {3,6,10}]
  %s7 = inlined_call_operand.hbm [shape: f32[2,32,32], index: 7, kind: input, shape index: {}]
  %s8 = inlined_call_operand.hbm [shape: f32[2,32,64], index: 8, kind: input, shape index: {}]
  %s9 = inlined_call_operand.hbm [shape: f32[2,32,32], index: 9, kind: input, shape index: {}]
  %s10 = inlined_call_operand.vmem [shape: f32[2,1,32], index: 10, kind: input, shape index: {}, may-alias: {3,6,10}]
  %s11 = inlined_call_operand.hbm [shape: f32[2,32,64], index: 11, kind: input, shape index: {}]
  %s12 = inlined_call_operand.hbm [shape: f32[2,64,32], index: 12, kind: input, shape index: {}]
  %s13 = inlined_call_operand.vmem [shape: f32[1,32], index: 13, kind: input, shape index: {}]
  %s14 = inlined_call_operand.hbm [shape: f32[2,8,128], index: 14, kind: output, shape index: {0}]
  %s15 = inlined_call_operand.vmem [shape: f32[2,8,128], index: 15, kind: output, shape index: {1}]
  %s16 = inlined_call_operand.vmem [shape: f32[2,8,128], index: 16, kind: output, shape index: {2}]
  %17 = xla_tuple %s14, %s15, %s16
  %s18 = sld [smem:[#allocation0]]
  $region137: #{t5_decoder_forward.1} parent=0
    _
  %s20 = ssub.s32 1, %s18
  %s21 = scalar_select 0, %s20, %s18
  $region1: #{t5_decoder_forward.1} parent=0
    #allocation2 [shape = 'u8[65536]{0}', space=vmem, size = 0x10000, scoped, tag = 'input window, operand 2, single buffered']
    #allocation3 [shape = 's32[2]{0}', space=sflag, size = 0x8, scoped, tag = 'scoped memory for t5_decoder_forward.1']
    #allocation4 [shape = 's32[2]{0}', space=sflag, size = 0x8, scoped, tag = 'scoped memory for t5_decoder_forward.1']
    #allocation5 [shape = 'u8[32768]{0}', space=vmem, size = 0x8000, scoped, tag = 'input window, operand 4, single buffered']
    #allocation6 [shape = 's32[1]{0}', space=sflag, size = 0x4, scoped, tag = 'scoped memory for t5_decoder_forward.1']
    #allocation7 [shape = 'u8[32768]{0}', space=vmem, size = 0x8000, scoped, tag = 'input window, operand 5, single buffered']
    #allocation8 [shape = 'u8[32768]{0}', space=vmem, size = 0x8000, scoped, tag = 'input window, operand 7, single buffered']
    #allocation9 [shape = 's32[1]{0}', space=sflag, size = 0x4, scoped, tag = 'scoped memory for t5_decoder_forward.1']
    #allocation10 [shape = 'u8[32768]{0}', space=vmem, size = 0x8000, scoped, tag = 'input window, operand 8, single buffered']
    #allocation11 [shape = 'u8[32768]{0}', space=vmem, size = 0x8000, scoped, tag = 'input window, operand 9, single buffered']
    #allocation12 [shape = 's32[1]{0}', space=sflag, size = 0x4, scoped, tag = 'scoped memory for t5_decoder_forward.1']
    #allocation13 [shape = 'u8[32768]{0}', space=vmem, size = 0x8000, scoped, tag = 'input window, operand 11, single buffered']
    #allocation14 [shape = 'u8[65536]{0}', space=vmem, size = 0x10000, scoped, tag = 'input window, operand 12, single buffered']
    #allocation15 [shape = 's32[1]{0}', space=sflag, size = 0x4, scoped, tag = 'scoped memory for t5_decoder_forward.1']
    #allocation16 [shape = 'u8[8192]{0}', space=vmem, size = 0x2000, scoped, tag = 'output window, operand 0']
    %22 = vsyncpa [#allocation3], 0
    %23 = vsyncpa [#allocation6], 0
    %24 = vsyncpa [#allocation9], 0
    %25 = vsyncpa [#allocation12], 0
    %26 = vsyncpa [#allocation15], 0
    %27 = vsyncpa [#allocation4], 0
    %s28 = scalar_lea.sflag [#allocation4], 1
    %29 = vsyncpa %s28, 0
    loop: start=0, step=1, limit=4
    $region2: #{t5_decoder_forward.1} parent=1 // loop_pre_header
      _
    $region3: #{t5_decoder_forward.1} parent=1 // loop_header
      %s31 = sphi 0, %s35
      %p32 = scmp.ge.s32.totalorder %s31, 4
      %s41 = sphi 0, %s43
      %s44 = sphi 0, %s41
      %s45 = sphi 0, %s44
      %s61 = sphi 0, %s45
      %s67 = sphi 0, %s69
      %s70 = sphi 0, %s67
      %s71 = sphi 0, %s70
      %s87 = sphi 0, %s71
      %s91 = sphi 0, %s91
      %s93 = sphi 0, %s91
      %s94 = sphi 0, %s93
      %s108 = sphi 0, %s94
      %s112 = sphi 0, %s112
      %s114 = sphi 0, %s112
      %s115 = sphi 0, %s114
      %s129 = sphi 0, %s115
      %s133 = sphi 0, %s133
      %s135 = sphi 0, %s133
      %s136 = sphi 0, %s135
      %s150 = sphi 0, %s136
      %s154 = sphi 0, %s154
      %s156 = sphi 0, %s154
      %s157 = sphi 0, %s156
      %s171 = sphi 0, %s157
      %s175 = sphi 0, %s175
      %s177 = sphi 0, %s175
      %s178 = sphi 0, %s177
      %s192 = sphi 0, %s178
      %s196 = sphi 0, %s196
      %s198 = sphi 0, %s196
      %s199 = sphi 0, %s198
      %s213 = sphi 0, %s199
      %s217 = sphi 0, %s217
      %s219 = sphi 0, %s217
      %s220 = sphi 0, %s219
      %s234 = sphi 0, %s220
      %s238 = sphi 0, %s238
      %s240 = sphi 0, %s238
      %s241 = sphi 0, %s240
      %s255 = sphi 0, %s241
      %s259 = sphi 0, %s259
      %s261 = sphi 0, %s259
      %s262 = sphi 0, %s261
      %s276 = sphi 0, %s262
      %s280 = sphi 0, %s280
      %s282 = sphi 0, %s280
      %s283 = sphi 0, %s282
      %s297 = sphi 0, %s283
      %s301 = sphi 0, %s301
      %s303 = sphi 0, %s301
      %s304 = sphi 0, %s303
      %s318 = sphi 0, %s304
      %s322 = sphi 0, %s322
      %s324 = sphi 0, %s322
      %s325 = sphi 0, %s324
      %s339 = sphi 0, %s325
      %s345 = sphi 0, %s347
      %s348 = sphi 0, %s345
      %s349 = sphi 0, %s348
      %s365 = sphi 0, %s349
      %s371 = sphi 0, %s373
      %s374 = sphi 0, %s371
      %s375 = sphi 0, %s374
      %s391 = sphi 0, %s375
      %s397 = sphi 0, %s399
      %s400 = sphi 0, %s397
      %s401 = sphi 0, %s400
      %s417 = sphi 0, %s401
    $region4: #{t5_decoder_forward.1} parent=1 // loop_header_branch
      %34 = sbr.rel (%p32) target = $region8
    $region5: #{t5_decoder_forward.1} parent=1 // loop_body
      %s36 = ssub.s32 %s31, 1
      %s37 = ssub.s32 %s31, 2
      %s38 = sadd.s32 %s31, 1
      %s39 = ssub.s32 %s31, %s38
      %p40 = scmp.eq.s32.totalorder %s39, 0
      %s42 = sadd.s32 %s41, 1
      %s43 = scalar_select %p40, %s41, %s42
      %p46 = pneg %p40
      %p47 = scmp.eq.s32.totalorder %s31, 1
      %p48 = por %p46, %p47
      %p49 = scmp.ne.s32.totalorder %s41, %s44
      %p50 = scmp.eq.s32.totalorder %s31, 0
      %p51 = por %p49, %p50
      %p52 = scmp.ne.s32.totalorder %s41, %s44
      %p53 = scmp.eq.s32.totalorder %s36, 1
      %p54 = por %p52, %p53
      %p55 = scmp.ne.s32.totalorder %s44, %s45
      %p56 = scmp.eq.s32.totalorder %s36, 0
      %p57 = por %p55, %p56
      %p58 = scmp.ne.s32.totalorder %s44, %s45
      %p59 = scmp.eq.s32.totalorder %s37, 1
      %p60 = por %p58, %p59
      %p62 = scmp.ne.s32.totalorder %s45, %s61
      %p63 = scmp.eq.s32.totalorder %s37, 0
      %p64 = por %p62, %p63
      %s65 = ssub.s32 %s31, %s38
      %p66 = scmp.eq.s32.totalorder %s65, 0
      %s68 = sadd.s32 %s67, 1
      %s69 = scalar_select %p66, %s67, %s68
      %p72 = pneg %p66
      %p73 = scmp.eq.s32.totalorder %s31, 1
      %p74 = por %p72, %p73
      %p75 = scmp.ne.s32.totalorder %s67, %s70
      %p76 = scmp.eq.s32.totalorder %s31, 0
      %p77 = por %p75, %p76
      %p78 = scmp.ne.s32.totalorder %s67, %s70
      %p79 = scmp.eq.s32.totalorder %s36, 1
      %p80 = por %p78, %p79
      %p81 = scmp.ne.s32.totalorder %s70, %s71
      %p82 = scmp.eq.s32.totalorder %s36, 0
      %p83 = por %p81, %p82
      %p84 = scmp.ne.s32.totalorder %s70, %s71
      %p85 = scmp.eq.s32.totalorder %s37, 1
      %p86 = por %p84, %p85
      %p88 = scmp.ne.s32.totalorder %s71, %s87
      %p89 = scmp.eq.s32.totalorder %s37, 0
      %p90 = por %p88, %p89
      %s92 = sadd.s32 %s91, 1
      %p95 = scmp.eq.s32.totalorder %s31, 1
      %p96 = scmp.ne.s32.totalorder %s91, %s93
      %p97 = scmp.eq.s32.totalorder %s31, 0
      %p98 = por %p96, %p97
      %p99 = scmp.ne.s32.totalorder %s91, %s93
      %p100 = scmp.eq.s32.totalorder %s36, 1
      %p101 = por %p99, %p100
      %p102 = scmp.ne.s32.totalorder %s93, %s94
      %p103 = scmp.eq.s32.totalorder %s36, 0
      %p104 = por %p102, %p103
      %p105 = scmp.ne.s32.totalorder %s93, %s94
      %p106 = scmp.eq.s32.totalorder %s37, 1
      %p107 = por %p105, %p106
      %p109 = scmp.ne.s32.totalorder %s94, %s108
      %p110 = scmp.eq.s32.totalorder %s37, 0
      %p111 = por %p109, %p110
      %s113 = sadd.s32 %s112, 1
      %p116 = scmp.eq.s32.totalorder %s31, 1
      %p117 = scmp.ne.s32.totalorder %s112, %s114
      %p118 = scmp.eq.s32.totalorder %s31, 0
      %p119 = por %p117, %p118
      %p120 = scmp.ne.s32.totalorder %s112, %s114
      %p121 = scmp.eq.s32.totalorder %s36, 1
      %p122 = por %p120, %p121
      %p123 = scmp.ne.s32.totalorder %s114, %s115
      %p124 = scmp.eq.s32.totalorder %s36, 0
      %p125 = por %p123, %p124
      %p126 = scmp.ne.s32.totalorder %s114, %s115
      %p127 = scmp.eq.s32.totalorder %s37, 1
      %p128 = por %p126, %p127
      %p130 = scmp.ne.s32.totalorder %s115, %s129
      %p131 = scmp.eq.s32.totalorder %s37, 0
      %p132 = por %p130, %p131
      %s134 = sadd.s32 %s133, 1
      %p137 = scmp.eq.s32.totalorder %s31, 1
      %p138 = scmp.ne.s32.totalorder %s133, %s135
      %p139 = scmp.eq.s32.totalorder %s31, 0
      %p140 = por %p138, %p139
      %p141 = scmp.ne.s32.totalorder %s133, %s135
      %p142 = scmp.eq.s32.totalorder %s36, 1
      %p143 = por %p141, %p142
      %p144 = scmp.ne.s32.totalorder %s135, %s136
      %p145 = scmp.eq.s32.totalorder %s36, 0
      %p146 = por %p144, %p145
      %p147 = scmp.ne.s32.totalorder %s135, %s136
      %p148 = scmp.eq.s32.totalorder %s37, 1
      %p149 = por %p147, %p148
      %p151 = scmp.ne.s32.totalorder %s136, %s150
      %p152 = scmp.eq.s32.totalorder %s37, 0
      %p153 = por %p151, %p152
      %s155 = sadd.s32 %s154, 1
      %p158 = scmp.eq.s32.totalorder %s31, 1
      %p159 = scmp.ne.s32.totalorder %s154, %s156
      %p160 = scmp.eq.s32.totalorder %s31, 0
      %p161 = por %p159, %p160
      %p162 = scmp.ne.s32.totalorder %s154, %s156
      %p163 = scmp.eq.s32.totalorder %s36, 1
      %p164 = por %p162, %p163
      %p165 = scmp.ne.s32.totalorder %s156, %s157
      %p166 = scmp.eq.s32.totalorder %s36, 0
      %p167 = por %p165, %p166
      %p168 = scmp.ne.s32.totalorder %s156, %s157
      %p169 = scmp.eq.s32.totalorder %s37, 1
      %p170 = por %p168, %p169
      %p172 = scmp.ne.s32.totalorder %s157, %s171
      %p173 = scmp.eq.s32.totalorder %s37, 0
      %p174 = por %p172, %p173
      %s176 = sadd.s32 %s175, 1
      %p179 = scmp.eq.s32.totalorder %s31, 1
      %p180 = scmp.ne.s32.totalorder %s175, %s177
      %p181 = scmp.eq.s32.totalorder %s31, 0
      %p182 = por %p180, %p181
      %p183 = scmp.ne.s32.totalorder %s175, %s177
      %p184 = scmp.eq.s32.totalorder %s36, 1
      %p185 = por %p183, %p184
      %p186 = scmp.ne.s32.totalorder %s177, %s178
      %p187 = scmp.eq.s32.totalorder %s36, 0
      %p188 = por %p186, %p187
      %p189 = scmp.ne.s32.totalorder %s177, %s178
      %p190 = scmp.eq.s32.totalorder %s37, 1
      %p191 = por %p189, %p190
      %p193 = scmp.ne.s32.totalorder %s178, %s192
      %p194 = scmp.eq.s32.totalorder %s37, 0
      %p195 = por %p193, %p194
      %s197 = sadd.s32 %s196, 1
      %p200 = scmp.eq.s32.totalorder %s31, 1
      %p201 = scmp.ne.s32.totalorder %s196, %s198
      %p202 = scmp.eq.s32.totalorder %s31, 0
      %p203 = por %p201, %p202
      %p204 = scmp.ne.s32.totalorder %s196, %s198
      %p205 = scmp.eq.s32.totalorder %s36, 1
      %p206 = por %p204, %p205
      %p207 = scmp.ne.s32.totalorder %s198, %s199
      %p208 = scmp.eq.s32.totalorder %s36, 0
      %p209 = por %p207, %p208
      %p210 = scmp.ne.s32.totalorder %s198, %s199
      %p211 = scmp.eq.s32.totalorder %s37, 1
      %p212 = por %p210, %p211
      %p214 = scmp.ne.s32.totalorder %s199, %s213
      %p215 = scmp.eq.s32.totalorder %s37, 0
      %p216 = por %p214, %p215
      %s218 = sadd.s32 %s217, 1
      %p221 = scmp.eq.s32.totalorder %s31, 1
      %p222 = scmp.ne.s32.totalorder %s217, %s219
      %p223 = scmp.eq.s32.totalorder %s31, 0
      %p224 = por %p222, %p223
      %p225 = scmp.ne.s32.totalorder %s217, %s219
      %p226 = scmp.eq.s32.totalorder %s36, 1
      %p227 = por %p225, %p226
      %p228 = scmp.ne.s32.totalorder %s219, %s220
      %p229 = scmp.eq.s32.totalorder %s36, 0
      %p230 = por %p228, %p229
      %p231 = scmp.ne.s32.totalorder %s219, %s220
      %p232 = scmp.eq.s32.totalorder %s37, 1
      %p233 = por %p231, %p232
      %p235 = scmp.ne.s32.totalorder %s220, %s234
      %p236 = scmp.eq.s32.totalorder %s37, 0
      %p237 = por %p235, %p236
      %s239 = sadd.s32 %s238, 1
      %p242 = scmp.eq.s32.totalorder %s31, 1
      %p243 = scmp.ne.s32.totalorder %s238, %s240
      %p244 = scmp.eq.s32.totalorder %s31, 0
      %p245 = por %p243, %p244
      %p246 = scmp.ne.s32.totalorder %s238, %s240
      %p247 = scmp.eq.s32.totalorder %s36, 1
      %p248 = por %p246, %p247
      %p249 = scmp.ne.s32.totalorder %s240, %s241
      %p250 = scmp.eq.s32.totalorder %s36, 0
      %p251 = por %p249, %p250
      %p252 = scmp.ne.s32.totalorder %s240, %s241
      %p253 = scmp.eq.s32.totalorder %s37, 1
      %p254 = por %p252, %p253
      %p256 = scmp.ne.s32.totalorder %s241, %s255
      %p257 = scmp.eq.s32.totalorder %s37, 0
      %p258 = por %p256, %p257
      %s260 = sadd.s32 %s259, 1
      %p263 = scmp.eq.s32.totalorder %s31, 1
      %p264 = scmp.ne.s32.totalorder %s259, %s261
      %p265 = scmp.eq.s32.totalorder %s31, 0
      %p266 = por %p264, %p265
      %p267 = scmp.ne.s32.totalorder %s259, %s261
      %p268 = scmp.eq.s32.totalorder %s36, 1
      %p269 = por %p267, %p268
      %p270 = scmp.ne.s32.totalorder %s261, %s262
      %p271 = scmp.eq.s32.totalorder %s36, 0
      %p272 = por %p270, %p271
      %p273 = scmp.ne.s32.totalorder %s261, %s262
      %p274 = scmp.eq.s32.totalorder %s37, 1
      %p275 = por %p273, %p274
      %p277 = scmp.ne.s32.totalorder %s262, %s276
      %p278 = scmp.eq.s32.totalorder %s37, 0
      %p279 = por %p277, %p278
      %s281 = sadd.s32 %s280, 1
      %p284 = scmp.eq.s32.totalorder %s31, 1
      %p285 = scmp.ne.s32.totalorder %s280, %s282
      %p286 = scmp.eq.s32.totalorder %s31, 0
      %p287 = por %p285, %p286
      %p288 = scmp.ne.s32.totalorder %s280, %s282
      %p289 = scmp.eq.s32.totalorder %s36, 1
      %p290 = por %p288, %p289
      %p291 = scmp.ne.s32.totalorder %s282, %s283
      %p292 = scmp.eq.s32.totalorder %s36, 0
      %p293 = por %p291, %p292
      %p294 = scmp.ne.s32.totalorder %s282, %s283
      %p295 = scmp.eq.s32.totalorder %s37, 1
      %p296 = por %p294, %p295
      %p298 = scmp.ne.s32.totalorder %s283, %s297
      %p299 = scmp.eq.s32.totalorder %s37, 0
      %p300 = por %p298, %p299
      %s302 = sadd.s32 %s301, 1
      %p305 = scmp.eq.s32.totalorder %s31, 1
      %p306 = scmp.ne.s32.totalorder %s301, %s303
      %p307 = scmp.eq.s32.totalorder %s31, 0
      %p308 = por %p306, %p307
      %p309 = scmp.ne.s32.totalorder %s301, %s303
      %p310 = scmp.eq.s32.totalorder %s36, 1
      %p311 = por %p309, %p310
      %p312 = scmp.ne.s32.totalorder %s303, %s304
      %p313 = scmp.eq.s32.totalorder %s36, 0
      %p314 = por %p312, %p313
      %p315 = scmp.ne.s32.totalorder %s303, %s304
      %p316 = scmp.eq.s32.totalorder %s37, 1
      %p317 = por %p315, %p316
      %p319 = scmp.ne.s32.totalorder %s304, %s318
      %p320 = scmp.eq.s32.totalorder %s37, 0
      %p321 = por %p319, %p320
      %s323 = sadd.s32 %s322, 1
      %p326 = scmp.eq.s32.totalorder %s31, 1
      %p327 = scmp.ne.s32.totalorder %s322, %s324
      %p328 = scmp.eq.s32.totalorder %s31, 0
      %p329 = por %p327, %p328
      %p330 = scmp.ne.s32.totalorder %s322, %s324
      %p331 = scmp.eq.s32.totalorder %s36, 1
      %p332 = por %p330, %p331
      %p333 = scmp.ne.s32.totalorder %s324, %s325
      %p334 = scmp.eq.s32.totalorder %s36, 0
      %p335 = por %p333, %p334
      %p336 = scmp.ne.s32.totalorder %s324, %s325
      %p337 = scmp.eq.s32.totalorder %s37, 1
      %p338 = por %p336, %p337
      %p340 = scmp.ne.s32.totalorder %s325, %s339
      %p341 = scmp.eq.s32.totalorder %s37, 0
      %p342 = por %p340, %p341
      %s343 = ssub.s32 %s31, %s38
      %p344 = scmp.eq.s32.totalorder %s343, 0
      %s346 = sadd.s32 %s345, 1
      %s347 = scalar_select %p344, %s345, %s346
      %p350 = pneg %p344
      %p351 = scmp.eq.s32.totalorder %s31, 1
      %p352 = por %p350, %p351
      %p353 = scmp.ne.s32.totalorder %s345, %s348
      %p354 = scmp.eq.s32.totalorder %s31, 0
      %p355 = por %p353, %p354
      %p356 = scmp.ne.s32.totalorder %s345, %s348
      %p357 = scmp.eq.s32.totalorder %s36, 1
      %p358 = por %p356, %p357
      %p359 = scmp.ne.s32.totalorder %s348, %s349
      %p360 = scmp.eq.s32.totalorder %s36, 0
      %p361 = por %p359, %p360
      %p362 = scmp.ne.s32.totalorder %s348, %s349
      %p363 = scmp.eq.s32.totalorder %s37, 1
      %p364 = por %p362, %p363
      %p366 = scmp.ne.s32.totalorder %s349, %s365
      %p367 = scmp.eq.s32.totalorder %s37, 0
      %p368 = por %p366, %p367
      %s369 = ssub.s32 %s31, %s38
      %p370 = scmp.eq.s32.totalorder %s369, 0
      %s372 = sadd.s32 %s371, 1
      %s373 = scalar_select %p370, %s371, %s372
      %p376 = pneg %p370
      %p377 = scmp.eq.s32.totalorder %s31, 1
      %p378 = por %p376, %p377
      %p379 = scmp.ne.s32.totalorder %s371, %s374
      %p380 = scmp.eq.s32.totalorder %s31, 0
      %p381 = por %p379, %p380
      %p382 = scmp.ne.s32.totalorder %s371, %s374
      %p383 = scmp.eq.s32.totalorder %s36, 1
      %p384 = por %p382, %p383
      %p385 = scmp.ne.s32.totalorder %s374, %s375
      %p386 = scmp.eq.s32.totalorder %s36, 0
      %p387 = por %p385, %p386
      %p388 = scmp.ne.s32.totalorder %s374, %s375
      %p389 = scmp.eq.s32.totalorder %s37, 1
      %p390 = por %p388, %p389
      %p392 = scmp.ne.s32.totalorder %s375, %s391
      %p393 = scmp.eq.s32.totalorder %s37, 0
      %p394 = por %p392, %p393
      %s395 = ssub.s32 %s31, %s38
      %p396 = scmp.eq.s32.totalorder %s395, 0
      %s398 = sadd.s32 %s397, 1
      %s399 = scalar_select %p396, %s397, %s398
      %p402 = pneg %p396
      %p403 = scmp.eq.s32.totalorder %s31, 1
      %p404 = por %p402, %p403
      %p405 = scmp.ne.s32.totalorder %s397, %s400
      %p406 = scmp.eq.s32.totalorder %s31, 0
      %p407 = por %p405, %p406
      %p408 = scmp.ne.s32.totalorder %s397, %s400
      %p409 = scmp.eq.s32.totalorder %s36, 1
      %p410 = por %p408, %p409
      %p411 = scmp.ne.s32.totalorder %s400, %s401
      %p412 = scmp.eq.s32.totalorder %s36, 0
      %p413 = por %p411, %p412
      %p414 = scmp.ne.s32.totalorder %s400, %s401
      %p415 = scmp.eq.s32.totalorder %s37, 1
      %p416 = por %p414, %p415
      %p418 = scmp.ne.s32.totalorder %s401, %s417
      %p419 = scmp.eq.s32.totalorder %s37, 0
      %p420 = por %p418, %p419
      %p421 = scmp.le.s32.totalorder 1, %s31
      %p422 = scmp.lt.s32.totalorder %s31, 3
      %p423 = pnand %p421, %p422
      %p424 = pneg %p423
      // Predicated region
      $region9: #{t5_decoder_forward.1} parent=5 // pred_check
        _
      $region10: #{t5_decoder_forward.1} parent=5 // pred_check_branch
        %426 = sbr.rel (%p423) target = $region12
      $region11: #{t5_decoder_forward.1} parent=5 // pred_region
        %s427 = ssub.s32 %s31, 1
        // Predicated region
        $region13: #{t5_decoder_forward.1} parent=11 // pred_check
          %p428 = pneg %p104
        $region14: #{t5_decoder_forward.1} parent=11 // pred_check_branch
          %430 = sbr.rel (%p428) target = $region16
        $region15: #{t5_decoder_forward.1} parent=11 // pred_region
          %s432 = ssub.s32 2048, 2048
          %433 = vsyncadd [#allocation3], %s432
          %s434 = sshll.u32 [#allocation2], 4
          %s435 = int_to_ptr.vmem [resolvable:$true] %s434
          %440 = dma.hbm_to_vmem [thread:$0]  %s2, 2048, %s435, [#allocation3], 128, 128, 8
        $region16: #{t5_decoder_forward.1} parent=11 // pred_fallthru
          _
        // Predicated region
        $region17: #{t5_decoder_forward.1} parent=11 // pred_check
          %p441 = pneg %p125
        $region18: #{t5_decoder_forward.1} parent=11 // pred_check_branch
          %443 = sbr.rel (%p441) target = $region20
        $region19: #{t5_decoder_forward.1} parent=11 // pred_region
          _
        $region20: #{t5_decoder_forward.1} parent=11 // pred_fallthru
          _
        // Predicated region
        $region21: #{t5_decoder_forward.1} parent=11 // pred_check
          %p444 = pneg %p146
        $region22: #{t5_decoder_forward.1} parent=11 // pred_check_branch
          %446 = sbr.rel (%p444) target = $region24
        $region23: #{t5_decoder_forward.1} parent=11 // pred_region
          %s448 = ssub.s32 1024, 1024
          %449 = vsyncadd [#allocation6], %s448
          %s450 = sshll.u32 [#allocation5], 4
          %s451 = int_to_ptr.vmem [resolvable:$true] %s450
          %456 = dma.hbm_to_vmem [thread:$0]  %s4, 1024, %s451, [#allocation6], 128, 128, 8
        $region24: #{t5_decoder_forward.1} parent=11 // pred_fallthru
          _
        // Predicated region
        $region25: #{t5_decoder_forward.1} parent=11 // pred_check
          %p457 = pneg %p167
        $region26: #{t5_decoder_forward.1} parent=11 // pred_check_branch
          %459 = sbr.rel (%p457) target = $region28
        $region27: #{t5_decoder_forward.1} parent=11 // pred_region
          %s461 = ssub.s32 1024, 1024
          %462 = vsyncadd [#allocation6], %s461
          %s463 = sshll.u32 [#allocation7], 4
          %s464 = int_to_ptr.vmem [resolvable:$true] %s463
          %469 = dma.hbm_to_vmem [thread:$0]  %s5, 1024, %s464, [#allocation6], 128, 128, 8
        $region28: #{t5_decoder_forward.1} parent=11 // pred_fallthru
          _
        // Predicated region
        $region29: #{t5_decoder_forward.1} parent=11 // pred_check
          %p470 = pneg %p188
        $region30: #{t5_decoder_forward.1} parent=11 // pred_check_branch
          %472 = sbr.rel (%p470) target = $region32
        $region31: #{t5_decoder_forward.1} parent=11 // pred_region
          _
        $region32: #{t5_decoder_forward.1} parent=11 // pred_fallthru
          _
        // Predicated region
        $region33: #{t5_decoder_forward.1} parent=11 // pred_check
          %p473 = pneg %p209
        $region34: #{t5_decoder_forward.1} parent=11 // pred_check_branch
          %475 = sbr.rel (%p473) target = $region36
        $region35: #{t5_decoder_forward.1} parent=11 // pred_region
          %s477 = ssub.s32 1024, 1024
          %478 = vsyncadd [#allocation9], %s477
          %s479 = sshll.u32 [#allocation8], 4
          %s480 = int_to_ptr.vmem [resolvable:$true] %s479
          %485 = dma.hbm_to_vmem [thread:$0]  %s7, 1024, %s480, [#allocation9], 128, 128, 8
        $region36: #{t5_decoder_forward.1} parent=11 // pred_fallthru
          _
        // Predicated region
        $region37: #{t5_decoder_forward.1} parent=11 // pred_check
          %p486 = pneg %p230
        $region38: #{t5_decoder_forward.1} parent=11 // pred_check_branch
          %488 = sbr.rel (%p486) target = $region40
        $region39: #{t5_decoder_forward.1} parent=11 // pred_region
          %s490 = ssub.s32 1024, 1024
          %491 = vsyncadd [#allocation9], %s490
          %s492 = sshll.u32 [#allocation10], 4
          %s493 = int_to_ptr.vmem [resolvable:$true] %s492
          %498 = dma.hbm_to_vmem [thread:$0]  %s8, 1024, %s493, [#allocation9], 128, 128, 8
        $region40: #{t5_decoder_forward.1} parent=11 // pred_fallthru
          _
        // Predicated region
        $region41: #{t5_decoder_forward.1} parent=11 // pred_check
          %p499 = pneg %p251
        $region42: #{t5_decoder_forward.1} parent=11 // pred_check_branch
          %501 = sbr.rel (%p499) target = $region44
        $region43: #{t5_decoder_forward.1} parent=11 // pred_region
          %s503 = ssub.s32 1024, 1024
          %504 = vsyncadd [#allocation12], %s503
          %s505 = sshll.u32 [#allocation11], 4
          %s506 = int_to_ptr.vmem [resolvable:$true] %s505
          %511 = dma.hbm_to_vmem [thread:$0]  %s9, 1024, %s506, [#allocation12], 128, 128, 8
        $region44: #{t5_decoder_forward.1} parent=11 // pred_fallthru
          _
        // Predicated region
        $region45: #{t5_decoder_forward.1} parent=11 // pred_check
          %p512 = pneg %p272
        $region46: #{t5_decoder_forward.1} parent=11 // pred_check_branch
          %514 = sbr.rel (%p512) target = $region48
        $region47: #{t5_decoder_forward.1} parent=11 // pred_region
          _
        $region48: #{t5_decoder_forward.1} parent=11 // pred_fallthru
          _
        // Predicated region
        $region49: #{t5_decoder_forward.1} parent=11 // pred_check
          %p515 = pneg %p293
        $region50: #{t5_decoder_forward.1} parent=11 // pred_check_branch
          %517 = sbr.rel (%p515) target = $region52
        $region51: #{t5_decoder_forward.1} parent=11 // pred_region
          %s519 = ssub.s32 1024, 1024
          %520 = vsyncadd [#allocation12], %s519
          %s521 = sshll.u32 [#allocation13], 4
          %s522 = int_to_ptr.vmem [resolvable:$true] %s521
          %527 = dma.hbm_to_vmem [thread:$0]  %s11, 1024, %s522, [#allocation12], 128, 128, 8
        $region52: #{t5_decoder_forward.1} parent=11 // pred_fallthru
          _
        // Predicated region
        $region53: #{t5_decoder_forward.1} parent=11 // pred_check
          %p528 = pneg %p314
        $region54: #{t5_decoder_forward.1} parent=11 // pred_check_branch
          %530 = sbr.rel (%p528) target = $region56
        $region55: #{t5_decoder_forward.1} parent=11 // pred_region
          %s532 = ssub.s32 2048, 2048
          %533 = vsyncadd [#allocation15], %s532
          %s534 = sshll.u32 [#allocation14], 4
          %s535 = int_to_ptr.vmem [resolvable:$true] %s534
          %540 = dma.hbm_to_vmem [thread:$0]  %s12, 2048, %s535, [#allocation15], 128, 128, 8
        $region56: #{t5_decoder_forward.1} parent=11 // pred_fallthru
          _
        // Predicated region
        $region57: #{t5_decoder_forward.1} parent=11 // pred_check
          %p541 = pneg %p335
        $region58: #{t5_decoder_forward.1} parent=11 // pred_check_branch
          %543 = sbr.rel (%p541) target = $region60
        $region59: #{t5_decoder_forward.1} parent=11 // pred_region
          _
        $region60: #{t5_decoder_forward.1} parent=11 // pred_fallthru
          _
      $region12: #{t5_decoder_forward.1} parent=5 // pred_fallthru
        _
      %p544 = scmp.lt.s32.totalorder %s31, 2
      // Predicated region
      $region61: #{t5_decoder_forward.1} parent=5 // pred_check
        %p545 = pneg %p544
      $region62: #{t5_decoder_forward.1} parent=5 // pred_check_branch
        %547 = sbr.rel (%p545) target = $region64
      $region63: #{t5_decoder_forward.1} parent=5 // pred_region
        // Predicated region
        $region65: #{t5_decoder_forward.1} parent=63 // pred_check
          %p548 = pneg %p51
        $region66: #{t5_decoder_forward.1} parent=63 // pred_check_branch
          %550 = sbr.rel (%p548) target = $region68
        $region67: #{t5_decoder_forward.1} parent=63 // pred_region
          %p551 = scmp.lt.s32.totalorder %s31, 1
          %s552 = scalar_select %p551, %s31, 1
          %s553 = smul.addr %s552, 8
          %s554 = scalar_lea.vmem %s0, %s553
        $region68: #{t5_decoder_forward.1} parent=63 // pred_fallthru
          _
        // Predicated region
        $region69: #{t5_decoder_forward.1} parent=63 // pred_check
          %p555 = pneg %p77
        $region70: #{t5_decoder_forward.1} parent=63 // pred_check_branch
          %557 = sbr.rel (%p555) target = $region72
        $region71: #{t5_decoder_forward.1} parent=63 // pred_region
          %p558 = scmp.lt.s32.totalorder %s31, 1
          %s559 = scalar_select %p558, %s31, 1
          %s560 = smul.addr %s559, 8
          %s561 = scalar_lea.vmem %s1, %s560
        $region72: #{t5_decoder_forward.1} parent=63 // pred_fallthru
          _
      $region64: #{t5_decoder_forward.1} parent=5 // pred_fallthru
        _
      %p562 = scmp.le.s32.totalorder 1, %s31
      %p563 = scmp.lt.s32.totalorder %s31, 3
      %p564 = pnand %p562, %p563
      %p565 = pneg %p564
      // Predicated region
      $region73: #{t5_decoder_forward.1} parent=5 // pred_check
        _
      $region74: #{t5_decoder_forward.1} parent=5 // pred_check_branch
        %567 = sbr.rel (%p564) target = $region76
      $region75: #{t5_decoder_forward.1} parent=5 // pred_region
        %s568 = ssub.s32 %s31, 1
        // Predicated region
        $region77: #{t5_decoder_forward.1} parent=75 // pred_check
          %p569 = pneg %p104
        $region78: #{t5_decoder_forward.1} parent=75 // pred_check_branch
          %571 = sbr.rel (%p569) target = $region80
        $region79: #{t5_decoder_forward.1} parent=75 // pred_region
          %572 = dma.done [#allocation3], 2048
        $region80: #{t5_decoder_forward.1} parent=75 // pred_fallthru
          _
        // Predicated region
        $region81: #{t5_decoder_forward.1} parent=75 // pred_check
          %p573 = pneg %p146
        $region82: #{t5_decoder_forward.1} parent=75 // pred_check_branch
          %575 = sbr.rel (%p573) target = $region84
        $region83: #{t5_decoder_forward.1} parent=75 // pred_region
          %576 = dma.done [#allocation6], 1024
        $region84: #{t5_decoder_forward.1} parent=75 // pred_fallthru
          _
        // Predicated region
        $region85: #{t5_decoder_forward.1} parent=75 // pred_check
          %p577 = pneg %p167
        $region86: #{t5_decoder_forward.1} parent=75 // pred_check_branch
          %579 = sbr.rel (%p577) target = $region88
        $region87: #{t5_decoder_forward.1} parent=75 // pred_region
          %580 = dma.done [#allocation6], 1024
        $region88: #{t5_decoder_forward.1} parent=75 // pred_fallthru
          _
        // Predicated region
        $region89: #{t5_decoder_forward.1} parent=75 // pred_check
          %p581 = pneg %p209
        $region90: #{t5_decoder_forward.1} parent=75 // pred_check_branch
          %583 = sbr.rel (%p581) target = $region92
        $region91: #{t5_decoder_forward.1} parent=75 // pred_region
          %584 = dma.done [#allocation9], 1024
        $region92: #{t5_decoder_forward.1} parent=75 // pred_fallthru
          _
        // Predicated region
        $region93: #{t5_decoder_forward.1} parent=75 // pred_check
          %p585 = pneg %p230
        $region94: #{t5_decoder_forward.1} parent=75 // pred_check_branch
          %587 = sbr.rel (%p585) target = $region96
        $region95: #{t5_decoder_forward.1} parent=75 // pred_region
          %588 = dma.done [#allocation9], 1024
        $region96: #{t5_decoder_forward.1} parent=75 // pred_fallthru
          _
        // Predicated region
        $region97: #{t5_decoder_forward.1} parent=75 // pred_check
          %p589 = pneg %p251
        $region98: #{t5_decoder_forward.1} parent=75 // pred_check_branch
          %591 = sbr.rel (%p589) target = $region100
        $region99: #{t5_decoder_forward.1} parent=75 // pred_region
          %592 = dma.done [#allocation12], 1024
        $region100: #{t5_decoder_forward.1} parent=75 // pred_fallthru
          _
        // Predicated region
        $region101: #{t5_decoder_forward.1} parent=75 // pred_check
          %p593 = pneg %p293
        $region102: #{t5_decoder_forward.1} parent=75 // pred_check_branch
          %595 = sbr.rel (%p593) target = $region104
        $region103: #{t5_decoder_forward.1} parent=75 // pred_region
          %596 = dma.done [#allocation12], 1024
        $region104: #{t5_decoder_forward.1} parent=75 // pred_fallthru
          _
        // Predicated region
        $region105: #{t5_decoder_forward.1} parent=75 // pred_check
          %p597 = pneg %p314
        $region106: #{t5_decoder_forward.1} parent=75 // pred_check_branch
          %599 = sbr.rel (%p597) target = $region108
        $region107: #{t5_decoder_forward.1} parent=75 // pred_region
          %600 = dma.done [#allocation15], 2048
        $region108: #{t5_decoder_forward.1} parent=75 // pred_fallthru
          _
        %p601 = scmp.lt.s32.totalorder %s36, 1
        %s602 = scalar_select %p601, %s36, 1
        %s603 = smul.addr %s602, 8
        %s604 = scalar_lea.vmem %s0, %s603
        %p605 = pneg %p57
        %p606 = pneg %p54
        %p607 = scmp.lt.s32.totalorder %s36, 1
        %s608 = scalar_select %p607, %s36, 1
        %s609 = smul.addr %s608, 8
        %s610 = scalar_lea.vmem %s1, %s609
        %p611 = pneg %p83
        %p612 = pneg %p80
        %p613 = pneg %p104
        %p614 = pneg %p101
        %p615 = pneg %p125
        %p616 = pneg %p122
        %p617 = pneg %p146
        %p618 = pneg %p143
        %p619 = pneg %p167
        %p620 = pneg %p164
        %p621 = pneg %p188
        %p622 = pneg %p185
        %p623 = pneg %p209
        %p624 = pneg %p206
        %p625 = pneg %p230
        %p626 = pneg %p227
        %p627 = pneg %p251
        %p628 = pneg %p248
        %p629 = pneg %p272
        %p630 = pneg %p269
        %p631 = pneg %p293
        %p632 = pneg %p290
        %p633 = pneg %p314
        %p634 = pneg %p311
        %p635 = pneg %p335
        %p636 = pneg %p332
        %p637 = pneg %p361
        %p638 = pneg %p358
        %s639 = sand.u32 %s348, 1
        %s640 = scalar_lea.sflag [#allocation4], %s639
        %s641 = sand.u32 %s348, 1
        %s642 = smul.addr %s641, 8
        %s643 = scalar_lea.vmem [#allocation16], %s642
        %p644 = pneg %p387
        %p645 = pneg %p384
        %p646 = scmp.lt.s32.totalorder %s36, 1
        %s647 = scalar_select %p646, %s36, 1
        %s648 = smul.addr %s647, 8
        %s649 = scalar_lea.vmem %s15, %s648
        %p650 = pneg %p413
        %p651 = pneg %p410
        %p652 = scmp.lt.s32.totalorder %s36, 1
        %s653 = scalar_select %p652, %s36, 1
        %s654 = smul.addr %s653, 8
        %s655 = scalar_lea.vmem %s16, %s654
        %p656 = scmp.lt.s32.totalorder %s36, 1
        %s657 = scalar_select %p656, %s36, 1
        %s658 = smul.addr %s657, 8
        %s659 = scalar_lea.vmem %s0, %s658
        %p660 = scmp.lt.s32.totalorder %s36, 1
        %s661 = scalar_select %p660, %s36, 1
        %s662 = smul.addr %s661, 8
        %s663 = scalar_lea.vmem %s1, %s662
        %p664 = scmp.lt.s32.totalorder %s36, 1
        %s665 = scalar_select %p664, %s36, 1
        %s666 = smul.addr %s665, 8
        %s667 = scalar_lea.vmem %s15, %s666
        %p668 = scmp.lt.s32.totalorder %s36, 1
        %s669 = scalar_select %p668, %s36, 1
        %s670 = smul.addr %s669, 8
        %s671 = scalar_lea.vmem %s16, %s670
        %v672 = vld [vmem:[%s659] sm:$0xff]
        %v673 = vlaneseq
        %v674 = vand.u32 %v673, 127
        %675 = vset.pattern.permute.xlu0 0
        %676 = vperm.xlu0 %675, %v672
        %v677 = vpop.permute.xlu0 %676
        %vm678 = vcmp.eq.s32.totalorder %v674, %v677
        %v679 = vsel %vm678, 1, 0
        %v680 = vcvt.s32.f32 %v679
        %v681 = vld [vmem:[#allocation2] sm:$0xff]
        %v682 = vld [vmem:[#allocation2 + $0x8] sm:$0xff]
        %v683 = vld [vmem:[#allocation2 + $0x10] sm:$0xff]
        %v684 = vld [vmem:[#allocation2 + $0x18] sm:$0xff]
        %v685 = vld [vmem:[#allocation2 + $0x20] sm:$0xff]
        %v686 = vld [vmem:[#allocation2 + $0x28] sm:$0xff]
        %v687 = vld [vmem:[#allocation2 + $0x30] sm:$0xff]
        %v688 = vld [vmem:[#allocation2 + $0x38] sm:$0xff]
        %v689 = vld [vmem:[#allocation2 + $0x40] sm:$0xff]
        %v690 = vld [vmem:[#allocation2 + $0x48] sm:$0xff]
        %v691 = vld [vmem:[#allocation2 + $0x50] sm:$0xff]
        %v692 = vld [vmem:[#allocation2 + $0x58] sm:$0xff]
        %v693 = vld [vmem:[#allocation2 + $0x60] sm:$0xff]
        %v694 = vld [vmem:[#allocation2 + $0x68] sm:$0xff]
        %v695 = vld [vmem:[#allocation2 + $0x70] sm:$0xff]
        %v696 = vld [vmem:[#allocation2 + $0x78] sm:$0xff]
        %697 = vmatprep.subr.mxu0 0.0
        %698 = vmatpush1.msra.mxu0 %v696
        %699 = vmatprep.subr.mxu0 0.0
        %700 = vmatpush1.msra.mxu0 %v695
        %701 = vmatprep.subr.mxu0 0.0
        %702 = vmatpush1.msra.mxu0 %v694
        %703 = vmatprep.subr.mxu0 0.0
        %704 = vmatpush1.msra.mxu0 %v693
        %705 = vmatprep.subr.mxu0 0.0
        %706 = vmatpush1.msra.mxu0 %v692
        %707 = vmatprep.subr.mxu0 0.0
        %708 = vmatpush1.msra.mxu0 %v691
        %709 = vmatprep.subr.mxu0 0.0
        %710 = vmatpush1.msra.mxu0 %v690
        %711 = vmatprep.subr.mxu0 0.0
        %712 = vmatpush1.msra.mxu0 %v689
        %713 = vmatprep.subr.mxu0 0.0
        %714 = vmatpush1.msra.mxu0 %v688
        %715 = vmatprep.subr.mxu0 0.0
        %716 = vmatpush1.msra.mxu0 %v687
        %717 = vmatprep.subr.mxu0 0.0
        %718 = vmatpush1.msra.mxu0 %v686
        %719 = vmatprep.subr.mxu0 0.0
        %720 = vmatpush1.msra.mxu0 %v685
        %721 = vmatprep.subr.mxu0 0.0
        %722 = vmatpush1.msra.mxu0 %v684
        %723 = vmatprep.subr.mxu0 0.0
        %724 = vmatpush1.msra.mxu0 %v683
        %725 = vmatprep.subr.mxu0 0.0
        %726 = vmatpush1.msra.mxu0 %v682
        %727 = vmatprep.subr.mxu0 0.0
        %728 = vmatpush1.msra.mxu0 %v681
        %729 = vmatprep.subr.mxu0 0.0
        %730 = vmatpush2.msra.mxu0 0.0
        %731 = vmatprep.subr.mxu0 0.0
        %732 = vmatpush2.msra.mxu0 0.0
        %733 = vmatprep.subr.mxu0 0.0
        %734 = vmatpush2.msra.mxu0 0.0
        %735 = vmatprep.subr.mxu0 0.0
        %736 = vmatpush2.msra.mxu0 0.0
        %737 = vmatprep.subr.mxu0 0.0
        %738 = vmatpush2.msra.mxu0 0.0
        %739 = vmatprep.subr.mxu0 0.0
        %740 = vmatpush2.msra.mxu0 0.0
        %741 = vmatprep.subr.mxu0 0.0
        %742 = vmatpush2.msra.mxu0 0.0
        %743 = vmatprep.subr.mxu0 0.0
        %744 = vmatpush2.msra.mxu0 0.0
        %745 = vmatprep.subr.mxu0 0.0
        %746 = vmatpush2.msra.mxu0 0.0
        %747 = vmatprep.subr.mxu0 0.0
        %748 = vmatpush2.msra.mxu0 0.0
        %749 = vmatprep.subr.mxu0 0.0
        %750 = vmatpush2.msra.mxu0 0.0
        %751 = vmatprep.subr.mxu0 0.0
        %752 = vmatpush2.msra.mxu0 0.0
        %753 = vmatprep.subr.mxu0 0.0
        %754 = vmatpush2.msra.mxu0 0.0
        %755 = vmatprep.subr.mxu0 0.0
        %756 = vmatpush2.msra.mxu0 0.0
        %757 = vmatprep.subr.mxu0 0.0
        %758 = vmatpush2.msra.mxu0 0.0
        %759 = vmatprep.subr.mxu0 0.0
        %760 = vmatpush2.msra.mxu0 0.0
        %761 = vmatprep.mubr.f32.mxu0 0.0
        %762 = vmatmul.mubr.f32.gmra.mxu0 %v680
        %v763 = vpop.f32.mrf.mxu0
        %v764 = vadd.f32 0.0, %v763
        %v765 = vpop.f32.mrf.mxu0
        %766 = vdwg.mxu0
        %v767 = vld [vmem:[%s663] sm:$0xff]
        %v768 = vlaneseq
        %v769 = vshrl.u32 %v768, 7
        %vm770 = vcmp.le.s32.totalorder %v674, %v769
        %v771 = vsel %vm770, 0.0, -1e+30
        %v772 = vld [vmem:[%s3] sm:$0x1]
        %v773 = vmul.f32 %v764, %v764
        %vm774 = vcmask 261120
        %v775 = vsel %vm774, %v773, 0.0
        %776 = vadd.xlane.f32.xlu0 %v775
        %v777 = vpop.xlane.xlu0 %776
        %v778 = vrcp.pop 32.0
        %v779 = vmul.f32 %v777, %v778
        %v780 = vadd.f32 %v779, 1e-06
        %v781 = vrsqrt.pop %v780
        %v782 = vmul.f32 %v764, %v781
        %v784 = vlaneseq
        %v785 = vshrl.u32 %v784, 7
        %v786 = vsub.s32 0, %v785
        %v787 = vrot.slane %v772, %v786
        %v789 = vmul.f32 %v782, %v787
        %v790 = vld [vmem:[#allocation5] sm:$0xff]
        %v791 = vld [vmem:[#allocation5 + $0x8] sm:$0xff]
        %v792 = vld [vmem:[#allocation5 + $0x10] sm:$0xff]
        %v793 = vld [vmem:[#allocation5 + $0x18] sm:$0xff]
        %v795 = vsel %vm774, %v789, 0
        %797 = vmatprep.subr.mxu0 0.0
        %798 = vmatpush1.msra.mxu0 0.0
        %799 = vmatprep.subr.mxu0 0.0
        %800 = vmatpush1.msra.mxu0 0.0
        %801 = vmatprep.subr.mxu0 0.0
        %802 = vmatpush1.msra.mxu0 0.0
        %803 = vmatprep.subr.mxu0 0.0
        %804 = vmatpush1.msra.mxu0 0.0
        %805 = vmatprep.subr.mxu0 0.0
        %806 = vmatpush1.msra.mxu0 0.0
        %807 = vmatprep.subr.mxu0 0.0
        %808 = vmatpush1.msra.mxu0 0.0
        %809 = vmatprep.subr.mxu0 0.0
        %810 = vmatpush1.msra.mxu0 0.0
        %811 = vmatprep.subr.mxu0 0.0
        %812 = vmatpush1.msra.mxu0 0.0
        %813 = vmatprep.subr.mxu0 0.0
        %814 = vmatpush1.msra.mxu0 0.0
        %815 = vmatprep.subr.mxu0 0.0
        %816 = vmatpush1.msra.mxu0 0.0
        %817 = vmatprep.subr.mxu0 0.0
        %818 = vmatpush1.msra.mxu0 0.0
        %819 = vmatprep.subr.mxu0 0.0
        %820 = vmatpush1.msra.mxu0 0.0
        %821 = vmatprep.subr.mxu0 0.0
        %822 = vmatpush1.msra.mxu0 %v793
        %823 = vmatprep.subr.mxu0 0.0
        %824 = vmatpush1.msra.mxu0 %v792
        %825 = vmatprep.subr.mxu0 0.0
        %826 = vmatpush1.msra.mxu0 %v791
        %827 = vmatprep.subr.mxu0 0.0
        %828 = vmatpush1.msra.mxu0 %v790
        %829 = vmatprep.subr.mxu0 0.0
        %830 = vmatpush2.msra.mxu0 0.0
        %831 = vmatprep.subr.mxu0 0.0
        %832 = vmatpush2.msra.mxu0 0.0
        %833 = vmatprep.subr.mxu0 0.0
        %834 = vmatpush2.msra.mxu0 0.0
        %835 = vmatprep.subr.mxu0 0.0
        %836 = vmatpush2.msra.mxu0 0.0
        %837 = vmatprep.subr.mxu0 0.0
        %838 = vmatpush2.msra.mxu0 0.0
        %839 = vmatprep.subr.mxu0 0.0
        %840 = vmatpush2.msra.mxu0 0.0
        %841 = vmatprep.subr.mxu0 0.0
        %842 = vmatpush2.msra.mxu0 0.0
        %843 = vmatprep.subr.mxu0 0.0
        %844 = vmatpush2.msra.mxu0 0.0
        %845 = vmatprep.subr.mxu0 0.0
        %846 = vmatpush2.msra.mxu0 0.0
        %847 = vmatprep.subr.mxu0 0.0
        %848 = vmatpush2.msra.mxu0 0.0
        %849 = vmatprep.subr.mxu0 0.0
        %850 = vmatpush2.msra.mxu0 0.0
        %851 = vmatprep.subr.mxu0 0.0
        %852 = vmatpush2.msra.mxu0 0.0
        %853 = vmatprep.subr.mxu0 0.0
        %854 = vmatpush2.msra.mxu0 0.0
        %855 = vmatprep.subr.mxu0 0.0
        %856 = vmatpush2.msra.mxu0 0.0
        %857 = vmatprep.subr.mxu0 0.0
        %858 = vmatpush2.msra.mxu0 0.0
        %859 = vmatprep.subr.mxu0 0.0
        %860 = vmatpush2.msra.mxu0 0.0
        %861 = vmatprep.mubr.f32.mxu0 0.0
        %862 = vmatmul.mubr.f32.gmra.mxu0 %v795
        %v863 = vpop.f32.mrf.mxu0
        %v864 = vadd.f32 0.0, %v863
        %v865 = vpop.f32.mrf.mxu0
        %866 = vdwg.mxu0
        %868 = vrot.lane.b32.xlu0 %v864, 96
        %v869 = vpop.permute.xlu0 %868
        %vm870 = vcmask 130048
        %v871 = vsel %vm870, %v864, 0
        %v873 = vsel %vm870, %v869, 0
        %875 = vmatprep.subr.mxu0 0.0
        %876 = vmatpush1.xpose.msra.mxu0 0.0
        %877 = vmatprep.subr.mxu0 0.0
        %878 = vmatpush1.xpose.msra.mxu0 0.0
        %879 = vmatprep.subr.mxu0 0.0
        %880 = vmatpush1.xpose.msra.mxu0 0.0
        %881 = vmatprep.subr.mxu0 0.0
        %882 = vmatpush1.xpose.msra.mxu0 0.0
        %883 = vmatprep.subr.mxu0 0.0
        %884 = vmatpush1.xpose.msra.mxu0 0.0
        %885 = vmatprep.subr.mxu0 0.0
        %886 = vmatpush1.xpose.msra.mxu0 0.0
        %887 = vmatprep.subr.mxu0 0.0
        %888 = vmatpush1.xpose.msra.mxu0 0.0
        %889 = vmatprep.subr.mxu0 0.0
        %890 = vmatpush1.xpose.msra.mxu0 0.0
        %891 = vmatprep.subr.mxu0 0.0
        %892 = vmatpush1.xpose.msra.mxu0 0.0
        %893 = vmatprep.subr.mxu0 0.0
        %894 = vmatpush1.xpose.msra.mxu0 0.0
        %895 = vmatprep.subr.mxu0 0.0
        %896 = vmatpush1.xpose.msra.mxu0 0.0
        %897 = vmatprep.subr.mxu0 0.0
        %898 = vmatpush1.xpose.msra.mxu0 0.0
        %899 = vmatprep.subr.mxu0 0.0
        %900 = vmatpush1.xpose.msra.mxu0 0.0
        %901 = vmatprep.subr.mxu0 0.0
        %902 = vmatpush1.xpose.msra.mxu0 0.0
        %903 = vmatprep.subr.mxu0 0.0
        %904 = vmatpush1.xpose.msra.mxu0 0.0
        %905 = vmatprep.subr.mxu0 0.0
        %906 = vmatpush1.xpose.msra.mxu0 %v873
        %907 = vmatprep.subr.mxu0 0.0
        %908 = vmatpush2.xpose.msra.mxu0 0.0
        %909 = vmatprep.subr.mxu0 0.0
        %910 = vmatpush2.xpose.msra.mxu0 0.0
        %911 = vmatprep.subr.mxu0 0.0
        %912 = vmatpush2.xpose.msra.mxu0 0.0
        %913 = vmatprep.subr.mxu0 0.0
        %914 = vmatpush2.xpose.msra.mxu0 0.0
        %915 = vmatprep.subr.mxu0 0.0
        %916 = vmatpush2.xpose.msra.mxu0 0.0
        %917 = vmatprep.subr.mxu0 0.0
        %918 = vmatpush2.xpose.msra.mxu0 0.0
        %919 = vmatprep.subr.mxu0 0.0
        %920 = vmatpush2.xpose.msra.mxu0 0.0
        %921 = vmatprep.subr.mxu0 0.0
        %922 = vmatpush2.xpose.msra.mxu0 0.0
        %923 = vmatprep.subr.mxu0 0.0
        %924 = vmatpush2.xpose.msra.mxu0 0.0
        %925 = vmatprep.subr.mxu0 0.0
        %926 = vmatpush2.xpose.msra.mxu0 0.0
        %927 = vmatprep.subr.mxu0 0.0
        %928 = vmatpush2.xpose.msra.mxu0 0.0
        %929 = vmatprep.subr.mxu0 0.0
        %930 = vmatpush2.xpose.msra.mxu0 0.0
        %931 = vmatprep.subr.mxu0 0.0
        %932 = vmatpush2.xpose.msra.mxu0 0.0
        %933 = vmatprep.subr.mxu0 0.0
        %934 = vmatpush2.xpose.msra.mxu0 0.0
        %935 = vmatprep.subr.mxu0 0.0
        %936 = vmatpush2.xpose.msra.mxu0 0.0
        %937 = vmatprep.subr.mxu0 0.0
        %938 = vmatpush2.xpose.msra.mxu0 0.0
        %939 = vmatprep.mubr.f32.mxu0 0.0
        %940 = vmatmul.mubr.f32.gmra.mxu0 %v871
        %v941 = vpop.f32.mrf.mxu0
        %v942 = vadd.f32 %v771, %v941
        %v943 = vpop.f32.mrf.mxu0
        %944 = vdwg.mxu0
        %vm945 = vcmask 64512
        %v946 = vsel %vm945, %v942, -inf
        %947 = vmax.xlane.f32.xlu0 %v946
        %v948 = vpop.xlane.xlu0 %947
        %v949 = vsub.f32 %v942, %v948
        %v950 = vmul.f32 %v949, 1.442695
        %v951 = vpow.pop %v950
        %v952 = vsel %vm945, %v951, 0.0
        %953 = vadd.xlane.f32.xlu0 %v952
        %v954 = vpop.xlane.xlu0 %953
        %v955 = vrcp.pop %v954
        %v956 = vmul.f32 %v951, %v955
        %957 = vrot.lane.b32.xlu0 %v864, 64
        %v958 = vpop.permute.xlu0 %957
        %v961 = vsel %vm945, %v956, 0
        %963 = vmatprep.subr.mxu0 0.0
        %964 = vmatpush1.msra.mxu0 0.0
        %965 = vmatprep.subr.mxu0 0.0
        %966 = vmatpush1.msra.mxu0 0.0
        %967 = vmatprep.subr.mxu0 0.0
        %968 = vmatpush1.msra.mxu0 0.0
        %969 = vmatprep.subr.mxu0 0.0
        %970 = vmatpush1.msra.mxu0 0.0
        %971 = vmatprep.subr.mxu0 0.0
        %972 = vmatpush1.msra.mxu0 0.0
        %973 = vmatprep.subr.mxu0 0.0
        %974 = vmatpush1.msra.mxu0 0.0
        %975 = vmatprep.subr.mxu0 0.0
        %976 = vmatpush1.msra.mxu0 0.0
        %977 = vmatprep.subr.mxu0 0.0
        %978 = vmatpush1.msra.mxu0 0.0
        %979 = vmatprep.subr.mxu0 0.0
        %980 = vmatpush1.msra.mxu0 0.0
        %981 = vmatprep.subr.mxu0 0.0
        %982 = vmatpush1.msra.mxu0 0.0
        %983 = vmatprep.subr.mxu0 0.0
        %984 = vmatpush1.msra.mxu0 0.0
        %985 = vmatprep.subr.mxu0 0.0
        %986 = vmatpush1.msra.mxu0 0.0
        %987 = vmatprep.subr.mxu0 0.0
        %988 = vmatpush1.msra.mxu0 0.0
        %989 = vmatprep.subr.mxu0 0.0
        %990 = vmatpush1.msra.mxu0 0.0
        %991 = vmatprep.subr.mxu0 0.0
        %992 = vmatpush1.msra.mxu0 0.0
        %993 = vmatprep.subr.mxu0 0.0
        %994 = vmatpush1.msra.mxu0 %v958
        %995 = vmatprep.subr.mxu0 0.0
        %996 = vmatpush2.msra.mxu0 0.0
        %997 = vmatprep.subr.mxu0 0.0
        %998 = vmatpush2.msra.mxu0 0.0
        %999 = vmatprep.subr.mxu0 0.0
        %1000 = vmatpush2.msra.mxu0 0.0
        %1001 = vmatprep.subr.mxu0 0.0
        %1002 = vmatpush2.msra.mxu0 0.0
        %1003 = vmatprep.subr.mxu0 0.0
        %1004 = vmatpush2.msra.mxu0 0.0
        %1005 = vmatprep.subr.mxu0 0.0
        %1006 = vmatpush2.msra.mxu0 0.0
        %1007 = vmatprep.subr.mxu0 0.0
        %1008 = vmatpush2.msra.mxu0 0.0
        %1009 = vmatprep.subr.mxu0 0.0
        %1010 = vmatpush2.msra.mxu0 0.0
        %1011 = vmatprep.subr.mxu0 0.0
        %1012 = vmatpush2.msra.mxu0 0.0
        %1013 = vmatprep.subr.mxu0 0.0
        %1014 = vmatpush2.msra.mxu0 0.0
        %1015 = vmatprep.subr.mxu0 0.0
        %1016 = vmatpush2.msra.mxu0 0.0
        %1017 = vmatprep.subr.mxu0 0.0
        %1018 = vmatpush2.msra.mxu0 0.0
        %1019 = vmatprep.subr.mxu0 0.0
        %1020 = vmatpush2.msra.mxu0 0.0
        %1021 = vmatprep.subr.mxu0 0.0
        %1022 = vmatpush2.msra.mxu0 0.0
        %1023 = vmatprep.subr.mxu0 0.0
        %1024 = vmatpush2.msra.mxu0 0.0
        %1025 = vmatprep.subr.mxu0 0.0
        %1026 = vmatpush2.msra.mxu0 0.0
        %1027 = vmatprep.mubr.f32.mxu0 0.0
        %1028 = vmatmul.mubr.f32.gmra.mxu0 %v961
        %v1029 = vpop.f32.mrf.mxu0
        %v1030 = vadd.f32 0.0, %v1029
        %v1031 = vpop.f32.mrf.mxu0
        %1032 = vdwg.mxu0
        %1033 = vrot.lane.b32.xlu0 %v864, 112
        %v1034 = vpop.permute.xlu0 %1033
        %1035 = vrot.lane.b32.xlu0 %v864, 80
        %v1036 = vpop.permute.xlu0 %1035
        %v1037 = vsel %vm870, %v1034, 0
        %v1039 = vsel %vm870, %v1036, 0
        %1041 = vmatprep.subr.mxu0 0.0
        %1042 = vmatpush1.xpose.msra.mxu0 0.0
        %1043 = vmatprep.subr.mxu0 0.0
        %1044 = vmatpush1.xpose.msra.mxu0 0.0
        %1045 = vmatprep.subr.mxu0 0.0
        %1046 = vmatpush1.xpose.msra.mxu0 0.0
        %1047 = vmatprep.subr.mxu0 0.0
        %1048 = vmatpush1.xpose.msra.mxu0 0.0
        %1049 = vmatprep.subr.mxu0 0.0
        %1050 = vmatpush1.xpose.msra.mxu0 0.0
        %1051 = vmatprep.subr.mxu0 0.0
        %1052 = vmatpush1.xpose.msra.mxu0 0.0
        %1053 = vmatprep.subr.mxu0 0.0
        %1054 = vmatpush1.xpose.msra.mxu0 0.0
        %1055 = vmatprep.subr.mxu0 0.0
        %1056 = vmatpush1.xpose.msra.mxu0 0.0
        %1057 = vmatprep.subr.mxu0 0.0
        %1058 = vmatpush1.xpose.msra.mxu0 0.0
        %1059 = vmatprep.subr.mxu0 0.0
        %1060 = vmatpush1.xpose.msra.mxu0 0.0
        %1061 = vmatprep.subr.mxu0 0.0
        %1062 = vmatpush1.xpose.msra.mxu0 0.0
        %1063 = vmatprep.subr.mxu0 0.0
        %1064 = vmatpush1.xpose.msra.mxu0 0.0
        %1065 = vmatprep.subr.mxu0 0.0
        %1066 = vmatpush1.xpose.msra.mxu0 0.0
        %1067 = vmatprep.subr.mxu0 0.0
        %1068 = vmatpush1.xpose.msra.mxu0 0.0
        %1069 = vmatprep.subr.mxu0 0.0
        %1070 = vmatpush1.xpose.msra.mxu0 0.0
        %1071 = vmatprep.subr.mxu0 0.0
        %1072 = vmatpush1.xpose.msra.mxu0 %v1039
        %1073 = vmatprep.subr.mxu0 0.0
        %1074 = vmatpush2.xpose.msra.mxu0 0.0
        %1075 = vmatprep.subr.mxu0 0.0
        %1076 = vmatpush2.xpose.msra.mxu0 0.0
        %1077 = vmatprep.subr.mxu0 0.0
        %1078 = vmatpush2.xpose.msra.mxu0 0.0
        %1079 = vmatprep.subr.mxu0 0.0
        %1080 = vmatpush2.xpose.msra.mxu0 0.0
        %1081 = vmatprep.subr.mxu0 0.0
        %1082 = vmatpush2.xpose.msra.mxu0 0.0
        %1083 = vmatprep.subr.mxu0 0.0
        %1084 = vmatpush2.xpose.msra.mxu0 0.0
        %1085 = vmatprep.subr.mxu0 0.0
        %1086 = vmatpush2.xpose.msra.mxu0 0.0
        %1087 = vmatprep.subr.mxu0 0.0
        %1088 = vmatpush2.xpose.msra.mxu0 0.0
        %1089 = vmatprep.subr.mxu0 0.0
        %1090 = vmatpush2.xpose.msra.mxu0 0.0
        %1091 = vmatprep.subr.mxu0 0.0
        %1092 = vmatpush2.xpose.msra.mxu0 0.0
        %1093 = vmatprep.subr.mxu0 0.0
        %1094 = vmatpush2.xpose.msra.mxu0 0.0
        %1095 = vmatprep.subr.mxu0 0.0
        %1096 = vmatpush2.xpose.msra.mxu0 0.0
        %1097 = vmatprep.subr.mxu0 0.0
        %1098 = vmatpush2.xpose.msra.mxu0 0.0
        %1099 = vmatprep.subr.mxu0 0.0
        %1100 = vmatpush2.xpose.msra.mxu0 0.0
        %1101 = vmatprep.subr.mxu0 0.0
        %1102 = vmatpush2.xpose.msra.mxu0 0.0
        %1103 = vmatprep.subr.mxu0 0.0
        %1104 = vmatpush2.xpose.msra.mxu0 0.0
        %1105 = vmatprep.mubr.f32.mxu0 0.0
        %1106 = vmatmul.mubr.f32.gmra.mxu0 %v1037
        %v1107 = vpop.f32.mrf.mxu0
        %v1108 = vadd.f32 %v771, %v1107
        %v1109 = vpop.f32.mrf.mxu0
        %1110 = vdwg.mxu0
        %v1111 = vsel %vm945, %v1108, -inf
        %1112 = vmax.xlane.f32.xlu0 %v1111
        %v1113 = vpop.xlane.xlu0 %1112
        %v1114 = vsub.f32 %v1108, %v1113
        %v1115 = vmul.f32 %v1114, 1.442695
        %v1116 = vpow.pop %v1115
        %v1117 = vsel %vm945, %v1116, 0.0
        %1118 = vadd.xlane.f32.xlu0 %v1117
        %v1119 = vpop.xlane.xlu0 %1118
        %v1120 = vrcp.pop %v1119
        %v1121 = vmul.f32 %v1116, %v1120
        %1122 = vrot.lane.b32.xlu0 %v864, 48
        %v1123 = vpop.permute.xlu0 %1122
        %v1126 = vsel %vm945, %v1121, 0
        %1128 = vmatprep.subr.mxu0 0.0
        %1129 = vmatpush1.msra.mxu0 0.0
        %1130 = vmatprep.subr.mxu0 0.0
        %1131 = vmatpush1.msra.mxu0 0.0
        %1132 = vmatprep.subr.mxu0 0.0
        %1133 = vmatpush1.msra.mxu0 0.0
        %1134 = vmatprep.subr.mxu0 0.0
        %1135 = vmatpush1.msra.mxu0 0.0
        %1136 = vmatprep.subr.mxu0 0.0
        %1137 = vmatpush1.msra.mxu0 0.0
        %1138 = vmatprep.subr.mxu0 0.0
        %1139 = vmatpush1.msra.mxu0 0.0
        %1140 = vmatprep.subr.mxu0 0.0
        %1141 = vmatpush1.msra.mxu0 0.0
        %1142 = vmatprep.subr.mxu0 0.0
        %1143 = vmatpush1.msra.mxu0 0.0
        %1144 = vmatprep.subr.mxu0 0.0
        %1145 = vmatpush1.msra.mxu0 0.0
        %1146 = vmatprep.subr.mxu0 0.0
        %1147 = vmatpush1.msra.mxu0 0.0
        %1148 = vmatprep.subr.mxu0 0.0
        %1149 = vmatpush1.msra.mxu0 0.0
        %1150 = vmatprep.subr.mxu0 0.0
        %1151 = vmatpush1.msra.mxu0 0.0
        %1152 = vmatprep.subr.mxu0 0.0
        %1153 = vmatpush1.msra.mxu0 0.0
        %1154 = vmatprep.subr.mxu0 0.0
        %1155 = vmatpush1.msra.mxu0 0.0
        %1156 = vmatprep.subr.mxu0 0.0
        %1157 = vmatpush1.msra.mxu0 0.0
        %1158 = vmatprep.subr.mxu0 0.0
        %1159 = vmatpush1.msra.mxu0 %v1123
        %1160 = vmatprep.subr.mxu0 0.0
        %1161 = vmatpush2.msra.mxu0 0.0
        %1162 = vmatprep.subr.mxu0 0.0
        %1163 = vmatpush2.msra.mxu0 0.0
        %1164 = vmatprep.subr.mxu0 0.0
        %1165 = vmatpush2.msra.mxu0 0.0
        %1166 = vmatprep.subr.mxu0 0.0
        %1167 = vmatpush2.msra.mxu0 0.0
        %1168 = vmatprep.subr.mxu0 0.0
        %1169 = vmatpush2.msra.mxu0 0.0
        %1170 = vmatprep.subr.mxu0 0.0
        %1171 = vmatpush2.msra.mxu0 0.0
        %1172 = vmatprep.subr.mxu0 0.0
        %1173 = vmatpush2.msra.mxu0 0.0
        %1174 = vmatprep.subr.mxu0 0.0
        %1175 = vmatpush2.msra.mxu0 0.0
        %1176 = vmatprep.subr.mxu0 0.0
        %1177 = vmatpush2.msra.mxu0 0.0
        %1178 = vmatprep.subr.mxu0 0.0
        %1179 = vmatpush2.msra.mxu0 0.0
        %1180 = vmatprep.subr.mxu0 0.0
        %1181 = vmatpush2.msra.mxu0 0.0
        %1182 = vmatprep.subr.mxu0 0.0
        %1183 = vmatpush2.msra.mxu0 0.0
        %1184 = vmatprep.subr.mxu0 0.0
        %1185 = vmatpush2.msra.mxu0 0.0
        %1186 = vmatprep.subr.mxu0 0.0
        %1187 = vmatpush2.msra.mxu0 0.0
        %1188 = vmatprep.subr.mxu0 0.0
        %1189 = vmatpush2.msra.mxu0 0.0
        %1190 = vmatprep.subr.mxu0 0.0
        %1191 = vmatpush2.msra.mxu0 0.0
        %1192 = vmatprep.mubr.f32.mxu0 0.0
        %1193 = vmatmul.mubr.f32.gmra.mxu0 %v1126
        %v1194 = vpop.f32.mrf.mxu0
        %v1195 = vadd.f32 0.0, %v1194
        %v1196 = vpop.f32.mrf.mxu0
        %1197 = vdwg.mxu0
        %1199 = vrot.lane.b32.xlu0 %v1195, 16
        %v1200 = vpop.permute.xlu0 %1199
        %v1202 = vsel %vm870, %v1030, %v1200
        %v1203 = vld [vmem:[#allocation7] sm:$0xff]
        %v1204 = vld [vmem:[#allocation7 + $0x8] sm:$0xff]
        %v1205 = vld [vmem:[#allocation7 + $0x10] sm:$0xff]
        %v1206 = vld [vmem:[#allocation7 + $0x18] sm:$0xff]
        %v1208 = vsel %vm774, %v1202, 0
        %1210 = vmatprep.subr.mxu0 0.0
        %1211 = vmatpush1.msra.mxu0 0.0
        %1212 = vmatprep.subr.mxu0 0.0
        %1213 = vmatpush1.msra.mxu0 0.0
        %1214 = vmatprep.subr.mxu0 0.0
        %1215 = vmatpush1.msra.mxu0 0.0
        %1216 = vmatprep.subr.mxu0 0.0
        %1217 = vmatpush1.msra.mxu0 0.0
        %1218 = vmatprep.subr.mxu0 0.0
        %1219 = vmatpush1.msra.mxu0 0.0
        %1220 = vmatprep.subr.mxu0 0.0
        %1221 = vmatpush1.msra.mxu0 0.0
        %1222 = vmatprep.subr.mxu0 0.0
        %1223 = vmatpush1.msra.mxu0 0.0
        %1224 = vmatprep.subr.mxu0 0.0
        %1225 = vmatpush1.msra.mxu0 0.0
        %1226 = vmatprep.subr.mxu0 0.0
        %1227 = vmatpush1.msra.mxu0 0.0
        %1228 = vmatprep.subr.mxu0 0.0
        %1229 = vmatpush1.msra.mxu0 0.0
        %1230 = vmatprep.subr.mxu0 0.0
        %1231 = vmatpush1.msra.mxu0 0.0
        %1232 = vmatprep.subr.mxu0 0.0
        %1233 = vmatpush1.msra.mxu0 0.0
        %1234 = vmatprep.subr.mxu0 0.0
        %1235 = vmatpush1.msra.mxu0 %v1206
        %1236 = vmatprep.subr.mxu0 0.0
        %1237 = vmatpush1.msra.mxu0 %v1205
        %1238 = vmatprep.subr.mxu0 0.0
        %1239 = vmatpush1.msra.mxu0 %v1204
        %1240 = vmatprep.subr.mxu0 0.0
        %1241 = vmatpush1.msra.mxu0 %v1203
        %1242 = vmatprep.subr.mxu0 0.0
        %1243 = vmatpush2.msra.mxu0 0.0
        %1244 = vmatprep.subr.mxu0 0.0
        %1245 = vmatpush2.msra.mxu0 0.0
        %1246 = vmatprep.subr.mxu0 0.0
        %1247 = vmatpush2.msra.mxu0 0.0
        %1248 = vmatprep.subr.mxu0 0.0
        %1249 = vmatpush2.msra.mxu0 0.0
        %1250 = vmatprep.subr.mxu0 0.0
        %1251 = vmatpush2.msra.mxu0 0.0
        %1252 = vmatprep.subr.mxu0 0.0
        %1253 = vmatpush2.msra.mxu0 0.0
        %1254 = vmatprep.subr.mxu0 0.0
        %1255 = vmatpush2.msra.mxu0 0.0
        %1256 = vmatprep.subr.mxu0 0.0
        %1257 = vmatpush2.msra.mxu0 0.0
        %1258 = vmatprep.subr.mxu0 0.0
        %1259 = vmatpush2.msra.mxu0 0.0
        %1260 = vmatprep.subr.mxu0 0.0
        %1261 = vmatpush2.msra.mxu0 0.0
        %1262 = vmatprep.subr.mxu0 0.0
        %1263 = vmatpush2.msra.mxu0 0.0
        %1264 = vmatprep.subr.mxu0 0.0
        %1265 = vmatpush2.msra.mxu0 0.0
        %1266 = vmatprep.subr.mxu0 0.0
        %1267 = vmatpush2.msra.mxu0 0.0
        %1268 = vmatprep.subr.mxu0 0.0
        %1269 = vmatpush2.msra.mxu0 0.0
        %1270 = vmatprep.subr.mxu0 0.0
        %1271 = vmatpush2.msra.mxu0 0.0
        %1272 = vmatprep.subr.mxu0 0.0
        %1273 = vmatpush2.msra.mxu0 0.0
        %1274 = vmatprep.mubr.f32.mxu0 0.0
        %1275 = vmatmul.mubr.f32.gmra.mxu0 %v1208
        %v1276 = vpop.f32.mrf.mxu0
        %v1277 = vadd.f32 0.0, %v1276
        %v1278 = vpop.f32.mrf.mxu0
        %1279 = vdwg.mxu0
        %v1280 = vadd.f32 %v764, %v1277
        %v1282 = vld [vmem:[%s6] sm:$0x1]
        %v1283 = vmul.f32 %v1280, %v1280
        %v1284 = vsel %vm774, %v1283, 0.0
        %1285 = vadd.xlane.f32.xlu0 %v1284
        %v1286 = vpop.xlane.xlu0 %1285
        %v1287 = vmul.f32 %v1286, %v778
        %v1288 = vadd.f32 %v1287, 1e-06
        %v1289 = vrsqrt.pop %v1288
        %v1290 = vmul.f32 %v1280, %v1289
        %v1292 = vlaneseq
        %v1293 = vshrl.u32 %v1292, 7
        %v1294 = vsub.s32 0, %v1293
        %v1295 = vrot.slane %v1282, %v1294
        %v1297 = vmul.f32 %v1290, %v1295
        %v1298 = vld [vmem:[#allocation8] sm:$0xff]
        %v1299 = vld [vmem:[#allocation8 + $0x8] sm:$0xff]
        %v1300 = vld [vmem:[#allocation8 + $0x10] sm:$0xff]
        %v1301 = vld [vmem:[#allocation8 + $0x18] sm:$0xff]
        %v1303 = vsel %vm774, %v1297, 0
        %1305 = vmatprep.subr.mxu0 0.0
        %1306 = vmatpush1.msra.mxu0 0.0
        %1307 = vmatprep.subr.mxu0 0.0
        %1308 = vmatpush1.msra.mxu0 0.0
        %1309 = vmatprep.subr.mxu0 0.0
        %1310 = vmatpush1.msra.mxu0 0.0
        %1311 = vmatprep.subr.mxu0 0.0
        %1312 = vmatpush1.msra.mxu0 0.0
        %1313 = vmatprep.subr.mxu0 0.0
        %1314 = vmatpush1.msra.mxu0 0.0
        %1315 = vmatprep.subr.mxu0 0.0
        %1316 = vmatpush1.msra.mxu0 0.0
        %1317 = vmatprep.subr.mxu0 0.0
        %1318 = vmatpush1.msra.mxu0 0.0
        %1319 = vmatprep.subr.mxu0 0.0
        %1320 = vmatpush1.msra.mxu0 0.0
        %1321 = vmatprep.subr.mxu0 0.0
        %1322 = vmatpush1.msra.mxu0 0.0
        %1323 = vmatprep.subr.mxu0 0.0
        %1324 = vmatpush1.msra.mxu0 0.0
        %1325 = vmatprep.subr.mxu0 0.0
        %1326 = vmatpush1.msra.mxu0 0.0
        %1327 = vmatprep.subr.mxu0 0.0
        %1328 = vmatpush1.msra.mxu0 0.0
        %1329 = vmatprep.subr.mxu0 0.0
        %1330 = vmatpush1.msra.mxu0 %v1301
        %1331 = vmatprep.subr.mxu0 0.0
        %1332 = vmatpush1.msra.mxu0 %v1300
        %1333 = vmatprep.subr.mxu0 0.0
        %1334 = vmatpush1.msra.mxu0 %v1299
        %1335 = vmatprep.subr.mxu0 0.0
        %1336 = vmatpush1.msra.mxu0 %v1298
        %1337 = vmatprep.subr.mxu0 0.0
        %1338 = vmatpush2.msra.mxu0 0.0
        %1339 = vmatprep.subr.mxu0 0.0
        %1340 = vmatpush2.msra.mxu0 0.0
        %1341 = vmatprep.subr.mxu0 0.0
        %1342 = vmatpush2.msra.mxu0 0.0
        %1343 = vmatprep.subr.mxu0 0.0
        %1344 = vmatpush2.msra.mxu0 0.0
        %1345 = vmatprep.subr.mxu0 0.0
        %1346 = vmatpush2.msra.mxu0 0.0
        %1347 = vmatprep.subr.mxu0 0.0
        %1348 = vmatpush2.msra.mxu0 0.0
        %1349 = vmatprep.subr.mxu0 0.0
        %1350 = vmatpush2.msra.mxu0 0.0
        %1351 = vmatprep.subr.mxu0 0.0
        %1352 = vmatpush2.msra.mxu0 0.0
        %1353 = vmatprep.subr.mxu0 0.0
        %1354 = vmatpush2.msra.mxu0 0.0
        %1355 = vmatprep.subr.mxu0 0.0
        %1356 = vmatpush2.msra.mxu0 0.0
        %1357 = vmatprep.subr.mxu0 0.0
        %1358 = vmatpush2.msra.mxu0 0.0
        %1359 = vmatprep.subr.mxu0 0.0
        %1360 = vmatpush2.msra.mxu0 0.0
        %1361 = vmatprep.subr.mxu0 0.0
        %1362 = vmatpush2.msra.mxu0 0.0
        %1363 = vmatprep.subr.mxu0 0.0
        %1364 = vmatpush2.msra.mxu0 0.0
        %1365 = vmatprep.subr.mxu0 0.0
        %1366 = vmatpush2.msra.mxu0 0.0
        %1367 = vmatprep.subr.mxu0 0.0
        %1368 = vmatpush2.msra.mxu0 0.0
        %1369 = vmatprep.mubr.f32.mxu0 0.0
        %1370 = vmatmul.mubr.f32.gmra.mxu0 %v1303
        %v1371 = vpop.f32.mrf.mxu0
        %v1372 = vadd.f32 0.0, %v1371
        %v1373 = vpop.f32.mrf.mxu0
        %1374 = vdwg.mxu0
        %v1375 = vld [vmem:[#allocation10] sm:$0xff]
        %v1376 = vld [vmem:[#allocation10 + $0x8] sm:$0xff]
        %v1377 = vld [vmem:[#allocation10 + $0x10] sm:$0xff]
        %v1378 = vld [vmem:[#allocation10 + $0x18] sm:$0xff]
        %v1380 = vsel %vm774, %v767, 0
        %1382 = vmatprep.subr.mxu0 0.0
        %1383 = vmatpush1.msra.mxu0 0.0
        %1384 = vmatprep.subr.mxu0 0.0
        %1385 = vmatpush1.msra.mxu0 0.0
        %1386 = vmatprep.subr.mxu0 0.0
        %1387 = vmatpush1.msra.mxu0 0.0
        %1388 = vmatprep.subr.mxu0 0.0
        %1389 = vmatpush1.msra.mxu0 0.0
        %1390 = vmatprep.subr.mxu0 0.0
        %1391 = vmatpush1.msra.mxu0 0.0
        %1392 = vmatprep.subr.mxu0 0.0
        %1393 = vmatpush1.msra.mxu0 0.0
        %1394 = vmatprep.subr.mxu0 0.0
        %1395 = vmatpush1.msra.mxu0 0.0
        %1396 = vmatprep.subr.mxu0 0.0
        %1397 = vmatpush1.msra.mxu0 0.0
        %1398 = vmatprep.subr.mxu0 0.0
        %1399 = vmatpush1.msra.mxu0 0.0
        %1400 = vmatprep.subr.mxu0 0.0
        %1401 = vmatpush1.msra.mxu0 0.0
        %1402 = vmatprep.subr.mxu0 0.0
        %1403 = vmatpush1.msra.mxu0 0.0
        %1404 = vmatprep.subr.mxu0 0.0
        %1405 = vmatpush1.msra.mxu0 0.0
        %1406 = vmatprep.subr.mxu0 0.0
        %1407 = vmatpush1.msra.mxu0 %v1378
        %1408 = vmatprep.subr.mxu0 0.0
        %1409 = vmatpush1.msra.mxu0 %v1377
        %1410 = vmatprep.subr.mxu0 0.0
        %1411 = vmatpush1.msra.mxu0 %v1376
        %1412 = vmatprep.subr.mxu0 0.0
        %1413 = vmatpush1.msra.mxu0 %v1375
        %1414 = vmatprep.subr.mxu0 0.0
        %1415 = vmatpush2.msra.mxu0 0.0
        %1416 = vmatprep.subr.mxu0 0.0
        %1417 = vmatpush2.msra.mxu0 0.0
        %1418 = vmatprep.subr.mxu0 0.0
        %1419 = vmatpush2.msra.mxu0 0.0
        %1420 = vmatprep.subr.mxu0 0.0
        %1421 = vmatpush2.msra.mxu0 0.0
        %1422 = vmatprep.subr.mxu0 0.0
        %1423 = vmatpush2.msra.mxu0 0.0
        %1424 = vmatprep.subr.mxu0 0.0
        %1425 = vmatpush2.msra.mxu0 0.0
        %1426 = vmatprep.subr.mxu0 0.0
        %1427 = vmatpush2.msra.mxu0 0.0
        %1428 = vmatprep.subr.mxu0 0.0
        %1429 = vmatpush2.msra.mxu0 0.0
        %1430 = vmatprep.subr.mxu0 0.0
        %1431 = vmatpush2.msra.mxu0 0.0
        %1432 = vmatprep.subr.mxu0 0.0
        %1433 = vmatpush2.msra.mxu0 0.0
        %1434 = vmatprep.subr.mxu0 0.0
        %1435 = vmatpush2.msra.mxu0 0.0
        %1436 = vmatprep.subr.mxu0 0.0
        %1437 = vmatpush2.msra.mxu0 0.0
        %1438 = vmatprep.subr.mxu0 0.0
        %1439 = vmatpush2.msra.mxu0 0.0
        %1440 = vmatprep.subr.mxu0 0.0
        %1441 = vmatpush2.msra.mxu0 0.0
        %1442 = vmatprep.subr.mxu0 0.0
        %1443 = vmatpush2.msra.mxu0 0.0
        %1444 = vmatprep.subr.mxu0 0.0
        %1445 = vmatpush2.msra.mxu0 0.0
        %1446 = vmatprep.mubr.f32.mxu0 0.0
        %1447 = vmatmul.mubr.f32.gmra.mxu0 %v1380
        %v1448 = vpop.f32.mrf.mxu0
        %v1449 = vadd.f32 0.0, %v1448
        %v1450 = vpop.f32.mrf.mxu0
        %1451 = vdwg.mxu0
        %v1453 = vsel %vm870, %v1372, 0
        %v1456 = vsel %vm870, %v1449, 0
        %1458 = vmatprep.subr.mxu0 0.0
        %1459 = vmatpush1.xpose.msra.mxu0 0.0
        %1460 = vmatprep.subr.mxu0 0.0
        %1461 = vmatpush1.xpose.msra.mxu0 0.0
        %1462 = vmatprep.subr.mxu0 0.0
        %1463 = vmatpush1.xpose.msra.mxu0 0.0
        %1464 = vmatprep.subr.mxu0 0.0
        %1465 = vmatpush1.xpose.msra.mxu0 0.0
        %1466 = vmatprep.subr.mxu0 0.0
        %1467 = vmatpush1.xpose.msra.mxu0 0.0
        %1468 = vmatprep.subr.mxu0 0.0
        %1469 = vmatpush1.xpose.msra.mxu0 0.0
        %1470 = vmatprep.subr.mxu0 0.0
        %1471 = vmatpush1.xpose.msra.mxu0 0.0
        %1472 = vmatprep.subr.mxu0 0.0
        %1473 = vmatpush1.xpose.msra.mxu0 0.0
        %1474 = vmatprep.subr.mxu0 0.0
        %1475 = vmatpush1.xpose.msra.mxu0 0.0
        %1476 = vmatprep.subr.mxu0 0.0
        %1477 = vmatpush1.xpose.msra.mxu0 0.0
        %1478 = vmatprep.subr.mxu0 0.0
        %1479 = vmatpush1.xpose.msra.mxu0 0.0
        %1480 = vmatprep.subr.mxu0 0.0
        %1481 = vmatpush1.xpose.msra.mxu0 0.0
        %1482 = vmatprep.subr.mxu0 0.0
        %1483 = vmatpush1.xpose.msra.mxu0 0.0
        %1484 = vmatprep.subr.mxu0 0.0
        %1485 = vmatpush1.xpose.msra.mxu0 0.0
        %1486 = vmatprep.subr.mxu0 0.0
        %1487 = vmatpush1.xpose.msra.mxu0 0.0
        %1488 = vmatprep.subr.mxu0 0.0
        %1489 = vmatpush1.xpose.msra.mxu0 %v1456
        %1490 = vmatprep.subr.mxu0 0.0
        %1491 = vmatpush2.xpose.msra.mxu0 0.0
        %1492 = vmatprep.subr.mxu0 0.0
        %1493 = vmatpush2.xpose.msra.mxu0 0.0
        %1494 = vmatprep.subr.mxu0 0.0
        %1495 = vmatpush2.xpose.msra.mxu0 0.0
        %1496 = vmatprep.subr.mxu0 0.0
        %1497 = vmatpush2.xpose.msra.mxu0 0.0
        %1498 = vmatprep.subr.mxu0 0.0
        %1499 = vmatpush2.xpose.msra.mxu0 0.0
        %1500 = vmatprep.subr.mxu0 0.0
        %1501 = vmatpush2.xpose.msra.mxu0 0.0
        %1502 = vmatprep.subr.mxu0 0.0
        %1503 = vmatpush2.xpose.msra.mxu0 0.0
        %1504 = vmatprep.subr.mxu0 0.0
        %1505 = vmatpush2.xpose.msra.mxu0 0.0
        %1506 = vmatprep.subr.mxu0 0.0
        %1507 = vmatpush2.xpose.msra.mxu0 0.0
        %1508 = vmatprep.subr.mxu0 0.0
        %1509 = vmatpush2.xpose.msra.mxu0 0.0
        %1510 = vmatprep.subr.mxu0 0.0
        %1511 = vmatpush2.xpose.msra.mxu0 0.0
        %1512 = vmatprep.subr.mxu0 0.0
        %1513 = vmatpush2.xpose.msra.mxu0 0.0
        %1514 = vmatprep.subr.mxu0 0.0
        %1515 = vmatpush2.xpose.msra.mxu0 0.0
        %1516 = vmatprep.subr.mxu0 0.0
        %1517 = vmatpush2.xpose.msra.mxu0 0.0
        %1518 = vmatprep.subr.mxu0 0.0
        %1519 = vmatpush2.xpose.msra.mxu0 0.0
        %1520 = vmatprep.subr.mxu0 0.0
        %1521 = vmatpush2.xpose.msra.mxu0 0.0
        %1522 = vmatprep.mubr.f32.mxu0 0.0
        %1523 = vmatmul.mubr.f32.gmra.mxu0 %v1453
        %v1524 = vpop.f32.mrf.mxu0
        %v1525 = vadd.f32 0.0, %v1524
        %v1526 = vpop.f32.mrf.mxu0
        %1527 = vdwg.mxu0
        %v1528 = vsel %vm945, %v1525, -inf
        %1529 = vmax.xlane.f32.xlu0 %v1528
        %v1530 = vpop.xlane.xlu0 %1529
        %v1531 = vsub.f32 %v1525, %v1530
        %v1532 = vmul.f32 %v1531, 1.442695
        %v1533 = vpow.pop %v1532
        %v1534 = vsel %vm945, %v1533, 0.0
        %1535 = vadd.xlane.f32.xlu0 %v1534
        %v1536 = vpop.xlane.xlu0 %1535
        %v1537 = vrcp.pop %v1536
        %v1538 = vmul.f32 %v1533, %v1537
        %1539 = vrot.lane.b32.xlu0 %v1449, 96
        %v1540 = vpop.permute.xlu0 %1539
        %v1543 = vsel %vm945, %v1538, 0
        %1545 = vmatprep.subr.mxu0 0.0
        %1546 = vmatpush1.msra.mxu0 0.0
        %1547 = vmatprep.subr.mxu0 0.0
        %1548 = vmatpush1.msra.mxu0 0.0
        %1549 = vmatprep.subr.mxu0 0.0
        %1550 = vmatpush1.msra.mxu0 0.0
        %1551 = vmatprep.subr.mxu0 0.0
        %1552 = vmatpush1.msra.mxu0 0.0
        %1553 = vmatprep.subr.mxu0 0.0
        %1554 = vmatpush1.msra.mxu0 0.0
        %1555 = vmatprep.subr.mxu0 0.0
        %1556 = vmatpush1.msra.mxu0 0.0
        %1557 = vmatprep.subr.mxu0 0.0
        %1558 = vmatpush1.msra.mxu0 0.0
        %1559 = vmatprep.subr.mxu0 0.0
        %1560 = vmatpush1.msra.mxu0 0.0
        %1561 = vmatprep.subr.mxu0 0.0
        %1562 = vmatpush1.msra.mxu0 0.0
        %1563 = vmatprep.subr.mxu0 0.0
        %1564 = vmatpush1.msra.mxu0 0.0
        %1565 = vmatprep.subr.mxu0 0.0
        %1566 = vmatpush1.msra.mxu0 0.0
        %1567 = vmatprep.subr.mxu0 0.0
        %1568 = vmatpush1.msra.mxu0 0.0
        %1569 = vmatprep.subr.mxu0 0.0
        %1570 = vmatpush1.msra.mxu0 0.0
        %1571 = vmatprep.subr.mxu0 0.0
        %1572 = vmatpush1.msra.mxu0 0.0
        %1573 = vmatprep.subr.mxu0 0.0
        %1574 = vmatpush1.msra.mxu0 0.0
        %1575 = vmatprep.subr.mxu0 0.0
        %1576 = vmatpush1.msra.mxu0 %v1540
        %1577 = vmatprep.subr.mxu0 0.0
        %1578 = vmatpush2.msra.mxu0 0.0
        %1579 = vmatprep.subr.mxu0 0.0
        %1580 = vmatpush2.msra.mxu0 0.0
        %1581 = vmatprep.subr.mxu0 0.0
        %1582 = vmatpush2.msra.mxu0 0.0
        %1583 = vmatprep.subr.mxu0 0.0
        %1584 = vmatpush2.msra.mxu0 0.0
        %1585 = vmatprep.subr.mxu0 0.0
        %1586 = vmatpush2.msra.mxu0 0.0
        %1587 = vmatprep.subr.mxu0 0.0
        %1588 = vmatpush2.msra.mxu0 0.0
        %1589 = vmatprep.subr.mxu0 0.0
        %1590 = vmatpush2.msra.mxu0 0.0
        %1591 = vmatprep.subr.mxu0 0.0
        %1592 = vmatpush2.msra.mxu0 0.0
        %1593 = vmatprep.subr.mxu0 0.0
        %1594 = vmatpush2.msra.mxu0 0.0
        %1595 = vmatprep.subr.mxu0 0.0
        %1596 = vmatpush2.msra.mxu0 0.0
        %1597 = vmatprep.subr.mxu0 0.0
        %1598 = vmatpush2.msra.mxu0 0.0
        %1599 = vmatprep.subr.mxu0 0.0
        %1600 = vmatpush2.msra.mxu0 0.0
        %1601 = vmatprep.subr.mxu0 0.0
        %1602 = vmatpush2.msra.mxu0 0.0
        %1603 = vmatprep.subr.mxu0 0.0
        %1604 = vmatpush2.msra.mxu0 0.0
        %1605 = vmatprep.subr.mxu0 0.0
        %1606 = vmatpush2.msra.mxu0 0.0
        %1607 = vmatprep.subr.mxu0 0.0
        %1608 = vmatpush2.msra.mxu0 0.0
        %1609 = vmatprep.mubr.f32.mxu0 0.0
        %1610 = vmatmul.mubr.f32.gmra.mxu0 %v1543
        %v1611 = vpop.f32.mrf.mxu0
        %v1612 = vadd.f32 0.0, %v1611
        %v1613 = vpop.f32.mrf.mxu0
        %1614 = vdwg.mxu0
        %1615 = vrot.lane.b32.xlu0 %v1372, 112
        %v1616 = vpop.permute.xlu0 %1615
        %1617 = vrot.lane.b32.xlu0 %v1449, 112
        %v1618 = vpop.permute.xlu0 %1617
        %v1619 = vsel %vm870, %v1616, 0
        %v1621 = vsel %vm870, %v1618, 0
        %1623 = vmatprep.subr.mxu0 0.0
        %1624 = vmatpush1.xpose.msra.mxu0 0.0
        %1625 = vmatprep.subr.mxu0 0.0
        %1626 = vmatpush1.xpose.msra.mxu0 0.0
        %1627 = vmatprep.subr.mxu0 0.0
        %1628 = vmatpush1.xpose.msra.mxu0 0.0
        %1629 = vmatprep.subr.mxu0 0.0
        %1630 = vmatpush1.xpose.msra.mxu0 0.0
        %1631 = vmatprep.subr.mxu0 0.0
        %1632 = vmatpush1.xpose.msra.mxu0 0.0
        %1633 = vmatprep.subr.mxu0 0.0
        %1634 = vmatpush1.xpose.msra.mxu0 0.0
        %1635 = vmatprep.subr.mxu0 0.0
        %1636 = vmatpush1.xpose.msra.mxu0 0.0
        %1637 = vmatprep.subr.mxu0 0.0
        %1638 = vmatpush1.xpose.msra.mxu0 0.0
        %1639 = vmatprep.subr.mxu0 0.0
        %1640 = vmatpush1.xpose.msra.mxu0 0.0
        %1641 = vmatprep.subr.mxu0 0.0
        %1642 = vmatpush1.xpose.msra.mxu0 0.0
        %1643 = vmatprep.subr.mxu0 0.0
        %1644 = vmatpush1.xpose.msra.mxu0 0.0
        %1645 = vmatprep.subr.mxu0 0.0
        %1646 = vmatpush1.xpose.msra.mxu0 0.0
        %1647 = vmatprep.subr.mxu0 0.0
        %1648 = vmatpush1.xpose.msra.mxu0 0.0
        %1649 = vmatprep.subr.mxu0 0.0
        %1650 = vmatpush1.xpose.msra.mxu0 0.0
        %1651 = vmatprep.subr.mxu0 0.0
        %1652 = vmatpush1.xpose.msra.mxu0 0.0
        %1653 = vmatprep.subr.mxu0 0.0
        %1654 = vmatpush1.xpose.msra.mxu0 %v1621
        %1655 = vmatprep.subr.mxu0 0.0
        %1656 = vmatpush2.xpose.msra.mxu0 0.0
        %1657 = vmatprep.subr.mxu0 0.0
        %1658 = vmatpush2.xpose.msra.mxu0 0.0
        %1659 = vmatprep.subr.mxu0 0.0
        %1660 = vmatpush2.xpose.msra.mxu0 0.0
        %1661 = vmatprep.subr.mxu0 0.0
        %1662 = vmatpush2.xpose.msra.mxu0 0.0
        %1663 = vmatprep.subr.mxu0 0.0
        %1664 = vmatpush2.xpose.msra.mxu0 0.0
        %1665 = vmatprep.subr.mxu0 0.0
        %1666 = vmatpush2.xpose.msra.mxu0 0.0
        %1667 = vmatprep.subr.mxu0 0.0
        %1668 = vmatpush2.xpose.msra.mxu0 0.0
        %1669 = vmatprep.subr.mxu0 0.0
        %1670 = vmatpush2.xpose.msra.mxu0 0.0
        %1671 = vmatprep.subr.mxu0 0.0
        %1672 = vmatpush2.xpose.msra.mxu0 0.0
        %1673 = vmatprep.subr.mxu0 0.0
        %1674 = vmatpush2.xpose.msra.mxu0 0.0
        %1675 = vmatprep.subr.mxu0 0.0
        %1676 = vmatpush2.xpose.msra.mxu0 0.0
        %1677 = vmatprep.subr.mxu0 0.0
        %1678 = vmatpush2.xpose.msra.mxu0 0.0
        %1679 = vmatprep.subr.mxu0 0.0
        %1680 = vmatpush2.xpose.msra.mxu0 0.0
        %1681 = vmatprep.subr.mxu0 0.0
        %1682 = vmatpush2.xpose.msra.mxu0 0.0
        %1683 = vmatprep.subr.mxu0 0.0
        %1684 = vmatpush2.xpose.msra.mxu0 0.0
        %1685 = vmatprep.subr.mxu0 0.0
        %1686 = vmatpush2.xpose.msra.mxu0 0.0
        %1687 = vmatprep.mubr.f32.mxu0 0.0
        %1688 = vmatmul.mubr.f32.gmra.mxu0 %v1619
        %v1689 = vpop.f32.mrf.mxu0
        %v1690 = vadd.f32 0.0, %v1689
        %v1691 = vpop.f32.mrf.mxu0
        %1692 = vdwg.mxu0
        %v1693 = vsel %vm945, %v1690, -inf
        %1694 = vmax.xlane.f32.xlu0 %v1693
        %v1695 = vpop.xlane.xlu0 %1694
        %v1696 = vsub.f32 %v1690, %v1695
        %v1697 = vmul.f32 %v1696, 1.442695
        %v1698 = vpow.pop %v1697
        %v1699 = vsel %vm945, %v1698, 0.0
        %1700 = vadd.xlane.f32.xlu0 %v1699
        %v1701 = vpop.xlane.xlu0 %1700
        %v1702 = vrcp.pop %v1701
        %v1703 = vmul.f32 %v1698, %v1702
        %1704 = vrot.lane.b32.xlu0 %v1449, 80
        %v1705 = vpop.permute.xlu0 %1704
        %v1708 = vsel %vm945, %v1703, 0
        %1710 = vmatprep.subr.mxu0 0.0
        %1711 = vmatpush1.msra.mxu0 0.0
        %1712 = vmatprep.subr.mxu0 0.0
        %1713 = vmatpush1.msra.mxu0 0.0
        %1714 = vmatprep.subr.mxu0 0.0
        %1715 = vmatpush1.msra.mxu0 0.0
        %1716 = vmatprep.subr.mxu0 0.0
        %1717 = vmatpush1.msra.mxu0 0.0
        %1718 = vmatprep.subr.mxu0 0.0
        %1719 = vmatpush1.msra.mxu0 0.0
        %1720 = vmatprep.subr.mxu0 0.0
        %1721 = vmatpush1.msra.mxu0 0.0
        %1722 = vmatprep.subr.mxu0 0.0
        %1723 = vmatpush1.msra.mxu0 0.0
        %1724 = vmatprep.subr.mxu0 0.0
        %1725 = vmatpush1.msra.mxu0 0.0
        %1726 = vmatprep.subr.mxu0 0.0
        %1727 = vmatpush1.msra.mxu0 0.0
        %1728 = vmatprep.subr.mxu0 0.0
        %1729 = vmatpush1.msra.mxu0 0.0
        %1730 = vmatprep.subr.mxu0 0.0
        %1731 = vmatpush1.msra.mxu0 0.0
        %1732 = vmatprep.subr.mxu0 0.0
        %1733 = vmatpush1.msra.mxu0 0.0
        %1734 = vmatprep.subr.mxu0 0.0
        %1735 = vmatpush1.msra.mxu0 0.0
        %1736 = vmatprep.subr.mxu0 0.0
        %1737 = vmatpush1.msra.mxu0 0.0
        %1738 = vmatprep.subr.mxu0 0.0
        %1739 = vmatpush1.msra.mxu0 0.0
        %1740 = vmatprep.subr.mxu0 0.0
        %1741 = vmatpush1.msra.mxu0 %v1705
        %1742 = vmatprep.subr.mxu0 0.0
        %1743 = vmatpush2.msra.mxu0 0.0
        %1744 = vmatprep.subr.mxu0 0.0
        %1745 = vmatpush2.msra.mxu0 0.0
        %1746 = vmatprep.subr.mxu0 0.0
        %1747 = vmatpush2.msra.mxu0 0.0
        %1748 = vmatprep.subr.mxu0 0.0
        %1749 = vmatpush2.msra.mxu0 0.0
        %1750 = vmatprep.subr.mxu0 0.0
        %1751 = vmatpush2.msra.mxu0 0.0
        %1752 = vmatprep.subr.mxu0 0.0
        %1753 = vmatpush2.msra.mxu0 0.0
        %1754 = vmatprep.subr.mxu0 0.0
        %1755 = vmatpush2.msra.mxu0 0.0
        %1756 = vmatprep.subr.mxu0 0.0
        %1757 = vmatpush2.msra.mxu0 0.0
        %1758 = vmatprep.subr.mxu0 0.0
        %1759 = vmatpush2.msra.mxu0 0.0
        %1760 = vmatprep.subr.mxu0 0.0
        %1761 = vmatpush2.msra.mxu0 0.0
        %1762 = vmatprep.subr.mxu0 0.0
        %1763 = vmatpush2.msra.mxu0 0.0
        %1764 = vmatprep.subr.mxu0 0.0
        %1765 = vmatpush2.msra.mxu0 0.0
        %1766 = vmatprep.subr.mxu0 0.0
        %1767 = vmatpush2.msra.mxu0 0.0
        %1768 = vmatprep.subr.mxu0 0.0
        %1769 = vmatpush2.msra.mxu0 0.0
        %1770 = vmatprep.subr.mxu0 0.0
        %1771 = vmatpush2.msra.mxu0 0.0
        %1772 = vmatprep.subr.mxu0 0.0
        %1773 = vmatpush2.msra.mxu0 0.0
        %1774 = vmatprep.mubr.f32.mxu0 0.0
        %1775 = vmatmul.mubr.f32.gmra.mxu0 %v1708
        %v1776 = vpop.f32.mrf.mxu0
        %v1777 = vadd.f32 0.0, %v1776
        %v1778 = vpop.f32.mrf.mxu0
        %1779 = vdwg.mxu0
        %1781 = vrot.lane.b32.xlu0 %v1777, 16
        %v1782 = vpop.permute.xlu0 %1781
        %v1784 = vsel %vm870, %v1612, %v1782
        %v1785 = vld [vmem:[#allocation11] sm:$0xff]
        %v1786 = vld [vmem:[#allocation11 + $0x8] sm:$0xff]
        %v1787 = vld [vmem:[#allocation11 + $0x10] sm:$0xff]
        %v1788 = vld [vmem:[#allocation11 + $0x18] sm:$0xff]
        %v1790 = vsel %vm774, %v1784, 0
        %1792 = vmatprep.subr.mxu0 0.0
        %1793 = vmatpush1.msra.mxu0 0.0
        %1794 = vmatprep.subr.mxu0 0.0
        %1795 = vmatpush1.msra.mxu0 0.0
        %1796 = vmatprep.subr.mxu0 0.0
        %1797 = vmatpush1.msra.mxu0 0.0
        %1798 = vmatprep.subr.mxu0 0.0
        %1799 = vmatpush1.msra.mxu0 0.0
        %1800 = vmatprep.subr.mxu0 0.0
        %1801 = vmatpush1.msra.mxu0 0.0
        %1802 = vmatprep.subr.mxu0 0.0
        %1803 = vmatpush1.msra.mxu0 0.0
        %1804 = vmatprep.subr.mxu0 0.0
        %1805 = vmatpush1.msra.mxu0 0.0
        %1806 = vmatprep.subr.mxu0 0.0
        %1807 = vmatpush1.msra.mxu0 0.0
        %1808 = vmatprep.subr.mxu0 0.0
        %1809 = vmatpush1.msra.mxu0 0.0
        %1810 = vmatprep.subr.mxu0 0.0
        %1811 = vmatpush1.msra.mxu0 0.0
        %1812 = vmatprep.subr.mxu0 0.0
        %1813 = vmatpush1.msra.mxu0 0.0
        %1814 = vmatprep.subr.mxu0 0.0
        %1815 = vmatpush1.msra.mxu0 0.0
        %1816 = vmatprep.subr.mxu0 0.0
        %1817 = vmatpush1.msra.mxu0 %v1788
        %1818 = vmatprep.subr.mxu0 0.0
        %1819 = vmatpush1.msra.mxu0 %v1787
        %1820 = vmatprep.subr.mxu0 0.0
        %1821 = vmatpush1.msra.mxu0 %v1786
        %1822 = vmatprep.subr.mxu0 0.0
        %1823 = vmatpush1.msra.mxu0 %v1785
        %1824 = vmatprep.subr.mxu0 0.0
        %1825 = vmatpush2.msra.mxu0 0.0
        %1826 = vmatprep.subr.mxu0 0.0
        %1827 = vmatpush2.msra.mxu0 0.0
        %1828 = vmatprep.subr.mxu0 0.0
        %1829 = vmatpush2.msra.mxu0 0.0
        %1830 = vmatprep.subr.mxu0 0.0
        %1831 = vmatpush2.msra.mxu0 0.0
        %1832 = vmatprep.subr.mxu0 0.0
        %1833 = vmatpush2.msra.mxu0 0.0
        %1834 = vmatprep.subr.mxu0 0.0
        %1835 = vmatpush2.msra.mxu0 0.0
        %1836 = vmatprep.subr.mxu0 0.0
        %1837 = vmatpush2.msra.mxu0 0.0
        %1838 = vmatprep.subr.mxu0 0.0
        %1839 = vmatpush2.msra.mxu0 0.0
        %1840 = vmatprep.subr.mxu0 0.0
        %1841 = vmatpush2.msra.mxu0 0.0
        %1842 = vmatprep.subr.mxu0 0.0
        %1843 = vmatpush2.msra.mxu0 0.0
        %1844 = vmatprep.subr.mxu0 0.0
        %1845 = vmatpush2.msra.mxu0 0.0
        %1846 = vmatprep.subr.mxu0 0.0
        %1847 = vmatpush2.msra.mxu0 0.0
        %1848 = vmatprep.subr.mxu0 0.0
        %1849 = vmatpush2.msra.mxu0 0.0
        %1850 = vmatprep.subr.mxu0 0.0
        %1851 = vmatpush2.msra.mxu0 0.0
        %1852 = vmatprep.subr.mxu0 0.0
        %1853 = vmatpush2.msra.mxu0 0.0
        %1854 = vmatprep.subr.mxu0 0.0
        %1855 = vmatpush2.msra.mxu0 0.0
        %1856 = vmatprep.mubr.f32.mxu0 0.0
        %1857 = vmatmul.mubr.f32.gmra.mxu0 %v1790
        %v1858 = vpop.f32.mrf.mxu0
        %v1859 = vadd.f32 0.0, %v1858
        %v1860 = vpop.f32.mrf.mxu0
        %1861 = vdwg.mxu0
        %v1862 = vadd.f32 %v1280, %v1859
        %v1863 = vld [vmem:[%s10] sm:$0x1]
        %v1864 = vmul.f32 %v1862, %v1862
        %v1865 = vsel %vm774, %v1864, 0.0
        %1866 = vadd.xlane.f32.xlu0 %v1865
        %v1867 = vpop.xlane.xlu0 %1866
        %v1868 = vmul.f32 %v1867, %v778
        %v1869 = vadd.f32 %v1868, 1e-06
        %v1870 = vrsqrt.pop %v1869
        %v1871 = vmul.f32 %v1862, %v1870
        %v1873 = vlaneseq
        %v1874 = vshrl.u32 %v1873, 7
        %v1875 = vsub.s32 0, %v1874
        %v1876 = vrot.slane %v1863, %v1875
        %v1878 = vmul.f32 %v1871, %v1876
        %v1879 = vld [vmem:[#allocation13] sm:$0xff]
        %v1880 = vld [vmem:[#allocation13 + $0x8] sm:$0xff]
        %v1881 = vld [vmem:[#allocation13 + $0x10] sm:$0xff]
        %v1882 = vld [vmem:[#allocation13 + $0x18] sm:$0xff]
        %v1884 = vsel %vm774, %v1878, 0
        %1886 = vmatprep.subr.mxu0 0.0
        %1887 = vmatpush1.msra.mxu0 0.0
        %1888 = vmatprep.subr.mxu0 0.0
        %1889 = vmatpush1.msra.mxu0 0.0
        %1890 = vmatprep.subr.mxu0 0.0
        %1891 = vmatpush1.msra.mxu0 0.0
        %1892 = vmatprep.subr.mxu0 0.0
        %1893 = vmatpush1.msra.mxu0 0.0
        %1894 = vmatprep.subr.mxu0 0.0
        %1895 = vmatpush1.msra.mxu0 0.0
        %1896 = vmatprep.subr.mxu0 0.0
        %1897 = vmatpush1.msra.mxu0 0.0
        %1898 = vmatprep.subr.mxu0 0.0
        %1899 = vmatpush1.msra.mxu0 0.0
        %1900 = vmatprep.subr.mxu0 0.0
        %1901 = vmatpush1.msra.mxu0 0.0
        %1902 = vmatprep.subr.mxu0 0.0
        %1903 = vmatpush1.msra.mxu0 0.0
        %1904 = vmatprep.subr.mxu0 0.0
        %1905 = vmatpush1.msra.mxu0 0.0
        %1906 = vmatprep.subr.mxu0 0.0
        %1907 = vmatpush1.msra.mxu0 0.0
        %1908 = vmatprep.subr.mxu0 0.0
        %1909 = vmatpush1.msra.mxu0 0.0
        %1910 = vmatprep.subr.mxu0 0.0
        %1911 = vmatpush1.msra.mxu0 %v1882
        %1912 = vmatprep.subr.mxu0 0.0
        %1913 = vmatpush1.msra.mxu0 %v1881
        %1914 = vmatprep.subr.mxu0 0.0
        %1915 = vmatpush1.msra.mxu0 %v1880
        %1916 = vmatprep.subr.mxu0 0.0
        %1917 = vmatpush1.msra.mxu0 %v1879
        %1918 = vmatprep.subr.mxu0 0.0
        %1919 = vmatpush2.msra.mxu0 0.0
        %1920 = vmatprep.subr.mxu0 0.0
        %1921 = vmatpush2.msra.mxu0 0.0
        %1922 = vmatprep.subr.mxu0 0.0
        %1923 = vmatpush2.msra.mxu0 0.0
        %1924 = vmatprep.subr.mxu0 0.0
        %1925 = vmatpush2.msra.mxu0 0.0
        %1926 = vmatprep.subr.mxu0 0.0
        %1927 = vmatpush2.msra.mxu0 0.0
        %1928 = vmatprep.subr.mxu0 0.0
        %1929 = vmatpush2.msra.mxu0 0.0
        %1930 = vmatprep.subr.mxu0 0.0
        %1931 = vmatpush2.msra.mxu0 0.0
        %1932 = vmatprep.subr.mxu0 0.0
        %1933 = vmatpush2.msra.mxu0 0.0
        %1934 = vmatprep.subr.mxu0 0.0
        %1935 = vmatpush2.msra.mxu0 0.0
        %1936 = vmatprep.subr.mxu0 0.0
        %1937 = vmatpush2.msra.mxu0 0.0
        %1938 = vmatprep.subr.mxu0 0.0
        %1939 = vmatpush2.msra.mxu0 0.0
        %1940 = vmatprep.subr.mxu0 0.0
        %1941 = vmatpush2.msra.mxu0 0.0
        %1942 = vmatprep.subr.mxu0 0.0
        %1943 = vmatpush2.msra.mxu0 0.0
        %1944 = vmatprep.subr.mxu0 0.0
        %1945 = vmatpush2.msra.mxu0 0.0
        %1946 = vmatprep.subr.mxu0 0.0
        %1947 = vmatpush2.msra.mxu0 0.0
        %1948 = vmatprep.subr.mxu0 0.0
        %1949 = vmatpush2.msra.mxu0 0.0
        %1950 = vmatprep.mubr.f32.mxu0 0.0
        %1951 = vmatmul.mubr.f32.gmra.mxu0 %v1884
        %v1952 = vpop.f32.mrf.mxu0
        %v1953 = vadd.f32 0.0, %v1952
        %v1954 = vpop.f32.mrf.mxu0
        %1955 = vdwg.mxu0
        %v1956 = vmax.f32 %v1953, 0.0
        %v1957 = vld [vmem:[#allocation14] sm:$0xff]
        %v1958 = vld [vmem:[#allocation14 + $0x8] sm:$0xff]
        %v1959 = vld [vmem:[#allocation14 + $0x10] sm:$0xff]
        %v1960 = vld [vmem:[#allocation14 + $0x18] sm:$0xff]
        %v1961 = vld [vmem:[#allocation14 + $0x20] sm:$0xff]
        %v1962 = vld [vmem:[#allocation14 + $0x28] sm:$0xff]
        %v1963 = vld [vmem:[#allocation14 + $0x30] sm:$0xff]
        %v1964 = vld [vmem:[#allocation14 + $0x38] sm:$0xff]
        %vm1965 = vcmask 523264
        %v1967 = vsel %vm1965, %v1956, 0
        %1969 = vmatprep.subr.mxu0 0.0
        %1970 = vmatpush1.msra.mxu0 0.0
        %1971 = vmatprep.subr.mxu0 0.0
        %1972 = vmatpush1.msra.mxu0 0.0
        %1973 = vmatprep.subr.mxu0 0.0
        %1974 = vmatpush1.msra.mxu0 0.0
        %1975 = vmatprep.subr.mxu0 0.0
        %1976 = vmatpush1.msra.mxu0 0.0
        %1977 = vmatprep.subr.mxu0 0.0
        %1978 = vmatpush1.msra.mxu0 0.0
        %1979 = vmatprep.subr.mxu0 0.0
        %1980 = vmatpush1.msra.mxu0 0.0
        %1981 = vmatprep.subr.mxu0 0.0
        %1982 = vmatpush1.msra.mxu0 0.0
        %1983 = vmatprep.subr.mxu0 0.0
        %1984 = vmatpush1.msra.mxu0 0.0
        %1985 = vmatprep.subr.mxu0 0.0
        %1986 = vmatpush1.msra.mxu0 %v1964
        %1987 = vmatprep.subr.mxu0 0.0
        %1988 = vmatpush1.msra.mxu0 %v1963
        %1989 = vmatprep.subr.mxu0 0.0
        %1990 = vmatpush1.msra.mxu0 %v1962
        %1991 = vmatprep.subr.mxu0 0.0
        %1992 = vmatpush1.msra.mxu0 %v1961
        %1993 = vmatprep.subr.mxu0 0.0
        %1994 = vmatpush1.msra.mxu0 %v1960
        %1995 = vmatprep.subr.mxu0 0.0
        %1996 = vmatpush1.msra.mxu0 %v1959
        %1997 = vmatprep.subr.mxu0 0.0
        %1998 = vmatpush1.msra.mxu0 %v1958
        %1999 = vmatprep.subr.mxu0 0.0
        %2000 = vmatpush1.msra.mxu0 %v1957
        %2001 = vmatprep.subr.mxu0 0.0
        %2002 = vmatpush2.msra.mxu0 0.0
        %2003 = vmatprep.subr.mxu0 0.0
        %2004 = vmatpush2.msra.mxu0 0.0
        %2005 = vmatprep.subr.mxu0 0.0
        %2006 = vmatpush2.msra.mxu0 0.0
        %2007 = vmatprep.subr.mxu0 0.0
        %2008 = vmatpush2.msra.mxu0 0.0
        %2009 = vmatprep.subr.mxu0 0.0
        %2010 = vmatpush2.msra.mxu0 0.0
        %2011 = vmatprep.subr.mxu0 0.0
        %2012 = vmatpush2.msra.mxu0 0.0
        %2013 = vmatprep.subr.mxu0 0.0
        %2014 = vmatpush2.msra.mxu0 0.0
        %2015 = vmatprep.subr.mxu0 0.0
        %2016 = vmatpush2.msra.mxu0 0.0
        %2017 = vmatprep.subr.mxu0 0.0
        %2018 = vmatpush2.msra.mxu0 0.0
        %2019 = vmatprep.subr.mxu0 0.0
        %2020 = vmatpush2.msra.mxu0 0.0
        %2021 = vmatprep.subr.mxu0 0.0
        %2022 = vmatpush2.msra.mxu0 0.0
        %2023 = vmatprep.subr.mxu0 0.0
        %2024 = vmatpush2.msra.mxu0 0.0
        %2025 = vmatprep.subr.mxu0 0.0
        %2026 = vmatpush2.msra.mxu0 0.0
        %2027 = vmatprep.subr.mxu0 0.0
        %2028 = vmatpush2.msra.mxu0 0.0
        %2029 = vmatprep.subr.mxu0 0.0
        %2030 = vmatpush2.msra.mxu0 0.0
        %2031 = vmatprep.subr.mxu0 0.0
        %2032 = vmatpush2.msra.mxu0 0.0
        %2033 = vmatprep.mubr.f32.mxu0 0.0
        %2034 = vmatmul.mubr.f32.gmra.mxu0 %v1967
        %v2035 = vpop.f32.mrf.mxu0
        %v2036 = vadd.f32 0.0, %v2035
        %v2037 = vpop.f32.mrf.mxu0
        %2038 = vdwg.mxu0
        %v2039 = vadd.f32 %v1862, %v2036
        %s2040 = scalar_lea.vmem %s3, 1
        %v2041 = vld [vmem:[%s2040] sm:$0x1]
        %v2042 = vmul.f32 %v2039, %v2039
        %v2043 = vsel %vm774, %v2042, 0.0
        %2044 = vadd.xlane.f32.xlu0 %v2043
        %v2045 = vpop.xlane.xlu0 %2044
        %v2046 = vmul.f32 %v2045, %v778
        %v2047 = vadd.f32 %v2046, 1e-06
        %v2048 = vrsqrt.pop %v2047
        %v2049 = vmul.f32 %v2039, %v2048
        %v2051 = vlaneseq
        %v2052 = vshrl.u32 %v2051, 7
        %v2053 = vsub.s32 0, %v2052
        %v2054 = vrot.slane %v2041, %v2053
        %v2056 = vmul.f32 %v2049, %v2054
        %s2057 = scalar_lea.vmem [#allocation5], 32
        %v2058 = vld [vmem:[%s2057] sm:$0xff]
        %v2059 = vld [vmem:[%s2057 + $0x8] sm:$0xff]
        %v2060 = vld [vmem:[%s2057 + $0x10] sm:$0xff]
        %v2061 = vld [vmem:[%s2057 + $0x18] sm:$0xff]
        %v2063 = vsel %vm774, %v2056, 0
        %2065 = vmatprep.subr.mxu0 0.0
        %2066 = vmatpush1.msra.mxu0 0.0
        %2067 = vmatprep.subr.mxu0 0.0
        %2068 = vmatpush1.msra.mxu0 0.0
        %2069 = vmatprep.subr.mxu0 0.0
        %2070 = vmatpush1.msra.mxu0 0.0
        %2071 = vmatprep.subr.mxu0 0.0
        %2072 = vmatpush1.msra.mxu0 0.0
        %2073 = vmatprep.subr.mxu0 0.0
        %2074 = vmatpush1.msra.mxu0 0.0
        %2075 = vmatprep.subr.mxu0 0.0
        %2076 = vmatpush1.msra.mxu0 0.0
        %2077 = vmatprep.subr.mxu0 0.0
        %2078 = vmatpush1.msra.mxu0 0.0
        %2079 = vmatprep.subr.mxu0 0.0
        %2080 = vmatpush1.msra.mxu0 0.0
        %2081 = vmatprep.subr.mxu0 0.0
        %2082 = vmatpush1.msra.mxu0 0.0
        %2083 = vmatprep.subr.mxu0 0.0
        %2084 = vmatpush1.msra.mxu0 0.0
        %2085 = vmatprep.subr.mxu0 0.0
        %2086 = vmatpush1.msra.mxu0 0.0
        %2087 = vmatprep.subr.mxu0 0.0
        %2088 = vmatpush1.msra.mxu0 0.0
        %2089 = vmatprep.subr.mxu0 0.0
        %2090 = vmatpush1.msra.mxu0 %v2061
        %2091 = vmatprep.subr.mxu0 0.0
        %2092 = vmatpush1.msra.mxu0 %v2060
        %2093 = vmatprep.subr.mxu0 0.0
        %2094 = vmatpush1.msra.mxu0 %v2059
        %2095 = vmatprep.subr.mxu0 0.0
        %2096 = vmatpush1.msra.mxu0 %v2058
        %2097 = vmatprep.subr.mxu0 0.0
        %2098 = vmatpush2.msra.mxu0 0.0
        %2099 = vmatprep.subr.mxu0 0.0
        %2100 = vmatpush2.msra.mxu0 0.0
        %2101 = vmatprep.subr.mxu0 0.0
        %2102 = vmatpush2.msra.mxu0 0.0
        %2103 = vmatprep.subr.mxu0 0.0
        %2104 = vmatpush2.msra.mxu0 0.0
        %2105 = vmatprep.subr.mxu0 0.0
        %2106 = vmatpush2.msra.mxu0 0.0
        %2107 = vmatprep.subr.mxu0 0.0
        %2108 = vmatpush2.msra.mxu0 0.0
        %2109 = vmatprep.subr.mxu0 0.0
        %2110 = vmatpush2.msra.mxu0 0.0
        %2111 = vmatprep.subr.mxu0 0.0
        %2112 = vmatpush2.msra.mxu0 0.0
        %2113 = vmatprep.subr.mxu0 0.0
        %2114 = vmatpush2.msra.mxu0 0.0
        %2115 = vmatprep.subr.mxu0 0.0
        %2116 = vmatpush2.msra.mxu0 0.0
        %2117 = vmatprep.subr.mxu0 0.0
        %2118 = vmatpush2.msra.mxu0 0.0
        %2119 = vmatprep.subr.mxu0 0.0
        %2120 = vmatpush2.msra.mxu0 0.0
        %2121 = vmatprep.subr.mxu0 0.0
        %2122 = vmatpush2.msra.mxu0 0.0
        %2123 = vmatprep.subr.mxu0 0.0
        %2124 = vmatpush2.msra.mxu0 0.0
        %2125 = vmatprep.subr.mxu0 0.0
        %2126 = vmatpush2.msra.mxu0 0.0
        %2127 = vmatprep.subr.mxu0 0.0
        %2128 = vmatpush2.msra.mxu0 0.0
        %2129 = vmatprep.mubr.f32.mxu0 0.0
        %2130 = vmatmul.mubr.f32.gmra.mxu0 %v2063
        %v2131 = vpop.f32.mrf.mxu0
        %v2132 = vadd.f32 0.0, %v2131
        %v2133 = vpop.f32.mrf.mxu0
        %2134 = vdwg.mxu0
        %2136 = vrot.lane.b32.xlu0 %v2132, 96
        %v2137 = vpop.permute.xlu0 %2136
        %v2138 = vsel %vm870, %v2132, 0
        %v2140 = vsel %vm870, %v2137, 0
        %2142 = vmatprep.subr.mxu0 0.0
        %2143 = vmatpush1.xpose.msra.mxu0 0.0
        %2144 = vmatprep.subr.mxu0 0.0
        %2145 = vmatpush1.xpose.msra.mxu0 0.0
        %2146 = vmatprep.subr.mxu0 0.0
        %2147 = vmatpush1.xpose.msra.mxu0 0.0
        %2148 = vmatprep.subr.mxu0 0.0
        %2149 = vmatpush1.xpose.msra.mxu0 0.0
        %2150 = vmatprep.subr.mxu0 0.0
        %2151 = vmatpush1.xpose.msra.mxu0 0.0
        %2152 = vmatprep.subr.mxu0 0.0
        %2153 = vmatpush1.xpose.msra.mxu0 0.0
        %2154 = vmatprep.subr.mxu0 0.0
        %2155 = vmatpush1.xpose.msra.mxu0 0.0
        %2156 = vmatprep.subr.mxu0 0.0
        %2157 = vmatpush1.xpose.msra.mxu0 0.0
        %2158 = vmatprep.subr.mxu0 0.0
        %2159 = vmatpush1.xpose.msra.mxu0 0.0
        %2160 = vmatprep.subr.mxu0 0.0
        %2161 = vmatpush1.xpose.msra.mxu0 0.0
        %2162 = vmatprep.subr.mxu0 0.0
        %2163 = vmatpush1.xpose.msra.mxu0 0.0
        %2164 = vmatprep.subr.mxu0 0.0
        %2165 = vmatpush1.xpose.msra.mxu0 0.0
        %2166 = vmatprep.subr.mxu0 0.0
        %2167 = vmatpush1.xpose.msra.mxu0 0.0
        %2168 = vmatprep.subr.mxu0 0.0
        %2169 = vmatpush1.xpose.msra.mxu0 0.0
        %2170 = vmatprep.subr.mxu0 0.0
        %2171 = vmatpush1.xpose.msra.mxu0 0.0
        %2172 = vmatprep.subr.mxu0 0.0
        %2173 = vmatpush1.xpose.msra.mxu0 %v2140
        %2174 = vmatprep.subr.mxu0 0.0
        %2175 = vmatpush2.xpose.msra.mxu0 0.0
        %2176 = vmatprep.subr.mxu0 0.0
        %2177 = vmatpush2.xpose.msra.mxu0 0.0
        %2178 = vmatprep.subr.mxu0 0.0
        %2179 = vmatpush2.xpose.msra.mxu0 0.0
        %2180 = vmatprep.subr.mxu0 0.0
        %2181 = vmatpush2.xpose.msra.mxu0 0.0
        %2182 = vmatprep.subr.mxu0 0.0
        %2183 = vmatpush2.xpose.msra.mxu0 0.0
        %2184 = vmatprep.subr.mxu0 0.0
        %2185 = vmatpush2.xpose.msra.mxu0 0.0
        %2186 = vmatprep.subr.mxu0 0.0
        %2187 = vmatpush2.xpose.msra.mxu0 0.0
        %2188 = vmatprep.subr.mxu0 0.0
        %2189 = vmatpush2.xpose.msra.mxu0 0.0
        %2190 = vmatprep.subr.mxu0 0.0
        %2191 = vmatpush2.xpose.msra.mxu0 0.0
        %2192 = vmatprep.subr.mxu0 0.0
        %2193 = vmatpush2.xpose.msra.mxu0 0.0
        %2194 = vmatprep.subr.mxu0 0.0
        %2195 = vmatpush2.xpose.msra.mxu0 0.0
        %2196 = vmatprep.subr.mxu0 0.0
        %2197 = vmatpush2.xpose.msra.mxu0 0.0
        %2198 = vmatprep.subr.mxu0 0.0
        %2199 = vmatpush2.xpose.msra.mxu0 0.0
        %2200 = vmatprep.subr.mxu0 0.0
        %2201 = vmatpush2.xpose.msra.mxu0 0.0
        %2202 = vmatprep.subr.mxu0 0.0
        %2203 = vmatpush2.xpose.msra.mxu0 0.0
        %2204 = vmatprep.subr.mxu0 0.0
        %2205 = vmatpush2.xpose.msra.mxu0 0.0
        %2206 = vmatprep.mubr.f32.mxu0 0.0
        %2207 = vmatmul.mubr.f32.gmra.mxu0 %v2138
        %v2208 = vpop.f32.mrf.mxu0
        %v2209 = vadd.f32 %v771, %v2208
        %v2210 = vpop.f32.mrf.mxu0
        %2211 = vdwg.mxu0
        %v2212 = vsel %vm945, %v2209, -inf
        %2213 = vmax.xlane.f32.xlu0 %v2212
        %v2214 = vpop.xlane.xlu0 %2213
        %v2215 = vsub.f32 %v2209, %v2214
        %v2216 = vmul.f32 %v2215, 1.442695
        %v2217 = vpow.pop %v2216
        %v2218 = vsel %vm945, %v2217, 0.0
        %2219 = vadd.xlane.f32.xlu0 %v2218
        %v2220 = vpop.xlane.xlu0 %2219
        %v2221 = vrcp.pop %v2220
        %v2222 = vmul.f32 %v2217, %v2221
        %2223 = vrot.lane.b32.xlu0 %v2132, 64
        %v2224 = vpop.permute.xlu0 %2223
        %v2227 = vsel %vm945, %v2222, 0
        %2229 = vmatprep.subr.mxu0 0.0
        %2230 = vmatpush1.msra.mxu0 0.0
        %2231 = vmatprep.subr.mxu0 0.0
        %2232 = vmatpush1.msra.mxu0 0.0
        %2233 = vmatprep.subr.mxu0 0.0
        %2234 = vmatpush1.msra.mxu0 0.0
        %2235 = vmatprep.subr.mxu0 0.0
        %2236 = vmatpush1.msra.mxu0 0.0
        %2237 = vmatprep.subr.mxu0 0.0
        %2238 = vmatpush1.msra.mxu0 0.0
        %2239 = vmatprep.subr.mxu0 0.0
        %2240 = vmatpush1.msra.mxu0 0.0
        %2241 = vmatprep.subr.mxu0 0.0
        %2242 = vmatpush1.msra.mxu0 0.0
        %2243 = vmatprep.subr.mxu0 0.0
        %2244 = vmatpush1.msra.mxu0 0.0
        %2245 = vmatprep.subr.mxu0 0.0
        %2246 = vmatpush1.msra.mxu0 0.0
        %2247 = vmatprep.subr.mxu0 0.0
        %2248 = vmatpush1.msra.mxu0 0.0
        %2249 = vmatprep.subr.mxu0 0.0
        %2250 = vmatpush1.msra.mxu0 0.0
        %2251 = vmatprep.subr.mxu0 0.0
        %2252 = vmatpush1.msra.mxu0 0.0
        %2253 = vmatprep.subr.mxu0 0.0
        %2254 = vmatpush1.msra.mxu0 0.0
        %2255 = vmatprep.subr.mxu0 0.0
        %2256 = vmatpush1.msra.mxu0 0.0
        %2257 = vmatprep.subr.mxu0 0.0
        %2258 = vmatpush1.msra.mxu0 0.0
        %2259 = vmatprep.subr.mxu0 0.0
        %2260 = vmatpush1.msra.mxu0 %v2224
        %2261 = vmatprep.subr.mxu0 0.0
        %2262 = vmatpush2.msra.mxu0 0.0
        %2263 = vmatprep.subr.mxu0 0.0
        %2264 = vmatpush2.msra.mxu0 0.0
        %2265 = vmatprep.subr.mxu0 0.0
        %2266 = vmatpush2.msra.mxu0 0.0
        %2267 = vmatprep.subr.mxu0 0.0
        %2268 = vmatpush2.msra.mxu0 0.0
        %2269 = vmatprep.subr.mxu0 0.0
        %2270 = vmatpush2.msra.mxu0 0.0
        %2271 = vmatprep.subr.mxu0 0.0
        %2272 = vmatpush2.msra.mxu0 0.0
        %2273 = vmatprep.subr.mxu0 0.0
        %2274 = vmatpush2.msra.mxu0 0.0
        %2275 = vmatprep.subr.mxu0 0.0
        %2276 = vmatpush2.msra.mxu0 0.0
        %2277 = vmatprep.subr.mxu0 0.0
        %2278 = vmatpush2.msra.mxu0 0.0
        %2279 = vmatprep.subr.mxu0 0.0
        %2280 = vmatpush2.msra.mxu0 0.0
        %2281 = vmatprep.subr.mxu0 0.0
        %2282 = vmatpush2.msra.mxu0 0.0
        %2283 = vmatprep.subr.mxu0 0.0
        %2284 = vmatpush2.msra.mxu0 0.0
        %2285 = vmatprep.subr.mxu0 0.0
        %2286 = vmatpush2.msra.mxu0 0.0
        %2287 = vmatprep.subr.mxu0 0.0
        %2288 = vmatpush2.msra.mxu0 0.0
        %2289 = vmatprep.subr.mxu0 0.0
        %2290 = vmatpush2.msra.mxu0 0.0
        %2291 = vmatprep.subr.mxu0 0.0
        %2292 = vmatpush2.msra.mxu0 0.0
        %2293 = vmatprep.mubr.f32.mxu0 0.0
        %2294 = vmatmul.mubr.f32.gmra.mxu0 %v2227
        %v2295 = vpop.f32.mrf.mxu0
        %v2296 = vadd.f32 0.0, %v2295
        %v2297 = vpop.f32.mrf.mxu0
        %2298 = vdwg.mxu0
        %2299 = vrot.lane.b32.xlu0 %v2132, 112
        %v2300 = vpop.permute.xlu0 %2299
        %2301 = vrot.lane.b32.xlu0 %v2132, 80
        %v2302 = vpop.permute.xlu0 %2301
        %v2303 = vsel %vm870, %v2300, 0
        %v2305 = vsel %vm870, %v2302, 0
        %2307 = vmatprep.subr.mxu0 0.0
        %2308 = vmatpush1.xpose.msra.mxu0 0.0
        %2309 = vmatprep.subr.mxu0 0.0
        %2310 = vmatpush1.xpose.msra.mxu0 0.0
        %2311 = vmatprep.subr.mxu0 0.0
        %2312 = vmatpush1.xpose.msra.mxu0 0.0
        %2313 = vmatprep.subr.mxu0 0.0
        %2314 = vmatpush1.xpose.msra.mxu0 0.0
        %2315 = vmatprep.subr.mxu0 0.0
        %2316 = vmatpush1.xpose.msra.mxu0 0.0
        %2317 = vmatprep.subr.mxu0 0.0
        %2318 = vmatpush1.xpose.msra.mxu0 0.0
        %2319 = vmatprep.subr.mxu0 0.0
        %2320 = vmatpush1.xpose.msra.mxu0 0.0
        %2321 = vmatprep.subr.mxu0 0.0
        %2322 = vmatpush1.xpose.msra.mxu0 0.0
        %2323 = vmatprep.subr.mxu0 0.0
        %2324 = vmatpush1.xpose.msra.mxu0 0.0
        %2325 = vmatprep.subr.mxu0 0.0
        %2326 = vmatpush1.xpose.msra.mxu0 0.0
        %2327 = vmatprep.subr.mxu0 0.0
        %2328 = vmatpush1.xpose.msra.mxu0 0.0
        %2329 = vmatprep.subr.mxu0 0.0
        %2330 = vmatpush1.xpose.msra.mxu0 0.0
        %2331 = vmatprep.subr.mxu0 0.0
        %2332 = vmatpush1.xpose.msra.mxu0 0.0
        %2333 = vmatprep.subr.mxu0 0.0
        %2334 = vmatpush1.xpose.msra.mxu0 0.0
        %2335 = vmatprep.subr.mxu0 0.0
        %2336 = vmatpush1.xpose.msra.mxu0 0.0
        %2337 = vmatprep.subr.mxu0 0.0
        %2338 = vmatpush1.xpose.msra.mxu0 %v2305
        %2339 = vmatprep.subr.mxu0 0.0
        %2340 = vmatpush2.xpose.msra.mxu0 0.0
        %2341 = vmatprep.subr.mxu0 0.0
        %2342 = vmatpush2.xpose.msra.mxu0 0.0
        %2343 = vmatprep.subr.mxu0 0.0
        %2344 = vmatpush2.xpose.msra.mxu0 0.0
        %2345 = vmatprep.subr.mxu0 0.0
        %2346 = vmatpush2.xpose.msra.mxu0 0.0
        %2347 = vmatprep.subr.mxu0 0.0
        %2348 = vmatpush2.xpose.msra.mxu0 0.0
        %2349 = vmatprep.subr.mxu0 0.0
        %2350 = vmatpush2.xpose.msra.mxu0 0.0
        %2351 = vmatprep.subr.mxu0 0.0
        %2352 = vmatpush2.xpose.msra.mxu0 0.0
        %2353 = vmatprep.subr.mxu0 0.0
        %2354 = vmatpush2.xpose.msra.mxu0 0.0
        %2355 = vmatprep.subr.mxu0 0.0
        %2356 = vmatpush2.xpose.msra.mxu0 0.0
        %2357 = vmatprep.subr.mxu0 0.0
        %2358 = vmatpush2.xpose.msra.mxu0 0.0
        %2359 = vmatprep.subr.mxu0 0.0
        %2360 = vmatpush2.xpose.msra.mxu0 0.0
        %2361 = vmatprep.subr.mxu0 0.0
        %2362 = vmatpush2.xpose.msra.mxu0 0.0
        %2363 = vmatprep.subr.mxu0 0.0
        %2364 = vmatpush2.xpose.msra.mxu0 0.0
        %2365 = vmatprep.subr.mxu0 0.0
        %2366 = vmatpush2.xpose.msra.mxu0 0.0
        %2367 = vmatprep.subr.mxu0 0.0
        %2368 = vmatpush2.xpose.msra.mxu0 0.0
        %2369 = vmatprep.subr.mxu0 0.0
        %2370 = vmatpush2.xpose.msra.mxu0 0.0
        %2371 = vmatprep.mubr.f32.mxu0 0.0
        %2372 = vmatmul.mubr.f32.gmra.mxu0 %v2303
        %v2373 = vpop.f32.mrf.mxu0
        %v2374 = vadd.f32 %v771, %v2373
        %v2375 = vpop.f32.mrf.mxu0
        %2376 = vdwg.mxu0
        %v2377 = vsel %vm945, %v2374, -inf
        %2378 = vmax.xlane.f32.xlu0 %v2377
        %v2379 = vpop.xlane.xlu0 %2378
        %v2380 = vsub.f32 %v2374, %v2379
        %v2381 = vmul.f32 %v2380, 1.442695
        %v2382 = vpow.pop %v2381
        %v2383 = vsel %vm945, %v2382, 0.0
        %2384 = vadd.xlane.f32.xlu0 %v2383
        %v2385 = vpop.xlane.xlu0 %2384
        %v2386 = vrcp.pop %v2385
        %v2387 = vmul.f32 %v2382, %v2386
        %2388 = vrot.lane.b32.xlu0 %v2132, 48
        %v2389 = vpop.permute.xlu0 %2388
        %v2392 = vsel %vm945, %v2387, 0
        %2394 = vmatprep.subr.mxu0 0.0
        %2395 = vmatpush1.msra.mxu0 0.0
        %2396 = vmatprep.subr.mxu0 0.0
        %2397 = vmatpush1.msra.mxu0 0.0
        %2398 = vmatprep.subr.mxu0 0.0
        %2399 = vmatpush1.msra.mxu0 0.0
        %2400 = vmatprep.subr.mxu0 0.0
        %2401 = vmatpush1.msra.mxu0 0.0
        %2402 = vmatprep.subr.mxu0 0.0
        %2403 = vmatpush1.msra.mxu0 0.0
        %2404 = vmatprep.subr.mxu0 0.0
        %2405 = vmatpush1.msra.mxu0 0.0
        %2406 = vmatprep.subr.mxu0 0.0
        %2407 = vmatpush1.msra.mxu0 0.0
        %2408 = vmatprep.subr.mxu0 0.0
        %2409 = vmatpush1.msra.mxu0 0.0
        %2410 = vmatprep.subr.mxu0 0.0
        %2411 = vmatpush1.msra.mxu0 0.0
        %2412 = vmatprep.subr.mxu0 0.0
        %2413 = vmatpush1.msra.mxu0 0.0
        %2414 = vmatprep.subr.mxu0 0.0
        %2415 = vmatpush1.msra.mxu0 0.0
        %2416 = vmatprep.subr.mxu0 0.0
        %2417 = vmatpush1.msra.mxu0 0.0
        %2418 = vmatprep.subr.mxu0 0.0
        %2419 = vmatpush1.msra.mxu0 0.0
        %2420 = vmatprep.subr.mxu0 0.0
        %2421 = vmatpush1.msra.mxu0 0.0
        %2422 = vmatprep.subr.mxu0 0.0
        %2423 = vmatpush1.msra.mxu0 0.0
        %2424 = vmatprep.subr.mxu0 0.0
        %2425 = vmatpush1.msra.mxu0 %v2389
        %2426 = vmatprep.subr.mxu0 0.0
        %2427 = vmatpush2.msra.mxu0 0.0
        %2428 = vmatprep.subr.mxu0 0.0
        %2429 = vmatpush2.msra.mxu0 0.0
        %2430 = vmatprep.subr.mxu0 0.0
        %2431 = vmatpush2.msra.mxu0 0.0
        %2432 = vmatprep.subr.mxu0 0.0
        %2433 = vmatpush2.msra.mxu0 0.0
        %2434 = vmatprep.subr.mxu0 0.0
        %2435 = vmatpush2.msra.mxu0 0.0
        %2436 = vmatprep.subr.mxu0 0.0
        %2437 = vmatpush2.msra.mxu0 0.0
        %2438 = vmatprep.subr.mxu0 0.0
        %2439 = vmatpush2.msra.mxu0 0.0
        %2440 = vmatprep.subr.mxu0 0.0
        %2441 = vmatpush2.msra.mxu0 0.0
        %2442 = vmatprep.subr.mxu0 0.0
        %2443 = vmatpush2.msra.mxu0 0.0
        %2444 = vmatprep.subr.mxu0 0.0
        %2445 = vmatpush2.msra.mxu0 0.0
        %2446 = vmatprep.subr.mxu0 0.0
        %2447 = vmatpush2.msra.mxu0 0.0
        %2448 = vmatprep.subr.mxu0 0.0
        %2449 = vmatpush2.msra.mxu0 0.0
        %2450 = vmatprep.subr.mxu0 0.0
        %2451 = vmatpush2.msra.mxu0 0.0
        %2452 = vmatprep.subr.mxu0 0.0
        %2453 = vmatpush2.msra.mxu0 0.0
        %2454 = vmatprep.subr.mxu0 0.0
        %2455 = vmatpush2.msra.mxu0 0.0
        %2456 = vmatprep.subr.mxu0 0.0
        %2457 = vmatpush2.msra.mxu0 0.0
        %2458 = vmatprep.mubr.f32.mxu0 0.0
        %2459 = vmatmul.mubr.f32.gmra.mxu0 %v2392
        %v2460 = vpop.f32.mrf.mxu0
        %v2461 = vadd.f32 0.0, %v2460
        %v2462 = vpop.f32.mrf.mxu0
        %2463 = vdwg.mxu0
        %2465 = vrot.lane.b32.xlu0 %v2461, 16
        %v2466 = vpop.permute.xlu0 %2465
        %v2468 = vsel %vm870, %v2296, %v2466
        %s2469 = scalar_lea.vmem [#allocation7], 32
        %v2470 = vld [vmem:[%s2469] sm:$0xff]
        %v2471 = vld [vmem:[%s2469 + $0x8] sm:$0xff]
        %v2472 = vld [vmem:[%s2469 + $0x10] sm:$0xff]
        %v2473 = vld [vmem:[%s2469 + $0x18] sm:$0xff]
        %v2475 = vsel %vm774, %v2468, 0
        %2477 = vmatprep.subr.mxu0 0.0
        %2478 = vmatpush1.msra.mxu0 0.0
        %2479 = vmatprep.subr.mxu0 0.0
        %2480 = vmatpush1.msra.mxu0 0.0
        %2481 = vmatprep.subr.mxu0 0.0
        %2482 = vmatpush1.msra.mxu0 0.0
        %2483 = vmatprep.subr.mxu0 0.0
        %2484 = vmatpush1.msra.mxu0 0.0
        %2485 = vmatprep.subr.mxu0 0.0
        %2486 = vmatpush1.msra.mxu0 0.0
        %2487 = vmatprep.subr.mxu0 0.0
        %2488 = vmatpush1.msra.mxu0 0.0
        %2489 = vmatprep.subr.mxu0 0.0
        %2490 = vmatpush1.msra.mxu0 0.0
        %2491 = vmatprep.subr.mxu0 0.0
        %2492 = vmatpush1.msra.mxu0 0.0
        %2493 = vmatprep.subr.mxu0 0.0
        %2494 = vmatpush1.msra.mxu0 0.0
        %2495 = vmatprep.subr.mxu0 0.0
        %2496 = vmatpush1.msra.mxu0 0.0
        %2497 = vmatprep.subr.mxu0 0.0
        %2498 = vmatpush1.msra.mxu0 0.0
        %2499 = vmatprep.subr.mxu0 0.0
        %2500 = vmatpush1.msra.mxu0 0.0
        %2501 = vmatprep.subr.mxu0 0.0
        %2502 = vmatpush1.msra.mxu0 %v2473
        %2503 = vmatprep.subr.mxu0 0.0
        %2504 = vmatpush1.msra.mxu0 %v2472
        %2505 = vmatprep.subr.mxu0 0.0
        %2506 = vmatpush1.msra.mxu0 %v2471
        %2507 = vmatprep.subr.mxu0 0.0
        %2508 = vmatpush1.msra.mxu0 %v2470
        %2509 = vmatprep.subr.mxu0 0.0
        %2510 = vmatpush2.msra.mxu0 0.0
        %2511 = vmatprep.subr.mxu0 0.0
        %2512 = vmatpush2.msra.mxu0 0.0
        %2513 = vmatprep.subr.mxu0 0.0
        %2514 = vmatpush2.msra.mxu0 0.0
        %2515 = vmatprep.subr.mxu0 0.0
        %2516 = vmatpush2.msra.mxu0 0.0
        %2517 = vmatprep.subr.mxu0 0.0
        %2518 = vmatpush2.msra.mxu0 0.0
        %2519 = vmatprep.subr.mxu0 0.0
        %2520 = vmatpush2.msra.mxu0 0.0
        %2521 = vmatprep.subr.mxu0 0.0
        %2522 = vmatpush2.msra.mxu0 0.0
        %2523 = vmatprep.subr.mxu0 0.0
        %2524 = vmatpush2.msra.mxu0 0.0
        %2525 = vmatprep.subr.mxu0 0.0
        %2526 = vmatpush2.msra.mxu0 0.0
        %2527 = vmatprep.subr.mxu0 0.0
        %2528 = vmatpush2.msra.mxu0 0.0
        %2529 = vmatprep.subr.mxu0 0.0
        %2530 = vmatpush2.msra.mxu0 0.0
        %2531 = vmatprep.subr.mxu0 0.0
        %2532 = vmatpush2.msra.mxu0 0.0
        %2533 = vmatprep.subr.mxu0 0.0
        %2534 = vmatpush2.msra.mxu0 0.0
        %2535 = vmatprep.subr.mxu0 0.0
        %2536 = vmatpush2.msra.mxu0 0.0
        %2537 = vmatprep.subr.mxu0 0.0
        %2538 = vmatpush2.msra.mxu0 0.0
        %2539 = vmatprep.subr.mxu0 0.0
        %2540 = vmatpush2.msra.mxu0 0.0
        %2541 = vmatprep.mubr.f32.mxu0 0.0
        %2542 = vmatmul.mubr.f32.gmra.mxu0 %v2475
        %v2543 = vpop.f32.mrf.mxu0
        %v2544 = vadd.f32 0.0, %v2543
        %v2545 = vpop.f32.mrf.mxu0
        %2546 = vdwg.mxu0
        %v2547 = vadd.f32 %v2039, %v2544
        %s2549 = scalar_lea.vmem %s6, 1
        %v2550 = vld [vmem:[%s2549] sm:$0x1]
        %v2551 = vmul.f32 %v2547, %v2547
        %v2552 = vsel %vm774, %v2551, 0.0
        %2553 = vadd.xlane.f32.xlu0 %v2552
        %v2554 = vpop.xlane.xlu0 %2553
        %v2555 = vmul.f32 %v2554, %v778
        %v2556 = vadd.f32 %v2555, 1e-06
        %v2557 = vrsqrt.pop %v2556
        %v2558 = vmul.f32 %v2547, %v2557
        %v2560 = vlaneseq
        %v2561 = vshrl.u32 %v2560, 7
        %v2562 = vsub.s32 0, %v2561
        %v2563 = vrot.slane %v2550, %v2562
        %v2565 = vmul.f32 %v2558, %v2563
        %s2566 = scalar_lea.vmem [#allocation8], 32
        %v2567 = vld [vmem:[%s2566] sm:$0xff]
        %v2568 = vld [vmem:[%s2566 + $0x8] sm:$0xff]
        %v2569 = vld [vmem:[%s2566 + $0x10] sm:$0xff]
        %v2570 = vld [vmem:[%s2566 + $0x18] sm:$0xff]
        %v2572 = vsel %vm774, %v2565, 0
        %2574 = vmatprep.subr.mxu0 0.0
        %2575 = vmatpush1.msra.mxu0 0.0
        %2576 = vmatprep.subr.mxu0 0.0
        %2577 = vmatpush1.msra.mxu0 0.0
        %2578 = vmatprep.subr.mxu0 0.0
        %2579 = vmatpush1.msra.mxu0 0.0
        %2580 = vmatprep.subr.mxu0 0.0
        %2581 = vmatpush1.msra.mxu0 0.0
        %2582 = vmatprep.subr.mxu0 0.0
        %2583 = vmatpush1.msra.mxu0 0.0
        %2584 = vmatprep.subr.mxu0 0.0
        %2585 = vmatpush1.msra.mxu0 0.0
        %2586 = vmatprep.subr.mxu0 0.0
        %2587 = vmatpush1.msra.mxu0 0.0
        %2588 = vmatprep.subr.mxu0 0.0
        %2589 = vmatpush1.msra.mxu0 0.0
        %2590 = vmatprep.subr.mxu0 0.0
        %2591 = vmatpush1.msra.mxu0 0.0
        %2592 = vmatprep.subr.mxu0 0.0
        %2593 = vmatpush1.msra.mxu0 0.0
        %2594 = vmatprep.subr.mxu0 0.0
        %2595 = vmatpush1.msra.mxu0 0.0
        %2596 = vmatprep.subr.mxu0 0.0
        %2597 = vmatpush1.msra.mxu0 0.0
        %2598 = vmatprep.subr.mxu0 0.0
        %2599 = vmatpush1.msra.mxu0 %v2570
        %2600 = vmatprep.subr.mxu0 0.0
        %2601 = vmatpush1.msra.mxu0 %v2569
        %2602 = vmatprep.subr.mxu0 0.0
        %2603 = vmatpush1.msra.mxu0 %v2568
        %2604 = vmatprep.subr.mxu0 0.0
        %2605 = vmatpush1.msra.mxu0 %v2567
        %2606 = vmatprep.subr.mxu0 0.0
        %2607 = vmatpush2.msra.mxu0 0.0
        %2608 = vmatprep.subr.mxu0 0.0
        %2609 = vmatpush2.msra.mxu0 0.0
        %2610 = vmatprep.subr.mxu0 0.0
        %2611 = vmatpush2.msra.mxu0 0.0
        %2612 = vmatprep.subr.mxu0 0.0
        %2613 = vmatpush2.msra.mxu0 0.0
        %2614 = vmatprep.subr.mxu0 0.0
        %2615 = vmatpush2.msra.mxu0 0.0
        %2616 = vmatprep.subr.mxu0 0.0
        %2617 = vmatpush2.msra.mxu0 0.0
        %2618 = vmatprep.subr.mxu0 0.0
        %2619 = vmatpush2.msra.mxu0 0.0
        %2620 = vmatprep.subr.mxu0 0.0
        %2621 = vmatpush2.msra.mxu0 0.0
        %2622 = vmatprep.subr.mxu0 0.0
        %2623 = vmatpush2.msra.mxu0 0.0
        %2624 = vmatprep.subr.mxu0 0.0
        %2625 = vmatpush2.msra.mxu0 0.0
        %2626 = vmatprep.subr.mxu0 0.0
        %2627 = vmatpush2.msra.mxu0 0.0
        %2628 = vmatprep.subr.mxu0 0.0
        %2629 = vmatpush2.msra.mxu0 0.0
        %2630 = vmatprep.subr.mxu0 0.0
        %2631 = vmatpush2.msra.mxu0 0.0
        %2632 = vmatprep.subr.mxu0 0.0
        %2633 = vmatpush2.msra.mxu0 0.0
        %2634 = vmatprep.subr.mxu0 0.0
        %2635 = vmatpush2.msra.mxu0 0.0
        %2636 = vmatprep.subr.mxu0 0.0
        %2637 = vmatpush2.msra.mxu0 0.0
        %2638 = vmatprep.mubr.f32.mxu0 0.0
        %2639 = vmatmul.mubr.f32.gmra.mxu0 %v2572
        %v2640 = vpop.f32.mrf.mxu0
        %v2641 = vadd.f32 0.0, %v2640
        %v2642 = vpop.f32.mrf.mxu0
        %2643 = vdwg.mxu0
        %s2644 = scalar_lea.vmem [#allocation10], 32
        %v2645 = vld [vmem:[%s2644] sm:$0xff]
        %v2646 = vld [vmem:[%s2644 + $0x8] sm:$0xff]
        %v2647 = vld [vmem:[%s2644 + $0x10] sm:$0xff]
        %v2648 = vld [vmem:[%s2644 + $0x18] sm:$0xff]
        %2649 = vmatprep.subr.mxu0 0.0
        %2650 = vmatpush1.msra.mxu0 0.0
        %2651 = vmatprep.subr.mxu0 0.0
        %2652 = vmatpush1.msra.mxu0 0.0
        %2653 = vmatprep.subr.mxu0 0.0
        %2654 = vmatpush1.msra.mxu0 0.0
        %2655 = vmatprep.subr.mxu0 0.0
        %2656 = vmatpush1.msra.mxu0 0.0
        %2657 = vmatprep.subr.mxu0 0.0
        %2658 = vmatpush1.msra.mxu0 0.0
        %2659 = vmatprep.subr.mxu0 0.0
        %2660 = vmatpush1.msra.mxu0 0.0
        %2661 = vmatprep.subr.mxu0 0.0
        %2662 = vmatpush1.msra.mxu0 0.0
        %2663 = vmatprep.subr.mxu0 0.0
        %2664 = vmatpush1.msra.mxu0 0.0
        %2665 = vmatprep.subr.mxu0 0.0
        %2666 = vmatpush1.msra.mxu0 0.0
        %2667 = vmatprep.subr.mxu0 0.0
        %2668 = vmatpush1.msra.mxu0 0.0
        %2669 = vmatprep.subr.mxu0 0.0
        %2670 = vmatpush1.msra.mxu0 0.0
        %2671 = vmatprep.subr.mxu0 0.0
        %2672 = vmatpush1.msra.mxu0 0.0
        %2673 = vmatprep.subr.mxu0 0.0
        %2674 = vmatpush1.msra.mxu0 %v2648
        %2675 = vmatprep.subr.mxu0 0.0
        %2676 = vmatpush1.msra.mxu0 %v2647
        %2677 = vmatprep.subr.mxu0 0.0
        %2678 = vmatpush1.msra.mxu0 %v2646
        %2679 = vmatprep.subr.mxu0 0.0
        %2680 = vmatpush1.msra.mxu0 %v2645
        %2681 = vmatprep.subr.mxu0 0.0
        %2682 = vmatpush2.msra.mxu0 0.0
        %2683 = vmatprep.subr.mxu0 0.0
        %2684 = vmatpush2.msra.mxu0 0.0
        %2685 = vmatprep.subr.mxu0 0.0
        %2686 = vmatpush2.msra.mxu0 0.0
        %2687 = vmatprep.subr.mxu0 0.0
        %2688 = vmatpush2.msra.mxu0 0.0
        %2689 = vmatprep.subr.mxu0 0.0
        %2690 = vmatpush2.msra.mxu0 0.0
        %2691 = vmatprep.subr.mxu0 0.0
        %2692 = vmatpush2.msra.mxu0 0.0
        %2693 = vmatprep.subr.mxu0 0.0
        %2694 = vmatpush2.msra.mxu0 0.0
        %2695 = vmatprep.subr.mxu0 0.0
        %2696 = vmatpush2.msra.mxu0 0.0
        %2697 = vmatprep.subr.mxu0 0.0
        %2698 = vmatpush2.msra.mxu0 0.0
        %2699 = vmatprep.subr.mxu0 0.0
        %2700 = vmatpush2.msra.mxu0 0.0
        %2701 = vmatprep.subr.mxu0 0.0
        %2702 = vmatpush2.msra.mxu0 0.0
        %2703 = vmatprep.subr.mxu0 0.0
        %2704 = vmatpush2.msra.mxu0 0.0
        %2705 = vmatprep.subr.mxu0 0.0
        %2706 = vmatpush2.msra.mxu0 0.0
        %2707 = vmatprep.subr.mxu0 0.0
        %2708 = vmatpush2.msra.mxu0 0.0
        %2709 = vmatprep.subr.mxu0 0.0
        %2710 = vmatpush2.msra.mxu0 0.0
        %2711 = vmatprep.subr.mxu0 0.0
        %2712 = vmatpush2.msra.mxu0 0.0
        %2713 = vmatprep.mubr.f32.mxu0 0.0
        %2714 = vmatmul.mubr.f32.gmra.mxu0 %v1380
        %v2715 = vpop.f32.mrf.mxu0
        %v2716 = vadd.f32 0.0, %v2715
        %v2717 = vpop.f32.mrf.mxu0
        %2718 = vdwg.mxu0
        %v2720 = vsel %vm870, %v2641, 0
        %v2723 = vsel %vm870, %v2716, 0
        %2725 = vmatprep.subr.mxu0 0.0
        %2726 = vmatpush1.xpose.msra.mxu0 0.0
        %2727 = vmatprep.subr.mxu0 0.0
        %2728 = vmatpush1.xpose.msra.mxu0 0.0
        %2729 = vmatprep.subr.mxu0 0.0
        %2730 = vmatpush1.xpose.msra.mxu0 0.0
        %2731 = vmatprep.subr.mxu0 0.0
        %2732 = vmatpush1.xpose.msra.mxu0 0.0
        %2733 = vmatprep.subr.mxu0 0.0
        %2734 = vmatpush1.xpose.msra.mxu0 0.0
        %2735 = vmatprep.subr.mxu0 0.0
        %2736 = vmatpush1.xpose.msra.mxu0 0.0
        %2737 = vmatprep.subr.mxu0 0.0
        %2738 = vmatpush1.xpose.msra.mxu0 0.0
        %2739 = vmatprep.subr.mxu0 0.0
        %2740 = vmatpush1.xpose.msra.mxu0 0.0
        %2741 = vmatprep.subr.mxu0 0.0
        %2742 = vmatpush1.xpose.msra.mxu0 0.0
        %2743 = vmatprep.subr.mxu0 0.0
        %2744 = vmatpush1.xpose.msra.mxu0 0.0
        %2745 = vmatprep.subr.mxu0 0.0
        %2746 = vmatpush1.xpose.msra.mxu0 0.0
        %2747 = vmatprep.subr.mxu0 0.0
        %2748 = vmatpush1.xpose.msra.mxu0 0.0
        %2749 = vmatprep.subr.mxu0 0.0
        %2750 = vmatpush1.xpose.msra.mxu0 0.0
        %2751 = vmatprep.subr.mxu0 0.0
        %2752 = vmatpush1.xpose.msra.mxu0 0.0
        %2753 = vmatprep.subr.mxu0 0.0
        %2754 = vmatpush1.xpose.msra.mxu0 0.0
        %2755 = vmatprep.subr.mxu0 0.0
        %2756 = vmatpush1.xpose.msra.mxu0 %v2723
        %2757 = vmatprep.subr.mxu0 0.0
        %2758 = vmatpush2.xpose.msra.mxu0 0.0
        %2759 = vmatprep.subr.mxu0 0.0
        %2760 = vmatpush2.xpose.msra.mxu0 0.0
        %2761 = vmatprep.subr.mxu0 0.0
        %2762 = vmatpush2.xpose.msra.mxu0 0.0
        %2763 = vmatprep.subr.mxu0 0.0
        %2764 = vmatpush2.xpose.msra.mxu0 0.0
        %2765 = vmatprep.subr.mxu0 0.0
        %2766 = vmatpush2.xpose.msra.mxu0 0.0
        %2767 = vmatprep.subr.mxu0 0.0
        %2768 = vmatpush2.xpose.msra.mxu0 0.0
        %2769 = vmatprep.subr.mxu0 0.0
        %2770 = vmatpush2.xpose.msra.mxu0 0.0
        %2771 = vmatprep.subr.mxu0 0.0
        %2772 = vmatpush2.xpose.msra.mxu0 0.0
        %2773 = vmatprep.subr.mxu0 0.0
        %2774 = vmatpush2.xpose.msra.mxu0 0.0
        %2775 = vmatprep.subr.mxu0 0.0
        %2776 = vmatpush2.xpose.msra.mxu0 0.0
        %2777 = vmatprep.subr.mxu0 0.0
        %2778 = vmatpush2.xpose.msra.mxu0 0.0
        %2779 = vmatprep.subr.mxu0 0.0
        %2780 = vmatpush2.xpose.msra.mxu0 0.0
        %2781 = vmatprep.subr.mxu0 0.0
        %2782 = vmatpush2.xpose.msra.mxu0 0.0
        %2783 = vmatprep.subr.mxu0 0.0
        %2784 = vmatpush2.xpose.msra.mxu0 0.0
        %2785 = vmatprep.subr.mxu0 0.0
        %2786 = vmatpush2.xpose.msra.mxu0 0.0
        %2787 = vmatprep.subr.mxu0 0.0
        %2788 = vmatpush2.xpose.msra.mxu0 0.0
        %2789 = vmatprep.mubr.f32.mxu0 0.0
        %2790 = vmatmul.mubr.f32.gmra.mxu0 %v2720
        %v2791 = vpop.f32.mrf.mxu0
        %v2792 = vadd.f32 0.0, %v2791
        %v2793 = vpop.f32.mrf.mxu0
        %2794 = vdwg.mxu0
        %v2795 = vsel %vm945, %v2792, -inf
        %2796 = vmax.xlane.f32.xlu0 %v2795
        %v2797 = vpop.xlane.xlu0 %2796
        %v2798 = vsub.f32 %v2792, %v2797
        %v2799 = vmul.f32 %v2798, 1.442695
        %v2800 = vpow.pop %v2799
        %v2801 = vsel %vm945, %v2800, 0.0
        %2802 = vadd.xlane.f32.xlu0 %v2801
        %v2803 = vpop.xlane.xlu0 %2802
        %v2804 = vrcp.pop %v2803
        %v2805 = vmul.f32 %v2800, %v2804
        %2806 = vrot.lane.b32.xlu0 %v2716, 96
        %v2807 = vpop.permute.xlu0 %2806
        %v2810 = vsel %vm945, %v2805, 0
        %2812 = vmatprep.subr.mxu0 0.0
        %2813 = vmatpush1.msra.mxu0 0.0
        %2814 = vmatprep.subr.mxu0 0.0
        %2815 = vmatpush1.msra.mxu0 0.0
        %2816 = vmatprep.subr.mxu0 0.0
        %2817 = vmatpush1.msra.mxu0 0.0
        %2818 = vmatprep.subr.mxu0 0.0
        %2819 = vmatpush1.msra.mxu0 0.0
        %2820 = vmatprep.subr.mxu0 0.0
        %2821 = vmatpush1.msra.mxu0 0.0
        %2822 = vmatprep.subr.mxu0 0.0
        %2823 = vmatpush1.msra.mxu0 0.0
        %2824 = vmatprep.subr.mxu0 0.0
        %2825 = vmatpush1.msra.mxu0 0.0
        %2826 = vmatprep.subr.mxu0 0.0
        %2827 = vmatpush1.msra.mxu0 0.0
        %2828 = vmatprep.subr.mxu0 0.0
        %2829 = vmatpush1.msra.mxu0 0.0
        %2830 = vmatprep.subr.mxu0 0.0
        %2831 = vmatpush1.msra.mxu0 0.0
        %2832 = vmatprep.subr.mxu0 0.0
        %2833 = vmatpush1.msra.mxu0 0.0
        %2834 = vmatprep.subr.mxu0 0.0
        %2835 = vmatpush1.msra.mxu0 0.0
        %2836 = vmatprep.subr.mxu0 0.0
        %2837 = vmatpush1.msra.mxu0 0.0
        %2838 = vmatprep.subr.mxu0 0.0
        %2839 = vmatpush1.msra.mxu0 0.0
        %2840 = vmatprep.subr.mxu0 0.0
        %2841 = vmatpush1.msra.mxu0 0.0
        %2842 = vmatprep.subr.mxu0 0.0
        %2843 = vmatpush1.msra.mxu0 %v2807
        %2844 = vmatprep.subr.mxu0 0.0
        %2845 = vmatpush2.msra.mxu0 0.0
        %2846 = vmatprep.subr.mxu0 0.0
        %2847 = vmatpush2.msra.mxu0 0.0
        %2848 = vmatprep.subr.mxu0 0.0
        %2849 = vmatpush2.msra.mxu0 0.0
        %2850 = vmatprep.subr.mxu0 0.0
        %2851 = vmatpush2.msra.mxu0 0.0
        %2852 = vmatprep.subr.mxu0 0.0
        %2853 = vmatpush2.msra.mxu0 0.0
        %2854 = vmatprep.subr.mxu0 0.0
        %2855 = vmatpush2.msra.mxu0 0.0
        %2856 = vmatprep.subr.mxu0 0.0
        %2857 = vmatpush2.msra.mxu0 0.0
        %2858 = vmatprep.subr.mxu0 0.0
        %2859 = vmatpush2.msra.mxu0 0.0
        %2860 = vmatprep.subr.mxu0 0.0
        %2861 = vmatpush2.msra.mxu0 0.0
        %2862 = vmatprep.subr.mxu0 0.0
        %2863 = vmatpush2.msra.mxu0 0.0
        %2864 = vmatprep.subr.mxu0 0.0
        %2865 = vmatpush2.msra.mxu0 0.0
        %2866 = vmatprep.subr.mxu0 0.0
        %2867 = vmatpush2.msra.mxu0 0.0
        %2868 = vmatprep.subr.mxu0 0.0
        %2869 = vmatpush2.msra.mxu0 0.0
        %2870 = vmatprep.subr.mxu0 0.0
        %2871 = vmatpush2.msra.mxu0 0.0
        %2872 = vmatprep.subr.mxu0 0.0
        %2873 = vmatpush2.msra.mxu0 0.0
        %2874 = vmatprep.subr.mxu0 0.0
        %2875 = vmatpush2.msra.mxu0 0.0
        %2876 = vmatprep.mubr.f32.mxu0 0.0
        %2877 = vmatmul.mubr.f32.gmra.mxu0 %v2810
        %v2878 = vpop.f32.mrf.mxu0
        %v2879 = vadd.f32 0.0, %v2878
        %v2880 = vpop.f32.mrf.mxu0
        %2881 = vdwg.mxu0
        %2882 = vrot.lane.b32.xlu0 %v2641, 112
        %v2883 = vpop.permute.xlu0 %2882
        %2884 = vrot.lane.b32.xlu0 %v2716, 112
        %v2885 = vpop.permute.xlu0 %2884
        %v2886 = vsel %vm870, %v2883, 0
        %v2888 = vsel %vm870, %v2885, 0
        %2890 = vmatprep.subr.mxu0 0.0
        %2891 = vmatpush1.xpose.msra.mxu0 0.0
        %2892 = vmatprep.subr.mxu0 0.0
        %2893 = vmatpush1.xpose.msra.mxu0 0.0
        %2894 = vmatprep.subr.mxu0 0.0
        %2895 = vmatpush1.xpose.msra.mxu0 0.0
        %2896 = vmatprep.subr.mxu0 0.0
        %2897 = vmatpush1.xpose.msra.mxu0 0.0
        %2898 = vmatprep.subr.mxu0 0.0
        %2899 = vmatpush1.xpose.msra.mxu0 0.0
        %2900 = vmatprep.subr.mxu0 0.0
        %2901 = vmatpush1.xpose.msra.mxu0 0.0
        %2902 = vmatprep.subr.mxu0 0.0
        %2903 = vmatpush1.xpose.msra.mxu0 0.0
        %2904 = vmatprep.subr.mxu0 0.0
        %2905 = vmatpush1.xpose.msra.mxu0 0.0
        %2906 = vmatprep.subr.mxu0 0.0
        %2907 = vmatpush1.xpose.msra.mxu0 0.0
        %2908 = vmatprep.subr.mxu0 0.0
        %2909 = vmatpush1.xpose.msra.mxu0 0.0
        %2910 = vmatprep.subr.mxu0 0.0
        %2911 = vmatpush1.xpose.msra.mxu0 0.0
        %2912 = vmatprep.subr.mxu0 0.0
        %2913 = vmatpush1.xpose.msra.mxu0 0.0
        %2914 = vmatprep.subr.mxu0 0.0
        %2915 = vmatpush1.xpose.msra.mxu0 0.0
        %2916 = vmatprep.subr.mxu0 0.0
        %2917 = vmatpush1.xpose.msra.mxu0 0.0
        %2918 = vmatprep.subr.mxu0 0.0
        %2919 = vmatpush1.xpose.msra.mxu0 0.0
        %2920 = vmatprep.subr.mxu0 0.0
        %2921 = vmatpush1.xpose.msra.mxu0 %v2888
        %2922 = vmatprep.subr.mxu0 0.0
        %2923 = vmatpush2.xpose.msra.mxu0 0.0
        %2924 = vmatprep.subr.mxu0 0.0
        %2925 = vmatpush2.xpose.msra.mxu0 0.0
        %2926 = vmatprep.subr.mxu0 0.0
        %2927 = vmatpush2.xpose.msra.mxu0 0.0
        %2928 = vmatprep.subr.mxu0 0.0
        %2929 = vmatpush2.xpose.msra.mxu0 0.0
        %2930 = vmatprep.subr.mxu0 0.0
        %2931 = vmatpush2.xpose.msra.mxu0 0.0
        %2932 = vmatprep.subr.mxu0 0.0
        %2933 = vmatpush2.xpose.msra.mxu0 0.0
        %2934 = vmatprep.subr.mxu0 0.0
        %2935 = vmatpush2.xpose.msra.mxu0 0.0
        %2936 = vmatprep.subr.mxu0 0.0
        %2937 = vmatpush2.xpose.msra.mxu0 0.0
        %2938 = vmatprep.subr.mxu0 0.0
        %2939 = vmatpush2.xpose.msra.mxu0 0.0
        %2940 = vmatprep.subr.mxu0 0.0
        %2941 = vmatpush2.xpose.msra.mxu0 0.0
        %2942 = vmatprep.subr.mxu0 0.0
        %2943 = vmatpush2.xpose.msra.mxu0 0.0
        %2944 = vmatprep.subr.mxu0 0.0
        %2945 = vmatpush2.xpose.msra.mxu0 0.0
        %2946 = vmatprep.subr.mxu0 0.0
        %2947 = vmatpush2.xpose.msra.mxu0 0.0
        %2948 = vmatprep.subr.mxu0 0.0
        %2949 = vmatpush2.xpose.msra.mxu0 0.0
        %2950 = vmatprep.subr.mxu0 0.0
        %2951 = vmatpush2.xpose.msra.mxu0 0.0
        %2952 = vmatprep.subr.mxu0 0.0
        %2953 = vmatpush2.xpose.msra.mxu0 0.0
        %2954 = vmatprep.mubr.f32.mxu0 0.0
        %2955 = vmatmul.mubr.f32.gmra.mxu0 %v2886
        %v2956 = vpop.f32.mrf.mxu0
        %v2957 = vadd.f32 0.0, %v2956
        %v2958 = vpop.f32.mrf.mxu0
        %2959 = vdwg.mxu0
        %v2960 = vsel %vm945, %v2957, -inf
        %2961 = vmax.xlane.f32.xlu0 %v2960
        %v2962 = vpop.xlane.xlu0 %2961
        %v2963 = vsub.f32 %v2957, %v2962
        %v2964 = vmul.f32 %v2963, 1.442695
        %v2965 = vpow.pop %v2964
        %v2966 = vsel %vm945, %v2965, 0.0
        %2967 = vadd.xlane.f32.xlu0 %v2966
        %v2968 = vpop.xlane.xlu0 %2967
        %v2969 = vrcp.pop %v2968
        %v2970 = vmul.f32 %v2965, %v2969
        %2971 = vrot.lane.b32.xlu0 %v2716, 80
        %v2972 = vpop.permute.xlu0 %2971
        %v2975 = vsel %vm945, %v2970, 0
        %2977 = vmatprep.subr.mxu0 0.0
        %2978 = vmatpush1.msra.mxu0 0.0
        %2979 = vmatprep.subr.mxu0 0.0
        %2980 = vmatpush1.msra.mxu0 0.0
        %2981 = vmatprep.subr.mxu0 0.0
        %2982 = vmatpush1.msra.mxu0 0.0
        %2983 = vmatprep.subr.mxu0 0.0
        %2984 = vmatpush1.msra.mxu0 0.0
        %2985 = vmatprep.subr.mxu0 0.0
        %2986 = vmatpush1.msra.mxu0 0.0
        %2987 = vmatprep.subr.mxu0 0.0
        %2988 = vmatpush1.msra.mxu0 0.0
        %2989 = vmatprep.subr.mxu0 0.0
        %2990 = vmatpush1.msra.mxu0 0.0
        %2991 = vmatprep.subr.mxu0 0.0
        %2992 = vmatpush1.msra.mxu0 0.0
        %2993 = vmatprep.subr.mxu0 0.0
        %2994 = vmatpush1.msra.mxu0 0.0
        %2995 = vmatprep.subr.mxu0 0.0
        %2996 = vmatpush1.msra.mxu0 0.0
        %2997 = vmatprep.subr.mxu0 0.0
        %2998 = vmatpush1.msra.mxu0 0.0
        %2999 = vmatprep.subr.mxu0 0.0
        %3000 = vmatpush1.msra.mxu0 0.0
        %3001 = vmatprep.subr.mxu0 0.0
        %3002 = vmatpush1.msra.mxu0 0.0
        %3003 = vmatprep.subr.mxu0 0.0
        %3004 = vmatpush1.msra.mxu0 0.0
        %3005 = vmatprep.subr.mxu0 0.0
        %3006 = vmatpush1.msra.mxu0 0.0
        %3007 = vmatprep.subr.mxu0 0.0
        %3008 = vmatpush1.msra.mxu0 %v2972
        %3009 = vmatprep.subr.mxu0 0.0
        %3010 = vmatpush2.msra.mxu0 0.0
        %3011 = vmatprep.subr.mxu0 0.0
        %3012 = vmatpush2.msra.mxu0 0.0
        %3013 = vmatprep.subr.mxu0 0.0
        %3014 = vmatpush2.msra.mxu0 0.0
        %3015 = vmatprep.subr.mxu0 0.0
        %3016 = vmatpush2.msra.mxu0 0.0
        %3017 = vmatprep.subr.mxu0 0.0
        %3018 = vmatpush2.msra.mxu0 0.0
        %3019 = vmatprep.subr.mxu0 0.0
        %3020 = vmatpush2.msra.mxu0 0.0
        %3021 = vmatprep.subr.mxu0 0.0
        %3022 = vmatpush2.msra.mxu0 0.0
        %3023 = vmatprep.subr.mxu0 0.0
        %3024 = vmatpush2.msra.mxu0 0.0
        %3025 = vmatprep.subr.mxu0 0.0
        %3026 = vmatpush2.msra.mxu0 0.0
        %3027 = vmatprep.subr.mxu0 0.0
        %3028 = vmatpush2.msra.mxu0 0.0
        %3029 = vmatprep.subr.mxu0 0.0
        %3030 = vmatpush2.msra.mxu0 0.0
        %3031 = vmatprep.subr.mxu0 0.0
        %3032 = vmatpush2.msra.mxu0 0.0
        %3033 = vmatprep.subr.mxu0 0.0
        %3034 = vmatpush2.msra.mxu0 0.0
        %3035 = vmatprep.subr.mxu0 0.0
        %3036 = vmatpush2.msra.mxu0 0.0
        %3037 = vmatprep.subr.mxu0 0.0
        %3038 = vmatpush2.msra.mxu0 0.0
        %3039 = vmatprep.subr.mxu0 0.0
        %3040 = vmatpush2.msra.mxu0 0.0
        %3041 = vmatprep.mubr.f32.mxu0 0.0
        %3042 = vmatmul.mubr.f32.gmra.mxu0 %v2975
        %v3043 = vpop.f32.mrf.mxu0
        %v3044 = vadd.f32 0.0, %v3043
        %v3045 = vpop.f32.mrf.mxu0
        %3046 = vdwg.mxu0
        %3048 = vrot.lane.b32.xlu0 %v3044, 16
        %v3049 = vpop.permute.xlu0 %3048
        %v3051 = vsel %vm870, %v2879, %v3049
        %s3052 = scalar_lea.vmem [#allocation11], 32
        %v3053 = vld [vmem:[%s3052] sm:$0xff]
        %v3054 = vld [vmem:[%s3052 + $0x8] sm:$0xff]
        %v3055 = vld [vmem:[%s3052 + $0x10] sm:$0xff]
        %v3056 = vld [vmem:[%s3052 + $0x18] sm:$0xff]
        %v3058 = vsel %vm774, %v3051, 0
        %3060 = vmatprep.subr.mxu0 0.0
        %3061 = vmatpush1.msra.mxu0 0.0
        %3062 = vmatprep.subr.mxu0 0.0
        %3063 = vmatpush1.msra.mxu0 0.0
        %3064 = vmatprep.subr.mxu0 0.0
        %3065 = vmatpush1.msra.mxu0 0.0
        %3066 = vmatprep.subr.mxu0 0.0
        %3067 = vmatpush1.msra.mxu0 0.0
        %3068 = vmatprep.subr.mxu0 0.0
        %3069 = vmatpush1.msra.mxu0 0.0
        %3070 = vmatprep.subr.mxu0 0.0
        %3071 = vmatpush1.msra.mxu0 0.0
        %3072 = vmatprep.subr.mxu0 0.0
        %3073 = vmatpush1.msra.mxu0 0.0
        %3074 = vmatprep.subr.mxu0 0.0
        %3075 = vmatpush1.msra.mxu0 0.0
        %3076 = vmatprep.subr.mxu0 0.0
        %3077 = vmatpush1.msra.mxu0 0.0
        %3078 = vmatprep.subr.mxu0 0.0
        %3079 = vmatpush1.msra.mxu0 0.0
        %3080 = vmatprep.subr.mxu0 0.0
        %3081 = vmatpush1.msra.mxu0 0.0
        %3082 = vmatprep.subr.mxu0 0.0
        %3083 = vmatpush1.msra.mxu0 0.0
        %3084 = vmatprep.subr.mxu0 0.0
        %3085 = vmatpush1.msra.mxu0 %v3056
        %3086 = vmatprep.subr.mxu0 0.0
        %3087 = vmatpush1.msra.mxu0 %v3055
        %3088 = vmatprep.subr.mxu0 0.0
        %3089 = vmatpush1.msra.mxu0 %v3054
        %3090 = vmatprep.subr.mxu0 0.0
        %3091 = vmatpush1.msra.mxu0 %v3053
        %3092 = vmatprep.subr.mxu0 0.0
        %3093 = vmatpush2.msra.mxu0 0.0
        %3094 = vmatprep.subr.mxu0 0.0
        %3095 = vmatpush2.msra.mxu0 0.0
        %3096 = vmatprep.subr.mxu0 0.0
        %3097 = vmatpush2.msra.mxu0 0.0
        %3098 = vmatprep.subr.mxu0 0.0
        %3099 = vmatpush2.msra.mxu0 0.0
        %3100 = vmatprep.subr.mxu0 0.0
        %3101 = vmatpush2.msra.mxu0 0.0
        %3102 = vmatprep.subr.mxu0 0.0
        %3103 = vmatpush2.msra.mxu0 0.0
        %3104 = vmatprep.subr.mxu0 0.0
        %3105 = vmatpush2.msra.mxu0 0.0
        %3106 = vmatprep.subr.mxu0 0.0
        %3107 = vmatpush2.msra.mxu0 0.0
        %3108 = vmatprep.subr.mxu0 0.0
        %3109 = vmatpush2.msra.mxu0 0.0
        %3110 = vmatprep.subr.mxu0 0.0
        %3111 = vmatpush2.msra.mxu0 0.0
        %3112 = vmatprep.subr.mxu0 0.0
        %3113 = vmatpush2.msra.mxu0 0.0
        %3114 = vmatprep.subr.mxu0 0.0
        %3115 = vmatpush2.msra.mxu0 0.0
        %3116 = vmatprep.subr.mxu0 0.0
        %3117 = vmatpush2.msra.mxu0 0.0
        %3118 = vmatprep.subr.mxu0 0.0
        %3119 = vmatpush2.msra.mxu0 0.0
        %3120 = vmatprep.subr.mxu0 0.0
        %3121 = vmatpush2.msra.mxu0 0.0
        %3122 = vmatprep.subr.mxu0 0.0
        %3123 = vmatpush2.msra.mxu0 0.0
        %3124 = vmatprep.mubr.f32.mxu0 0.0
        %3125 = vmatmul.mubr.f32.gmra.mxu0 %v3058
        %v3126 = vpop.f32.mrf.mxu0
        %v3127 = vadd.f32 0.0, %v3126
        %v3128 = vpop.f32.mrf.mxu0
        %3129 = vdwg.mxu0
        %v3130 = vadd.f32 %v2547, %v3127
        %s3131 = scalar_lea.vmem %s10, 1
        %v3132 = vld [vmem:[%s3131] sm:$0x1]
        %v3133 = vmul.f32 %v3130, %v3130
        %v3134 = vsel %vm774, %v3133, 0.0
        %3135 = vadd.xlane.f32.xlu0 %v3134
        %v3136 = vpop.xlane.xlu0 %3135
        %v3137 = vmul.f32 %v3136, %v778
        %v3138 = vadd.f32 %v3137, 1e-06
        %v3139 = vrsqrt.pop %v3138
        %v3140 = vmul.f32 %v3130, %v3139
        %v3142 = vlaneseq
        %v3143 = vshrl.u32 %v3142, 7
        %v3144 = vsub.s32 0, %v3143
        %v3145 = vrot.slane %v3132, %v3144
        %v3147 = vmul.f32 %v3140, %v3145
        %s3148 = scalar_lea.vmem [#allocation13], 32
        %v3149 = vld [vmem:[%s3148] sm:$0xff]
        %v3150 = vld [vmem:[%s3148 + $0x8] sm:$0xff]
        %v3151 = vld [vmem:[%s3148 + $0x10] sm:$0xff]
        %v3152 = vld [vmem:[%s3148 + $0x18] sm:$0xff]
        %v3154 = vsel %vm774, %v3147, 0
        %3156 = vmatprep.subr.mxu0 0.0
        %3157 = vmatpush1.msra.mxu0 0.0
        %3158 = vmatprep.subr.mxu0 0.0
        %3159 = vmatpush1.msra.mxu0 0.0
        %3160 = vmatprep.subr.mxu0 0.0
        %3161 = vmatpush1.msra.mxu0 0.0
        %3162 = vmatprep.subr.mxu0 0.0
        %3163 = vmatpush1.msra.mxu0 0.0
        %3164 = vmatprep.subr.mxu0 0.0
        %3165 = vmatpush1.msra.mxu0 0.0
        %3166 = vmatprep.subr.mxu0 0.0
        %3167 = vmatpush1.msra.mxu0 0.0
        %3168 = vmatprep.subr.mxu0 0.0
        %3169 = vmatpush1.msra.mxu0 0.0
        %3170 = vmatprep.subr.mxu0 0.0
        %3171 = vmatpush1.msra.mxu0 0.0
        %3172 = vmatprep.subr.mxu0 0.0
        %3173 = vmatpush1.msra.mxu0 0.0
        %3174 = vmatprep.subr.mxu0 0.0
        %3175 = vmatpush1.msra.mxu0 0.0
        %3176 = vmatprep.subr.mxu0 0.0
        %3177 = vmatpush1.msra.mxu0 0.0
        %3178 = vmatprep.subr.mxu0 0.0
        %3179 = vmatpush1.msra.mxu0 0.0
        %3180 = vmatprep.subr.mxu0 0.0
        %3181 = vmatpush1.msra.mxu0 %v3152
        %3182 = vmatprep.subr.mxu0 0.0
        %3183 = vmatpush1.msra.mxu0 %v3151
        %3184 = vmatprep.subr.mxu0 0.0
        %3185 = vmatpush1.msra.mxu0 %v3150
        %3186 = vmatprep.subr.mxu0 0.0
        %3187 = vmatpush1.msra.mxu0 %v3149
        %3188 = vmatprep.subr.mxu0 0.0
        %3189 = vmatpush2.msra.mxu0 0.0
        %3190 = vmatprep.subr.mxu0 0.0
        %3191 = vmatpush2.msra.mxu0 0.0
        %3192 = vmatprep.subr.mxu0 0.0
        %3193 = vmatpush2.msra.mxu0 0.0
        %3194 = vmatprep.subr.mxu0 0.0
        %3195 = vmatpush2.msra.mxu0 0.0
        %3196 = vmatprep.subr.mxu0 0.0
        %3197 = vmatpush2.msra.mxu0 0.0
        %3198 = vmatprep.subr.mxu0 0.0
        %3199 = vmatpush2.msra.mxu0 0.0
        %3200 = vmatprep.subr.mxu0 0.0
        %3201 = vmatpush2.msra.mxu0 0.0
        %3202 = vmatprep.subr.mxu0 0.0
        %3203 = vmatpush2.msra.mxu0 0.0
        %3204 = vmatprep.subr.mxu0 0.0
        %3205 = vmatpush2.msra.mxu0 0.0
        %3206 = vmatprep.subr.mxu0 0.0
        %3207 = vmatpush2.msra.mxu0 0.0
        %3208 = vmatprep.subr.mxu0 0.0
        %3209 = vmatpush2.msra.mxu0 0.0
        %3210 = vmatprep.subr.mxu0 0.0
        %3211 = vmatpush2.msra.mxu0 0.0
        %3212 = vmatprep.subr.mxu0 0.0
        %3213 = vmatpush2.msra.mxu0 0.0
        %3214 = vmatprep.subr.mxu0 0.0
        %3215 = vmatpush2.msra.mxu0 0.0
        %3216 = vmatprep.subr.mxu0 0.0
        %3217 = vmatpush2.msra.mxu0 0.0
        %3218 = vmatprep.subr.mxu0 0.0
        %3219 = vmatpush2.msra.mxu0 0.0
        %3220 = vmatprep.mubr.f32.mxu0 0.0
        %3221 = vmatmul.mubr.f32.gmra.mxu0 %v3154
        %v3222 = vpop.f32.mrf.mxu0
        %v3223 = vadd.f32 0.0, %v3222
        %v3224 = vpop.f32.mrf.mxu0
        %3225 = vdwg.mxu0
        %v3226 = vmax.f32 %v3223, 0.0
        %s3227 = scalar_lea.vmem [#allocation14], 64
        %v3228 = vld [vmem:[%s3227] sm:$0xff]
        %v3229 = vld [vmem:[%s3227 + $0x8] sm:$0xff]
        %v3230 = vld [vmem:[%s3227 + $0x10] sm:$0xff]
        %v3231 = vld [vmem:[%s3227 + $0x18] sm:$0xff]
        %v3232 = vld [vmem:[%s3227 + $0x20] sm:$0xff]
        %v3233 = vld [vmem:[%s3227 + $0x28] sm:$0xff]
        %v3234 = vld [vmem:[%s3227 + $0x30] sm:$0xff]
        %v3235 = vld [vmem:[%s3227 + $0x38] sm:$0xff]
        %v3237 = vsel %vm1965, %v3226, 0
        %3239 = vmatprep.subr.mxu0 0.0
        %3240 = vmatpush1.msra.mxu0 0.0
        %3241 = vmatprep.subr.mxu0 0.0
        %3242 = vmatpush1.msra.mxu0 0.0
        %3243 = vmatprep.subr.mxu0 0.0
        %3244 = vmatpush1.msra.mxu0 0.0
        %3245 = vmatprep.subr.mxu0 0.0
        %3246 = vmatpush1.msra.mxu0 0.0
        %3247 = vmatprep.subr.mxu0 0.0
        %3248 = vmatpush1.msra.mxu0 0.0
        %3249 = vmatprep.subr.mxu0 0.0
        %3250 = vmatpush1.msra.mxu0 0.0
        %3251 = vmatprep.subr.mxu0 0.0
        %3252 = vmatpush1.msra.mxu0 0.0
        %3253 = vmatprep.subr.mxu0 0.0
        %3254 = vmatpush1.msra.mxu0 0.0
        %3255 = vmatprep.subr.mxu0 0.0
        %3256 = vmatpush1.msra.mxu0 %v3235
        %3257 = vmatprep.subr.mxu0 0.0
        %3258 = vmatpush1.msra.mxu0 %v3234
        %3259 = vmatprep.subr.mxu0 0.0
        %3260 = vmatpush1.msra.mxu0 %v3233
        %3261 = vmatprep.subr.mxu0 0.0
        %3262 = vmatpush1.msra.mxu0 %v3232
        %3263 = vmatprep.subr.mxu0 0.0
        %3264 = vmatpush1.msra.mxu0 %v3231
        %3265 = vmatprep.subr.mxu0 0.0
        %3266 = vmatpush1.msra.mxu0 %v3230
        %3267 = vmatprep.subr.mxu0 0.0
        %3268 = vmatpush1.msra.mxu0 %v3229
        %3269 = vmatprep.subr.mxu0 0.0
        %3270 = vmatpush1.msra.mxu0 %v3228
        %3271 = vmatprep.subr.mxu0 0.0
        %3272 = vmatpush2.msra.mxu0 0.0
        %3273 = vmatprep.subr.mxu0 0.0
        %3274 = vmatpush2.msra.mxu0 0.0
        %3275 = vmatprep.subr.mxu0 0.0
        %3276 = vmatpush2.msra.mxu0 0.0
        %3277 = vmatprep.subr.mxu0 0.0
        %3278 = vmatpush2.msra.mxu0 0.0
        %3279 = vmatprep.subr.mxu0 0.0
        %3280 = vmatpush2.msra.mxu0 0.0
        %3281 = vmatprep.subr.mxu0 0.0
        %3282 = vmatpush2.msra.mxu0 0.0
        %3283 = vmatprep.subr.mxu0 0.0
        %3284 = vmatpush2.msra.mxu0 0.0
        %3285 = vmatprep.subr.mxu0 0.0
        %3286 = vmatpush2.msra.mxu0 0.0
        %3287 = vmatprep.subr.mxu0 0.0
        %3288 = vmatpush2.msra.mxu0 0.0
        %3289 = vmatprep.subr.mxu0 0.0
        %3290 = vmatpush2.msra.mxu0 0.0
        %3291 = vmatprep.subr.mxu0 0.0
        %3292 = vmatpush2.msra.mxu0 0.0
        %3293 = vmatprep.subr.mxu0 0.0
        %3294 = vmatpush2.msra.mxu0 0.0
        %3295 = vmatprep.subr.mxu0 0.0
        %3296 = vmatpush2.msra.mxu0 0.0
        %3297 = vmatprep.subr.mxu0 0.0
        %3298 = vmatpush2.msra.mxu0 0.0
        %3299 = vmatprep.subr.mxu0 0.0
        %3300 = vmatpush2.msra.mxu0 0.0
        %3301 = vmatprep.subr.mxu0 0.0
        %3302 = vmatpush2.msra.mxu0 0.0
        %3303 = vmatprep.mubr.f32.mxu0 0.0
        %3304 = vmatmul.mubr.f32.gmra.mxu0 %v3237
        %v3305 = vpop.f32.mrf.mxu0
        %v3306 = vadd.f32 0.0, %v3305
        %v3307 = vpop.f32.mrf.mxu0
        %3308 = vdwg.mxu0
        %v3309 = vadd.f32 %v3130, %v3306
        %v3310 = vld [vmem:[%s13] sm:$0x1]
        %v3311 = vmul.f32 %v3309, %v3309
        %v3312 = vsel %vm774, %v3311, 0.0
        %3313 = vadd.xlane.f32.xlu0 %v3312
        %v3314 = vpop.xlane.xlu0 %3313
        %v3315 = vmul.f32 %v3314, %v778
        %v3316 = vadd.f32 %v3315, 1e-06
        %v3317 = vrsqrt.pop %v3316
        %v3318 = vmul.f32 %v3309, %v3317
        %v3320 = vlaneseq
        %v3321 = vshrl.u32 %v3320, 7
        %v3322 = vsub.s32 0, %v3321
        %v3323 = vrot.slane %v3310, %v3322
        %v3325 = vmul.f32 %v3318, %v3323
        %v3326 = vmul.f32 %v3325, 0.17677669
        %v3328 = vsel %vm774, %v3326, 0
        %v3331 = vsel %vm774, %v681, 0
        %v3334 = vsel %vm774, %v682, 0
        %v3337 = vsel %vm774, %v683, 0
        %v3340 = vsel %vm774, %v684, 0
        %v3343 = vsel %vm774, %v685, 0
        %v3346 = vsel %vm774, %v686, 0
        %v3349 = vsel %vm774, %v687, 0
        %v3352 = vsel %vm774, %v688, 0
        %v3355 = vsel %vm774, %v689, 0
        %v3358 = vsel %vm774, %v690, 0
        %v3361 = vsel %vm774, %v691, 0
        %v3364 = vsel %vm774, %v692, 0
        %v3367 = vsel %vm774, %v693, 0
        %v3370 = vsel %vm774, %v694, 0
        %v3373 = vsel %vm774, %v695, 0
        %v3376 = vsel %vm774, %v696, 0
        %3378 = vmatprep.subr.mxu0 0.0
        %3379 = vmatpush1.xpose.msra.mxu0 %v3376
        %3380 = vmatprep.subr.mxu0 0.0
        %3381 = vmatpush1.xpose.msra.mxu0 %v3373
        %3382 = vmatprep.subr.mxu0 0.0
        %3383 = vmatpush1.xpose.msra.mxu0 %v3370
        %3384 = vmatprep.subr.mxu0 0.0
        %3385 = vmatpush1.xpose.msra.mxu0 %v3367
        %3386 = vmatprep.subr.mxu0 0.0
        %3387 = vmatpush1.xpose.msra.mxu0 %v3364
        %3388 = vmatprep.subr.mxu0 0.0
        %3389 = vmatpush1.xpose.msra.mxu0 %v3361
        %3390 = vmatprep.subr.mxu0 0.0
        %3391 = vmatpush1.xpose.msra.mxu0 %v3358
        %3392 = vmatprep.subr.mxu0 0.0
        %3393 = vmatpush1.xpose.msra.mxu0 %v3355
        %3394 = vmatprep.subr.mxu0 0.0
        %3395 = vmatpush1.xpose.msra.mxu0 %v3352
        %3396 = vmatprep.subr.mxu0 0.0
        %3397 = vmatpush1.xpose.msra.mxu0 %v3349
        %3398 = vmatprep.subr.mxu0 0.0
        %3399 = vmatpush1.xpose.msra.mxu0 %v3346
        %3400 = vmatprep.subr.mxu0 0.0
        %3401 = vmatpush1.xpose.msra.mxu0 %v3343
        %3402 = vmatprep.subr.mxu0 0.0
        %3403 = vmatpush1.xpose.msra.mxu0 %v3340
        %3404 = vmatprep.subr.mxu0 0.0
        %3405 = vmatpush1.xpose.msra.mxu0 %v3337
        %3406 = vmatprep.subr.mxu0 0.0
        %3407 = vmatpush1.xpose.msra.mxu0 %v3334
        %3408 = vmatprep.subr.mxu0 0.0
        %3409 = vmatpush1.xpose.msra.mxu0 %v3331
        %3410 = vmatprep.subr.mxu0 0.0
        %3411 = vmatpush2.xpose.msra.mxu0 0.0
        %3412 = vmatprep.subr.mxu0 0.0
        %3413 = vmatpush2.xpose.msra.mxu0 0.0
        %3414 = vmatprep.subr.mxu0 0.0
        %3415 = vmatpush2.xpose.msra.mxu0 0.0
        %3416 = vmatprep.subr.mxu0 0.0
        %3417 = vmatpush2.xpose.msra.mxu0 0.0
        %3418 = vmatprep.subr.mxu0 0.0
        %3419 = vmatpush2.xpose.msra.mxu0 0.0
        %3420 = vmatprep.subr.mxu0 0.0
        %3421 = vmatpush2.xpose.msra.mxu0 0.0
        %3422 = vmatprep.subr.mxu0 0.0
        %3423 = vmatpush2.xpose.msra.mxu0 0.0
        %3424 = vmatprep.subr.mxu0 0.0
        %3425 = vmatpush2.xpose.msra.mxu0 0.0
        %3426 = vmatprep.subr.mxu0 0.0
        %3427 = vmatpush2.xpose.msra.mxu0 0.0
        %3428 = vmatprep.subr.mxu0 0.0
        %3429 = vmatpush2.xpose.msra.mxu0 0.0
        %3430 = vmatprep.subr.mxu0 0.0
        %3431 = vmatpush2.xpose.msra.mxu0 0.0
        %3432 = vmatprep.subr.mxu0 0.0
        %3433 = vmatpush2.xpose.msra.mxu0 0.0
        %3434 = vmatprep.subr.mxu0 0.0
        %3435 = vmatpush2.xpose.msra.mxu0 0.0
        %3436 = vmatprep.subr.mxu0 0.0
        %3437 = vmatpush2.xpose.msra.mxu0 0.0
        %3438 = vmatprep.subr.mxu0 0.0
        %3439 = vmatpush2.xpose.msra.mxu0 0.0
        %3440 = vmatprep.subr.mxu0 0.0
        %3441 = vmatpush2.xpose.msra.mxu0 0.0
        %3442 = vmatprep.mubr.f32.mxu0 0.0
        %3443 = vmatmul.mubr.f32.gmra.mxu0 %v3328
        %v3444 = vpop.f32.mrf.mxu0
        %v3445 = vadd.f32 0.0, %v3444
        %v3446 = vpop.f32.mrf.mxu0
        %3447 = vdwg.mxu0
        %3448 = vst [vmem:[%s643] sm:$0xff] %v3445
        %3450 = vrot.lane.b32.xlu0 %v2137, 64
        %v3451 = vpop.permute.xlu0 %3450
        %v3453 = vsel %vm1965, %v869, %v3451
        %3454 = vst [vmem:[%s667] sm:$0xff] %v3453
        %3455 = vrot.lane.b32.xlu0 %v2716, 64
        %v3456 = vpop.permute.xlu0 %3455
        %v3458 = vsel %vm1965, %v1449, %v3456
        %3459 = vst [vmem:[%s671] sm:$0xff] %v3458
        %s3460 = sand.u32 %s348, 1
        %s3461 = scalar_lea.sflag [#allocation4], %s3460
        %s3462 = sand.u32 %s348, 1
        %s3463 = smul.addr %s3462, 8
        %s3464 = scalar_lea.vmem [#allocation16], %s3463
        %p3465 = scmp.lt.s32.totalorder %s36, 1
        %s3466 = scalar_select %p3465, %s36, 1
        %s3467 = smul.addr %s3466, 8
        %s3468 = scalar_lea.vmem %s15, %s3467
        %p3469 = scmp.lt.s32.totalorder %s36, 1
        %s3470 = scalar_select %p3469, %s36, 1
        %s3471 = smul.addr %s3470, 8
        %s3472 = scalar_lea.vmem %s16, %s3471
        // Predicated region
        $region109: #{t5_decoder_forward.1} parent=75 // pred_check
          %p3473 = pneg %p358
        $region110: #{t5_decoder_forward.1} parent=75 // pred_check_branch
          %3475 = sbr.rel (%p3473) target = $region112
        $region111: #{t5_decoder_forward.1} parent=75 // pred_region
          %s3477 = ssub.s32 128, 128
          %3478 = vsyncadd %s3461, %s3477
          %s3479 = smul.addr %s36, 128
          %s3480 = scalar_lea.hbm %s14, %s3479
          %s3482 = sshll.u32 %s3464, 4
          %s3483 = int_to_ptr.vmem [resolvable:$true] %s3482
          %3485 = dma.vmem_to_hbm [thread:$0]  %s3483, 128, %s3480, %s3461
        $region112: #{t5_decoder_forward.1} parent=75 // pred_fallthru
          _
        // Predicated region
        $region113: #{t5_decoder_forward.1} parent=75 // pred_check
          %p3486 = pneg %p384
        $region114: #{t5_decoder_forward.1} parent=75 // pred_check_branch
          %3488 = sbr.rel (%p3486) target = $region116
        $region115: #{t5_decoder_forward.1} parent=75 // pred_region
          _
        $region116: #{t5_decoder_forward.1} parent=75 // pred_fallthru
          _
        // Predicated region
        $region117: #{t5_decoder_forward.1} parent=75 // pred_check
          %p3489 = pneg %p410
        $region118: #{t5_decoder_forward.1} parent=75 // pred_check_branch
          %3491 = sbr.rel (%p3489) target = $region120
        $region119: #{t5_decoder_forward.1} parent=75 // pred_region
          _
        $region120: #{t5_decoder_forward.1} parent=75 // pred_fallthru
          _
      $region76: #{t5_decoder_forward.1} parent=5 // pred_fallthru
        _
      %p3492 = scmp.le.s32.totalorder 2, %s31
      // Predicated region
      $region121: #{t5_decoder_forward.1} parent=5 // pred_check
        %p3493 = pneg %p3492
      $region122: #{t5_decoder_forward.1} parent=5 // pred_check_branch
        %3495 = sbr.rel (%p3493) target = $region124
      $region123: #{t5_decoder_forward.1} parent=5 // pred_region
        %s3496 = ssub.s32 %s31, 2
        // Predicated region
        $region125: #{t5_decoder_forward.1} parent=123 // pred_check
          %p3497 = pneg %p364
        $region126: #{t5_decoder_forward.1} parent=123 // pred_check_branch
          %3499 = sbr.rel (%p3497) target = $region128
        $region127: #{t5_decoder_forward.1} parent=123 // pred_region
          %s3500 = sand.u32 %s349, 1
          %s3501 = scalar_lea.sflag [#allocation4], %s3500
          %s3502 = sand.u32 %s349, 1
          %s3503 = smul.addr %s3502, 8
          %s3504 = scalar_lea.vmem [#allocation16], %s3503
          %3505 = dma.done %s3501, 128
        $region128: #{t5_decoder_forward.1} parent=123 // pred_fallthru
          _
        // Predicated region
        $region129: #{t5_decoder_forward.1} parent=123 // pred_check
          %p3506 = pneg %p390
        $region130: #{t5_decoder_forward.1} parent=123 // pred_check_branch
          %3508 = sbr.rel (%p3506) target = $region132
        $region131: #{t5_decoder_forward.1} parent=123 // pred_region
          %p3509 = scmp.lt.s32.totalorder %s37, 1
          %s3510 = scalar_select %p3509, %s37, 1
          %s3511 = smul.addr %s3510, 8
          %s3512 = scalar_lea.vmem %s15, %s3511
        $region132: #{t5_decoder_forward.1} parent=123 // pred_fallthru
          _
        // Predicated region
        $region133: #{t5_decoder_forward.1} parent=123 // pred_check
          %p3513 = pneg %p416
        $region134: #{t5_decoder_forward.1} parent=123 // pred_check_branch
          %3515 = sbr.rel (%p3513) target = $region136
        $region135: #{t5_decoder_forward.1} parent=123 // pred_region
          %p3516 = scmp.lt.s32.totalorder %s37, 1
          %s3517 = scalar_select %p3516, %s37, 1
          %s3518 = smul.addr %s3517, 8
          %s3519 = scalar_lea.vmem %s16, %s3518
        $region136: #{t5_decoder_forward.1} parent=123 // pred_fallthru
          _
      $region124: #{t5_decoder_forward.1} parent=5 // pred_fallthru
        _
    $region6: #{t5_decoder_forward.1} parent=1 // loop_footer
      %s35 = sadd.s32 1, %s31
    $region7: #{t5_decoder_forward.1} parent=1 // loop_footer_branch
      %30 = sbr.rel target = $region3
    $region8: #{t5_decoder_forward.1} parent=1 // loop_exit
      _
    %3520 = vsyncpa [#allocation3], 1
    %s3521 = scalar_lea.sflag [#allocation3], 1
    %3522 = vsyncpa %s3521, 1
    %3523 = vsyncpa [#allocation6], 1
    %3524 = vsyncpa [#allocation9], 1
    %3525 = vsyncpa [#allocation12], 1
    %3526 = vsyncpa [#allocation15], 1
    %3527 = vsyncpa [#allocation4], 1
    %s3528 = scalar_lea.sflag [#allocation4], 1
    %3529 = vsyncpa %s3528, 1

</llo_original>
